<compile_context>
chip_gen: v7x
topology: tpu7x:2x2x1
jax: 0.10.0
libtpu: 0.0.40
codegen_flags: <defaults>
</compile_context>

<pallas_src>
import jax
import jax.numpy as jnp
from jax import lax
from jax.experimental import pallas as pl
from jax.experimental.pallas import tpu as pltpu

# ------------------------- config (small shapes) -------------------------
BATCH  = 2      # batch_size
CHUNK  = 8      # chunk_size  (GRU sequence length T)
SEQ    = 16     # seq_len     (tokens per utterance)
NHID   = 32     # "bert" hidden size (roberta-base would be 768)
NLAYER = 2      # GRU layers
NCLASS = 4
VOCAB  = 100
HID    = NHID // 2          # per-direction GRU hidden size
LANES  = 128                # lane-dense padding (logits / vocab)
NEG_BIG = -1e9              # bias value for padded logit columns

NUTT = BATCH * CHUNK        # number of utterances N (= T*B)
NTOK = NUTT * SEQ           # flattened token count

VMEM = pl.BlockSpec(memory_space=pltpu.MemorySpace.VMEM)


# ------------------------- fused forward kernel -------------------------
def fused_forward_kernel(*refs):
    """Entire BertRNN forward in one invocation."""
    (ids_ref, msk_ref, tab_ref, pool_tm_ref, p_rev_ref, p_b_ref,
     wp_ref, bp_ref) = refs[:8]
    layer_refs = refs[8:8 + 4 * NLAYER]
    wfc_ref, bfc_ref, labels_ref = refs[8 + 4 * NLAYER:11 + 4 * NLAYER]
    logits_ref, loss_ref = refs[11 + 4 * NLAYER:13 + 4 * NLAYER]
    hs_ref = refs[13 + 4 * NLAYER]

    B, T, H = BATCH, CHUNK, HID
    H2, H4 = 2 * H, 4 * H

    # ---- frozen "BERT" replacement, fully in-kernel ----
    # TODO(synk): the frozen 12-layer roberta-base encoder has no compact Pallas
    # equivalent; it is replaced by a frozen token-embedding + masked-mean-pool +
    # dense projection producing the same (N, NHID) "CLS" tensor.
    # Token gather == multi-hot matmul; per-utterance masked sum, token count and
    # the b-major -> t-major reorder are all in one constant pooling matrix.
    vcol = lax.broadcasted_iota(jnp.int32, (NTOK, LANES), 1)
    oh = ((vcol == ids_ref[...]).astype(jnp.float32)
          * msk_ref[...]).astype(jnp.bfloat16)                          # (NTOK, 128)
    tok = jnp.dot(oh, tab_ref[...], preferred_element_type=jnp.float32)  # (NTOK, NHID+1)
    agg = jnp.dot(pool_tm_ref[...], tok.astype(jnp.bfloat16),
                  preferred_element_type=jnp.float32)                    # (N, NHID+1) t-major
    pooled = agg[:, :NHID] / jnp.maximum(agg[:, NHID:], 1.0)             # exact divide
    emb = jnp.dot(pooled.astype(jnp.bfloat16), wp_ref[...],
                  preferred_element_type=jnp.float32) + bp_ref[...]      # (N, NHID) t-major

    # layer-0 joint input stream [x(t) | x(T-1-t)]: ONE reversal + ONE concat
    p_rev = p_rev_ref[...]
    emb_rev = jnp.dot(p_rev, emb.astype(jnp.bfloat16),
                      preferred_element_type=jnp.float32)
    xj = jnp.concatenate([emb, emb_rev], axis=-1)                        # (N, 2*NHID)

    out_tm = None
    for l in range(NLAYER):
        wih_ref, whh_ref, gb_ref, bn_ref = layer_refs[4 * l:4 * l + 4]

        # hoisted input projection: ONE matmul for all 3 gates x 2 directions;
        # b_ih (all gates) and b_hh (r, z) folded into gb.
        gi = jnp.dot(xj.astype(jnp.bfloat16), wih_ref[...],
                     preferred_element_type=jnp.float32) + gb_ref[...]   # (N, 6H)
        gi_rz = gi[:, :H4]
        gi_n = gi[:, H4:]
        whh = whh_ref[...]          # (2H, 6H) bf16, resident across all T steps
        bn = bn_ref[...]            # (B, 2H) f32 pre-broadcast b_hn

        h = jnp.zeros((B, H2), jnp.float32)
        for t in range(T):          # fully unrolled 8-step serial recurrence
            gh = jnp.dot(h.astype(jnp.bfloat16), whh,
                         preferred_element_type=jnp.float32)             # ONE fused gate matmul
            rz = jax.nn.sigmoid(gi_rz[t * B:(t + 1) * B] + gh[:, :H4])   # ONE sigmoid for r|z
            r = rz[:, :H2]
            z = rz[:, H2:]
            n = jnp.tanh(gi_n[t * B:(t + 1) * B] + r * (gh[:, H4:] + bn))
            h = (1.0 - z) * n + z * h
            hs_ref[pl.ds(t * B, B), :] = h        # bound live range: 1 store/step

        hs = hs_ref[...]                                                 # (N, 2H)
        hs_rev = jnp.dot(p_rev, hs.astype(jnp.bfloat16),
                         preferred_element_type=jnp.float32)             # block-row reversal
        if l + 1 < NLAYER:
            # next layer joint stream [x(t) | x(T-1-t)], with x(t)=[h_f(t)|h_b(t)]
            xj = jnp.concatenate([hs[:, :H], hs_rev[:, H:],
                                  hs_rev[:, :H], hs[:, H:]], axis=-1)
            # inter-layer GRU dropout + self.dropout: identity (eval-mode semantics)
        else:
            out_tm = jnp.concatenate([hs[:, :H], hs_rev[:, H:]], axis=-1)  # (N, 2H)

    # ---- classifier head: t-major -> b-major permutation, lane-dense fc ----
    out_bm = jnp.dot(p_b_ref[...], out_tm.astype(jnp.bfloat16),
                     preferred_element_type=jnp.float32)                 # (N, NHID) b-major
    logits = jnp.dot(out_bm.astype(jnp.bfloat16), wfc_ref[...],
                     preferred_element_type=jnp.float32) + bfc_ref[...]  # (N, 128)
    logits_ref[...] = logits                                             # pad cols hold NEG_BIG

    # ---- CrossEntropy(ignore_index=-1) over b-major rows ----
    labels = labels_ref[...]                                             # (N, 1) int32
    mx = jnp.max(logits, axis=-1, keepdims=True)
    lse = jnp.log(jnp.sum(jnp.exp(logits - mx), axis=-1, keepdims=True)) + mx
    col = lax.broadcasted_iota(jnp.int32, logits.shape, 1)
    picked = jnp.sum(logits * (col == labels).astype(jnp.float32),
                     axis=-1, keepdims=True)
    valid = (labels != -1).astype(jnp.float32)
    total = jnp.sum((lse - picked) * valid, axis=0, keepdims=True)
    # TODO(synk): PyTorch returns NaN when every label == ignore_index; we clamp to 0.0.
    cnt = jnp.maximum(jnp.sum(valid, axis=0, keepdims=True), 1.0)
    loss_ref[...] = total / cnt


def fused_forward(ids_flat, mask_flat, ops, labels):
    n_in = 2 + len(ops) + 1
    return pl.pallas_call(
        fused_forward_kernel,
        out_shape=(jax.ShapeDtypeStruct((NUTT, LANES), jnp.float32),
                   jax.ShapeDtypeStruct((1, 1), jnp.float32)),
        in_specs=[VMEM] * n_in,
        out_specs=(VMEM, VMEM),
        scratch_shapes=[pltpu.VMEM((NUTT, 2 * HID), jnp.float32)],
    )(ids_flat, mask_flat, *ops, labels)


# ------------------------- parameter init & packing -------------------------
def init_params(key):
    keys = iter(jax.random.split(key, 8 + 16 * NLAYER))
    p = {}
    p['tok_emb'] = 0.1 * jax.random.normal(next(keys), (VOCAB, NHID), jnp.float32)
    p['w_pool'] = 0.1 * jax.random.normal(next(keys), (NHID, NHID), jnp.float32)
    p['b_pool'] = jnp.zeros((1, NHID), jnp.float32)
    bound = float(1.0 / (HID ** 0.5))
    for l in range(NLAYER):
        isz = NHID    # bidirectional: every layer's input width is 2*HID == NHID
        for d in ('f', 'b'):
            p[f'wih_{d}{l}'] = jax.random.uniform(next(keys), (3, isz, HID),
                                                  jnp.float32, -bound, bound)
            p[f'whh_{d}{l}'] = jax.random.uniform(next(keys), (3, HID, HID),
                                                  jnp.float32, -bound, bound)
            p[f'bih_{d}{l}'] = jax.random.uniform(next(keys), (3, 1, HID),
                                                  jnp.float32, -bound, bound)
            p[f'bhh_{d}{l}'] = jax.random.uniform(next(keys), (3, 1, HID),
                                                  jnp.float32, -bound, bound)
    p['w_fc'] = 0.1 * jax.random.normal(next(keys), (NHID, NCLASS), jnp.float32)
    p['b_fc'] = jnp.zeros((1, NCLASS), jnp.float32)
    return p


def _blockdiag(a, b):
    za = jnp.zeros((a.shape[0], b.shape[1]), a.dtype)
    zb = jnp.zeros((b.shape[0], a.shape[1]), b.dtype)
    return jnp.concatenate([jnp.concatenate([a, za], axis=1),
                            jnp.concatenate([zb, b], axis=1)], axis=0)


def build_kernel_operands(params):
    """One-time packing of weights and constant pooling/permutation matrices."""
    # token table padded to 128 rows; extra ones-column also yields the mask count
    # (mean-pool denominator) from the same matmul chain.
    tab = jnp.zeros((LANES, NHID + 1), jnp.float32)
    tab = tab.at[:VOCAB, :NHID].set(params['tok_emb'])
    tab = tab.at[:VOCAB, NHID].set(1.0)

    r = jnp.arange(NUTT)
    t_idx, b_idx = r // BATCH, r % BATCH
    src_utt = b_idx * CHUNK + t_idx                           # b-major utterance index
    pool_tm = (jnp.arange(NTOK)[None, :] // SEQ == src_utt[:, None]).astype(jnp.bfloat16)
    rev_src = (CHUNK - 1 - t_idx) * BATCH + b_idx
    p_rev = (jnp.arange(NUTT)[None, :] == rev_src[:, None]).astype(jnp.bfloat16)
    rb = jnp.arange(NUTT)
    bm_src = (rb % CHUNK) * BATCH + rb // CHUNK
    p_b = (jnp.arange(NUTT)[None, :] == bm_src[:, None]).astype(jnp.bfloat16)

    ops = [tab.astype(jnp.bfloat16), pool_tm, p_rev, p_b,
           params['w_pool'].astype(jnp.bfloat16), params['b_pool']]

    for l in range(NLAYER):
        wf, wb = params[f'wih_f{l}'], params[f'wih_b{l}']     # (3, NHID, HID)
        uf, ub = params[f'whh_f{l}'], params[f'whh_b{l}']     # (3, HID, HID)
        bif, bib = params[f'bih_f{l}'], params[f'bih_b{l}']   # (3, 1, HID)
        bhf, bhb = params[f'bhh_f{l}'], params[f'bhh_b{l}']
        # gate-major lanes (r|z|n), block-diagonal fwd/bwd inside each gate
        wih_all = jnp.concatenate([_blockdiag(wf[g], wb[g]) for g in range(3)], axis=1)
        whh_all = jnp.concatenate([_blockdiag(uf[g], ub[g]) for g in range(3)], axis=1)
        # b_ih (all gates) and b_hh (r, z) fold into the hoisted input projection
        gbias = jnp.concatenate([bif[0] + bhf[0], bib[0] + bhb[0],
                                 bif[1] + bhf[1], bib[1] + bhb[1],
                                 bif[2], bib[2]], axis=1)                # (1, 6H)
        # b_hn stays inside the r*(.) term (PyTorch GRU); pre-broadcast to (B, 2H)
        bhn = jnp.tile(jnp.concatenate([bhf[2], bhb[2]], axis=1), (BATCH, 1))
        ops += [wih_all.astype(jnp.bfloat16), whh_all.astype(jnp.bfloat16), gbias, bhn]

    wfc = jnp.concatenate([params['w_fc'],
                           jnp.zeros((NHID, LANES - NCLASS), jnp.float32)], axis=-1)
    bfc = jnp.concatenate([params['b_fc'],
                           jnp.full((1, LANES - NCLASS), NEG_BIG, jnp.float32)], axis=-1)
    ops += [wfc.astype(jnp.bfloat16), bfc]
    return ops


# ------------------------- full forward pass (wrapper) -------------------------
def bert_rnn_forward(params, input_ids, attention_mask, speaker_ids, chunk_lens,
                     utterance_attention_mask, rm_labels, w_da, w_rr, w_rm,
                     da_labels=None):
    batch_size, chunk_size, seq_len = input_ids.shape
    n = batch_size * chunk_size
    speaker_ids = speaker_ids.reshape(-1)          # parity with PyTorch; unused downstream

    # wrapper does metadata reshapes only (no gather / transpose / matmul glue)
    ids_flat = input_ids.reshape(n * seq_len, 1).astype(jnp.int32)
    mask_flat = attention_mask.reshape(n * seq_len, 1).astype(jnp.float32)
    if da_labels is None:
        labels = jnp.full((n, 1), -1, jnp.int32)
    else:
        labels = da_labels.reshape(n, 1).astype(jnp.int32)

    ops = build_kernel_operands(params)            # one-time weight packing
    logits_pad, loss11 = fused_forward(ids_flat, mask_flat, ops, labels)

    da_outputs = logits_pad[:, :NCLASS]            # kernel already emits b-major rows
    total_loss = None if da_labels is None else w_da * loss11[0, 0]
    return da_outputs, total_loss


# ------------------------- pure-JAX reference (same math) -------------------------
def reference_forward(params, input_ids, attention_mask, da_labels, w_da):
    B, T, S = input_ids.shape
    ids = input_ids.reshape(-1, S)
    msk = attention_mask.reshape(-1, S).astype(jnp.float32)
    tab = params['tok_emb'].astype(jnp.bfloat16).astype(jnp.float32)  # kernel uses bf16 table
    tok = jnp.take(tab, ids, axis=0)
    summed = jnp.sum(tok * msk[:, :, None], axis=1)
    denom = jnp.maximum(jnp.sum(msk, axis=1, keepdims=True), 1.0)
    pooled = summed / denom
    emb = jnp.dot(pooled.astype(jnp.bfloat16), params['w_pool'].astype(jnp.bfloat16),
                  preferred_element_type=jnp.float32) + params['b_pool']
    x = emb.reshape(B, T, NHID).transpose(1, 0, 2)             # (T, B, NHID)

    def gru_dir(x_seq, wih, whh, bih, bhh, reverse):
        order = range(T - 1, -1, -1) if reverse else range(T)
        h = jnp.zeros((B, HID), jnp.float32)
        outs = [None] * T
        for t in order:
            xb, hb = x_seq[t].astype(jnp.bfloat16), h.astype(jnp.bfloat16)
            gi = [jnp.dot(xb, wih[g].astype(jnp.bfloat16),
                          preferred_element_type=jnp.float32) + bih[g] for g in range(3)]
            gh = [jnp.dot(hb, whh[g].astype(jnp.bfloat16),
                          preferred_element_type=jnp.float32) + bhh[g] for g in range(3)]
            r = jax.nn.sigmoid(gi[0] + gh[0])
            z = jax.nn.sigmoid(gi[1] + gh[1])
            nn_ = jnp.tanh(gi[2] + r * gh[2])
            h = (1.0 - z) * nn_ + z * h
            outs[t] = h
        return outs

    for l in range(NLAYER):
        f = gru_dir(x, params[f'wih_f{l}'], params[f'whh_f{l}'],
                    params[f'bih_f{l}'], params[f'bhh_f{l}'], reverse=False)
        bw = gru_dir(x, params[f'wih_b{l}'], params[f'whh_b{l}'],
                     params[f'bih_b{l}'], params[f'bhh_b{l}'], reverse=True)
        x = jnp.stack([jnp.concatenate([f[t], bw[t]], axis=-1) for t in range(T)], axis=0)

    flat = x.transpose(1, 0, 2).reshape(-1, NHID)
    logits = jnp.dot(flat.astype(jnp.bfloat16), params['w_fc'].astype(jnp.bfloat16),
                     preferred_element_type=jnp.float32) + params['b_fc']
    labels = da_labels.reshape(-1)
    mx = jnp.max(logits, axis=-1, keepdims=True)
    lse = jnp.log(jnp.sum(jnp.exp(logits - mx), axis=-1, keepdims=True)) + mx
    picked = jnp.take_along_axis(logits, jnp.clip(labels, 0, NCLASS - 1)[:, None], axis=-1)
    valid = (labels != -1).astype(jnp.float32)[:, None]
    loss = jnp.sum((lse - picked) * valid) / jnp.maximum(jnp.sum(valid), 1.0)
    return logits, w_da * loss


# ------------------------- main -------------------------
if __name__ == "__main__":
    key = jax.random.PRNGKey(0)
    k_param, k_ids, k_mask, k_spk, k_lab = jax.random.split(key, 5)

    params = init_params(k_param)

    input_ids = jax.random.randint(k_ids, (BATCH, CHUNK, SEQ), 0, VOCAB, jnp.int32)
    pos = jnp.arange(SEQ)[None, None, :]
    lens = jax.random.randint(k_mask, (BATCH, CHUNK, 1), 4, SEQ + 1, jnp.int32)
    attention_mask = (pos < lens).astype(jnp.int32)
    speaker_ids = jax.random.randint(k_spk, (BATCH, CHUNK), 0, 2, jnp.int32)
    chunk_lens = jnp.full((BATCH,), CHUNK, jnp.int32)
    utterance_attention_mask = jnp.ones((BATCH, CHUNK), jnp.int32)
    rm_labels = jnp.zeros((BATCH, CHUNK), jnp.int32)
    da_labels = jax.random.randint(k_lab, (BATCH, CHUNK), -1, NCLASS, jnp.int32)
    w_da, w_rr, w_rm = 1.0, 0.5, 0.5

    da_outputs, total_loss = bert_rnn_forward(
        params, input_ids, attention_mask, speaker_ids, chunk_lens,
        utterance_attention_mask, rm_labels, w_da, w_rr, w_rm, da_labels=da_labels)

    da_outputs = jax.block_until_ready(da_outputs)
    total_loss = jax.block_until_ready(total_loss)

    assert da_outputs.shape == (BATCH * CHUNK, NCLASS)
    assert total_loss.shape == ()
    assert bool(jnp.isfinite(total_loss))

    # pure-JAX reference check (same bf16 matmul casts / bf16 token table)
    ref_logits, ref_loss = reference_forward(params, input_ids, attention_mask,
                                             da_labels, w_da)
    assert bool(jnp.allclose(da_outputs, ref_logits, atol=5e-2, rtol=5e-2))
    assert bool(jnp.allclose(total_loss, ref_loss, atol=5e-2, rtol=5e-2))

    print("KERNEL_OK")
</pallas_src>

<mosaic_0001>
module attributes {stable_mosaic.version = 11 : i64} {
  func.func @fused_forward_kernel(%arg0: memref<256x1xi32, #tpu.memory_space<vmem>>, %arg1: memref<256x1xf32, #tpu.memory_space<vmem>>, %arg2: memref<128x33xbf16, #tpu.memory_space<vmem>>, %arg3: memref<16x256xbf16, #tpu.memory_space<vmem>>, %arg4: memref<16x16xbf16, #tpu.memory_space<vmem>>, %arg5: memref<16x16xbf16, #tpu.memory_space<vmem>>, %arg6: memref<32x32xbf16, #tpu.memory_space<vmem>>, %arg7: memref<1x32xf32, #tpu.memory_space<vmem>>, %arg8: memref<64x96xbf16, #tpu.memory_space<vmem>>, %arg9: memref<32x96xbf16, #tpu.memory_space<vmem>>, %arg10: memref<1x96xf32, #tpu.memory_space<vmem>>, %arg11: memref<2x32xf32, #tpu.memory_space<vmem>>, %arg12: memref<64x96xbf16, #tpu.memory_space<vmem>>, %arg13: memref<32x96xbf16, #tpu.memory_space<vmem>>, %arg14: memref<1x96xf32, #tpu.memory_space<vmem>>, %arg15: memref<2x32xf32, #tpu.memory_space<vmem>>, %arg16: memref<32x128xbf16, #tpu.memory_space<vmem>>, %arg17: memref<1x128xf32, #tpu.memory_space<vmem>>, %arg18: memref<16x1xi32, #tpu.memory_space<vmem>>, %arg19: memref<16x128xf32, #tpu.memory_space<vmem>>, %arg20: memref<1x1xf32, #tpu.memory_space<vmem>>, %arg21: memref<16x32xf32, #tpu.memory_space<vmem>>) attributes {dimension_semantics = [], scalar_prefetch = 0 : i64, scratch_operands = 1 : i64, tpu.core_type = #tpu.core_type<tc>} {
    %0 = tpu.iota {dimensions = array<i32: 1>} : vector<256x128xi32>
    %c0 = arith.constant 0 : index
    %c0_0 = arith.constant 0 : index
    %1 = vector.load %arg0[%c0, %c0_0] : memref<256x1xi32, #tpu.memory_space<vmem>>, vector<256x1xi32>
    %2 = vector.broadcast %1 : vector<256x1xi32> to vector<256x128xi32>
    %3 = arith.cmpi eq, %0, %2 : vector<256x128xi32>
    %4 = arith.extui %3 : vector<256x128xi1> to vector<256x128xi32>
    %5 = arith.sitofp %4 : vector<256x128xi32> to vector<256x128xf32>
    %c0_1 = arith.constant 0 : index
    %c0_2 = arith.constant 0 : index
    %6 = vector.load %arg1[%c0_1, %c0_2] : memref<256x1xf32, #tpu.memory_space<vmem>>, vector<256x1xf32>
    %7 = vector.broadcast %6 : vector<256x1xf32> to vector<256x128xf32>
    %8 = arith.mulf %5, %7 : vector<256x128xf32>
    %9 = arith.truncf %8 : vector<256x128xf32> to vector<256x128xbf16>
    %c0_3 = arith.constant 0 : index
    %c0_4 = arith.constant 0 : index
    %10 = vector.load %arg2[%c0_3, %c0_4] : memref<128x33xbf16, #tpu.memory_space<vmem>>, vector<128x33xbf16>
    %cst = arith.constant dense<0.000000e+00> : vector<256x33xf32>
    %11 = tpu.matmul %9, %10, %cst {dimension_numbers = #tpu.dot_dimension_numbers<[1], [0], [0], [1], [0, 0, 1, 1], [], []>} : vector<256x128xbf16>, vector<128x33xbf16>, vector<256x33xf32> -> vector<256x33xf32>
    %c0_5 = arith.constant 0 : index
    %c0_6 = arith.constant 0 : index
    %12 = vector.load %arg3[%c0_5, %c0_6] : memref<16x256xbf16, #tpu.memory_space<vmem>>, vector<16x256xbf16>
    %13 = arith.truncf %11 : vector<256x33xf32> to vector<256x33xbf16>
    %cst_7 = arith.constant dense<0.000000e+00> : vector<16x33xf32>
    %14 = tpu.matmul %12, %13, %cst_7 {dimension_numbers = #tpu.dot_dimension_numbers<[1], [0], [0], [1], [0, 0, 1, 1], [], []>} : vector<16x256xbf16>, vector<256x33xbf16>, vector<16x33xf32> -> vector<16x33xf32>
    %15 = vector.extract_strided_slice %14 {offsets = [0, 0], sizes = [16, 32], strides = [1, 1]} : vector<16x33xf32> to vector<16x32xf32>
    %16 = vector.extract_strided_slice %14 {offsets = [0, 32], sizes = [16, 1], strides = [1, 1]} : vector<16x33xf32> to vector<16x1xf32>
    %cst_8 = arith.constant 1.000000e+00 : f32
    %17 = vector.broadcast %cst_8 : f32 to vector<16x1xf32>
    %18 = arith.maximumf %16, %17 : vector<16x1xf32>
    %19 = vector.broadcast %18 : vector<16x1xf32> to vector<16x32xf32>
    %20 = arith.divf %15, %19 : vector<16x32xf32>
    %21 = arith.truncf %20 : vector<16x32xf32> to vector<16x32xbf16>
    %c0_9 = arith.constant 0 : index
    %c0_10 = arith.constant 0 : index
    %22 = vector.load %arg6[%c0_9, %c0_10] : memref<32x32xbf16, #tpu.memory_space<vmem>>, vector<32x32xbf16>
    %cst_11 = arith.constant dense<0.000000e+00> : vector<16x32xf32>
    %23 = tpu.matmul %21, %22, %cst_11 {dimension_numbers = #tpu.dot_dimension_numbers<[1], [0], [0], [1], [0, 0, 1, 1], [], []>} : vector<16x32xbf16>, vector<32x32xbf16>, vector<16x32xf32> -> vector<16x32xf32>
    %c0_12 = arith.constant 0 : index
    %c0_13 = arith.constant 0 : index
    %24 = vector.load %arg7[%c0_12, %c0_13] : memref<1x32xf32, #tpu.memory_space<vmem>>, vector<1x32xf32>
    %25 = vector.broadcast %24 : vector<1x32xf32> to vector<16x32xf32>
    %26 = arith.addf %23, %25 : vector<16x32xf32>
    %c0_14 = arith.constant 0 : index
    %c0_15 = arith.constant 0 : index
    %27 = vector.load %arg4[%c0_14, %c0_15] : memref<16x16xbf16, #tpu.memory_space<vmem>>, vector<16x16xbf16>
    %28 = arith.truncf %26 : vector<16x32xf32> to vector<16x32xbf16>
    %cst_16 = arith.constant dense<0.000000e+00> : vector<16x32xf32>
    %29 = tpu.matmul %27, %28, %cst_16 {dimension_numbers = #tpu.dot_dimension_numbers<[1], [0], [0], [1], [0, 0, 1, 1], [], []>} : vector<16x16xbf16>, vector<16x32xbf16>, vector<16x32xf32> -> vector<16x32xf32>
    %30 = tpu.concatenate %26, %29 in 1 : vector<16x32xf32>, vector<16x32xf32> -> vector<16x64xf32>
    %31 = arith.truncf %30 : vector<16x64xf32> to vector<16x64xbf16>
    %c0_17 = arith.constant 0 : index
    %c0_18 = arith.constant 0 : index
    %32 = vector.load %arg8[%c0_17, %c0_18] : memref<64x96xbf16, #tpu.memory_space<vmem>>, vector<64x96xbf16>
    %cst_19 = arith.constant dense<0.000000e+00> : vector<16x96xf32>
    %33 = tpu.matmul %31, %32, %cst_19 {dimension_numbers = #tpu.dot_dimension_numbers<[1], [0], [0], [1], [0, 0, 1, 1], [], []>} : vector<16x64xbf16>, vector<64x96xbf16>, vector<16x96xf32> -> vector<16x96xf32>
    %c0_20 = arith.constant 0 : index
    %c0_21 = arith.constant 0 : index
    %34 = vector.load %arg10[%c0_20, %c0_21] : memref<1x96xf32, #tpu.memory_space<vmem>>, vector<1x96xf32>
    %35 = vector.broadcast %34 : vector<1x96xf32> to vector<16x96xf32>
    %36 = arith.addf %33, %35 : vector<16x96xf32>
    %37 = vector.extract_strided_slice %36 {offsets = [0, 0], sizes = [16, 64], strides = [1, 1]} : vector<16x96xf32> to vector<16x64xf32>
    %38 = vector.extract_strided_slice %36 {offsets = [0, 64], sizes = [16, 32], strides = [1, 1]} : vector<16x96xf32> to vector<16x32xf32>
    %c0_22 = arith.constant 0 : index
    %c0_23 = arith.constant 0 : index
    %39 = vector.load %arg9[%c0_22, %c0_23] : memref<32x96xbf16, #tpu.memory_space<vmem>>, vector<32x96xbf16>
    %c0_24 = arith.constant 0 : index
    %c0_25 = arith.constant 0 : index
    %40 = vector.load %arg11[%c0_24, %c0_25] : memref<2x32xf32, #tpu.memory_space<vmem>>, vector<2x32xf32>
    %cst_26 = arith.constant 0.000000e+00 : f32
    %41 = vector.broadcast %cst_26 : f32 to vector<2x32xf32>
    %42 = arith.truncf %41 : vector<2x32xf32> to vector<2x32xbf16>
    %cst_27 = arith.constant dense<0.000000e+00> : vector<2x96xf32>
    %43 = tpu.matmul %42, %39, %cst_27 {dimension_numbers = #tpu.dot_dimension_numbers<[1], [0], [0], [1], [0, 0, 1, 1], [], []>} : vector<2x32xbf16>, vector<32x96xbf16>, vector<2x96xf32> -> vector<2x96xf32>
    %44 = vector.extract_strided_slice %37 {offsets = [0, 0], sizes = [2, 64], strides = [1, 1]} : vector<16x64xf32> to vector<2x64xf32>
    %45 = vector.extract_strided_slice %43 {offsets = [0, 0], sizes = [2, 64], strides = [1, 1]} : vector<2x96xf32> to vector<2x64xf32>
    %46 = arith.addf %44, %45 : vector<2x64xf32>
    %47 = arith.negf %46 : vector<2x64xf32>
    %48 = math.exp %47 : vector<2x64xf32>
    %cst_28 = arith.constant 1.000000e+00 : f32
    %49 = vector.broadcast %cst_28 : f32 to vector<2x64xf32>
    %50 = arith.addf %49, %48 : vector<2x64xf32>
    %51 = arith.divf %49, %50 : vector<2x64xf32>
    %52 = vector.extract_strided_slice %51 {offsets = [0, 0], sizes = [2, 32], strides = [1, 1]} : vector<2x64xf32> to vector<2x32xf32>
    %53 = vector.extract_strided_slice %51 {offsets = [0, 32], sizes = [2, 32], strides = [1, 1]} : vector<2x64xf32> to vector<2x32xf32>
    %54 = vector.extract_strided_slice %38 {offsets = [0, 0], sizes = [2, 32], strides = [1, 1]} : vector<16x32xf32> to vector<2x32xf32>
    %55 = vector.extract_strided_slice %43 {offsets = [0, 64], sizes = [2, 32], strides = [1, 1]} : vector<2x96xf32> to vector<2x32xf32>
    %56 = arith.addf %55, %40 : vector<2x32xf32>
    %57 = arith.mulf %52, %56 : vector<2x32xf32>
    %58 = arith.addf %54, %57 : vector<2x32xf32>
    %59 = math.tanh %58 : vector<2x32xf32>
    %cst_29 = arith.constant 1.000000e+00 : f32
    %60 = vector.broadcast %cst_29 : f32 to vector<2x32xf32>
    %61 = arith.subf %60, %53 : vector<2x32xf32>
    %62 = arith.mulf %61, %59 : vector<2x32xf32>
    %63 = arith.mulf %53, %41 : vector<2x32xf32>
    %64 = arith.addf %62, %63 : vector<2x32xf32>
    %c0_30 = arith.constant 0 : index
    %c0_31 = arith.constant 0 : index
    %65 = vector.load %arg21[%c0_30, %c0_31] : memref<16x32xf32, #tpu.memory_space<vmem>>, vector<2x32xf32>
    tpu.vector_store %arg21[%c0_30, %c0_31], %64 {strides = array<i32>} : memref<16x32xf32, #tpu.memory_space<vmem>>, vector<2x32xf32>,
    %66 = arith.truncf %64 : vector<2x32xf32> to vector<2x32xbf16>
    %cst_32 = arith.constant dense<0.000000e+00> : vector<2x96xf32>
    %67 = tpu.matmul %66, %39, %cst_32 {dimension_numbers = #tpu.dot_dimension_numbers<[1], [0], [0], [1], [0, 0, 1, 1], [], []>} : vector<2x32xbf16>, vector<32x96xbf16>, vector<2x96xf32> -> vector<2x96xf32>
    %68 = vector.extract_strided_slice %37 {offsets = [2, 0], sizes = [2, 64], strides = [1, 1]} : vector<16x64xf32> to vector<2x64xf32>
    %69 = vector.extract_strided_slice %67 {offsets = [0, 0], sizes = [2, 64], strides = [1, 1]} : vector<2x96xf32> to vector<2x64xf32>
    %70 = arith.addf %68, %69 : vector<2x64xf32>
    %71 = arith.negf %70 : vector<2x64xf32>
    %72 = math.exp %71 : vector<2x64xf32>
    %cst_33 = arith.constant 1.000000e+00 : f32
    %73 = vector.broadcast %cst_33 : f32 to vector<2x64xf32>
    %74 = arith.addf %73, %72 : vector<2x64xf32>
    %75 = arith.divf %73, %74 : vector<2x64xf32>
    %76 = vector.extract_strided_slice %75 {offsets = [0, 0], sizes = [2, 32], strides = [1, 1]} : vector<2x64xf32> to vector<2x32xf32>
    %77 = vector.extract_strided_slice %75 {offsets = [0, 32], sizes = [2, 32], strides = [1, 1]} : vector<2x64xf32> to vector<2x32xf32>
    %78 = vector.extract_strided_slice %38 {offsets = [2, 0], sizes = [2, 32], strides = [1, 1]} : vector<16x32xf32> to vector<2x32xf32>
    %79 = vector.extract_strided_slice %67 {offsets = [0, 64], sizes = [2, 32], strides = [1, 1]} : vector<2x96xf32> to vector<2x32xf32>
    %80 = arith.addf %79, %40 : vector<2x32xf32>
    %81 = arith.mulf %76, %80 : vector<2x32xf32>
    %82 = arith.addf %78, %81 : vector<2x32xf32>
    %83 = math.tanh %82 : vector<2x32xf32>
    %cst_34 = arith.constant 1.000000e+00 : f32
    %84 = vector.broadcast %cst_34 : f32 to vector<2x32xf32>
    %85 = arith.subf %84, %77 : vector<2x32xf32>
    %86 = arith.mulf %85, %83 : vector<2x32xf32>
    %87 = arith.mulf %77, %64 : vector<2x32xf32>
    %88 = arith.addf %86, %87 : vector<2x32xf32>
    %c2 = arith.constant 2 : index
    %c0_35 = arith.constant 0 : index
    %89 = vector.load %arg21[%c2, %c0_35] : memref<16x32xf32, #tpu.memory_space<vmem>>, vector<2x32xf32>
    tpu.vector_store %arg21[%c2, %c0_35], %88 {strides = array<i32>} : memref<16x32xf32, #tpu.memory_space<vmem>>, vector<2x32xf32>,
    %90 = arith.truncf %88 : vector<2x32xf32> to vector<2x32xbf16>
    %cst_36 = arith.constant dense<0.000000e+00> : vector<2x96xf32>
    %91 = tpu.matmul %90, %39, %cst_36 {dimension_numbers = #tpu.dot_dimension_numbers<[1], [0], [0], [1], [0, 0, 1, 1], [], []>} : vector<2x32xbf16>, vector<32x96xbf16>, vector<2x96xf32> -> vector<2x96xf32>
    %92 = vector.extract_strided_slice %37 {offsets = [4, 0], sizes = [2, 64], strides = [1, 1]} : vector<16x64xf32> to vector<2x64xf32>
    %93 = vector.extract_strided_slice %91 {offsets = [0, 0], sizes = [2, 64], strides = [1, 1]} : vector<2x96xf32> to vector<2x64xf32>
    %94 = arith.addf %92, %93 : vector<2x64xf32>
    %95 = arith.negf %94 : vector<2x64xf32>
    %96 = math.exp %95 : vector<2x64xf32>
    %cst_37 = arith.constant 1.000000e+00 : f32
    %97 = vector.broadcast %cst_37 : f32 to vector<2x64xf32>
    %98 = arith.addf %97, %96 : vector<2x64xf32>
    %99 = arith.divf %97, %98 : vector<2x64xf32>
    %100 = vector.extract_strided_slice %99 {offsets = [0, 0], sizes = [2, 32], strides = [1, 1]} : vector<2x64xf32> to vector<2x32xf32>
    %101 = vector.extract_strided_slice %99 {offsets = [0, 32], sizes = [2, 32], strides = [1, 1]} : vector<2x64xf32> to vector<2x32xf32>
    %102 = vector.extract_strided_slice %38 {offsets = [4, 0], sizes = [2, 32], strides = [1, 1]} : vector<16x32xf32> to vector<2x32xf32>
    %103 = vector.extract_strided_slice %91 {offsets = [0, 64], sizes = [2, 32], strides = [1, 1]} : vector<2x96xf32> to vector<2x32xf32>
    %104 = arith.addf %103, %40 : vector<2x32xf32>
    %105 = arith.mulf %100, %104 : vector<2x32xf32>
    %106 = arith.addf %102, %105 : vector<2x32xf32>
    %107 = math.tanh %106 : vector<2x32xf32>
    %cst_38 = arith.constant 1.000000e+00 : f32
    %108 = vector.broadcast %cst_38 : f32 to vector<2x32xf32>
    %109 = arith.subf %108, %101 : vector<2x32xf32>
    %110 = arith.mulf %109, %107 : vector<2x32xf32>
    %111 = arith.mulf %101, %88 : vector<2x32xf32>
    %112 = arith.addf %110, %111 : vector<2x32xf32>
    %c4 = arith.constant 4 : index
    %c0_39 = arith.constant 0 : index
    %113 = vector.load %arg21[%c4, %c0_39] : memref<16x32xf32, #tpu.memory_space<vmem>>, vector<2x32xf32>
    tpu.vector_store %arg21[%c4, %c0_39], %112 {strides = array<i32>} : memref<16x32xf32, #tpu.memory_space<vmem>>, vector<2x32xf32>,
    %114 = arith.truncf %112 : vector<2x32xf32> to vector<2x32xbf16>
    %cst_40 = arith.constant dense<0.000000e+00> : vector<2x96xf32>
    %115 = tpu.matmul %114, %39, %cst_40 {dimension_numbers = #tpu.dot_dimension_numbers<[1], [0], [0], [1], [0, 0, 1, 1], [], []>} : vector<2x32xbf16>, vector<32x96xbf16>, vector<2x96xf32> -> vector<2x96xf32>
    %116 = vector.extract_strided_slice %37 {offsets = [6, 0], sizes = [2, 64], strides = [1, 1]} : vector<16x64xf32> to vector<2x64xf32>
    %117 = vector.extract_strided_slice %115 {offsets = [0, 0], sizes = [2, 64], strides = [1, 1]} : vector<2x96xf32> to vector<2x64xf32>
    %118 = arith.addf %116, %117 : vector<2x64xf32>
    %119 = arith.negf %118 : vector<2x64xf32>
    %120 = math.exp %119 : vector<2x64xf32>
    %cst_41 = arith.constant 1.000000e+00 : f32
    %121 = vector.broadcast %cst_41 : f32 to vector<2x64xf32>
    %122 = arith.addf %121, %120 : vector<2x64xf32>
    %123 = arith.divf %121, %122 : vector<2x64xf32>
    %124 = vector.extract_strided_slice %123 {offsets = [0, 0], sizes = [2, 32], strides = [1, 1]} : vector<2x64xf32> to vector<2x32xf32>
    %125 = vector.extract_strided_slice %123 {offsets = [0, 32], sizes = [2, 32], strides = [1, 1]} : vector<2x64xf32> to vector<2x32xf32>
    %126 = vector.extract_strided_slice %38 {offsets = [6, 0], sizes = [2, 32], strides = [1, 1]} : vector<16x32xf32> to vector<2x32xf32>
    %127 = vector.extract_strided_slice %115 {offsets = [0, 64], sizes = [2, 32], strides = [1, 1]} : vector<2x96xf32> to vector<2x32xf32>
    %128 = arith.addf %127, %40 : vector<2x32xf32>
    %129 = arith.mulf %124, %128 : vector<2x32xf32>
    %130 = arith.addf %126, %129 : vector<2x32xf32>
    %131 = math.tanh %130 : vector<2x32xf32>
    %cst_42 = arith.constant 1.000000e+00 : f32
    %132 = vector.broadcast %cst_42 : f32 to vector<2x32xf32>
    %133 = arith.subf %132, %125 : vector<2x32xf32>
    %134 = arith.mulf %133, %131 : vector<2x32xf32>
    %135 = arith.mulf %125, %112 : vector<2x32xf32>
    %136 = arith.addf %134, %135 : vector<2x32xf32>
    %c6 = arith.constant 6 : index
    %c0_43 = arith.constant 0 : index
    %137 = vector.load %arg21[%c6, %c0_43] : memref<16x32xf32, #tpu.memory_space<vmem>>, vector<2x32xf32>
    tpu.vector_store %arg21[%c6, %c0_43], %136 {strides = array<i32>} : memref<16x32xf32, #tpu.memory_space<vmem>>, vector<2x32xf32>,
    %138 = arith.truncf %136 : vector<2x32xf32> to vector<2x32xbf16>
    %cst_44 = arith.constant dense<0.000000e+00> : vector<2x96xf32>
    %139 = tpu.matmul %138, %39, %cst_44 {dimension_numbers = #tpu.dot_dimension_numbers<[1], [0], [0], [1], [0, 0, 1, 1], [], []>} : vector<2x32xbf16>, vector<32x96xbf16>, vector<2x96xf32> -> vector<2x96xf32>
    %140 = vector.extract_strided_slice %37 {offsets = [8, 0], sizes = [2, 64], strides = [1, 1]} : vector<16x64xf32> to vector<2x64xf32>
    %141 = vector.extract_strided_slice %139 {offsets = [0, 0], sizes = [2, 64], strides = [1, 1]} : vector<2x96xf32> to vector<2x64xf32>
    %142 = arith.addf %140, %141 : vector<2x64xf32>
    %143 = arith.negf %142 : vector<2x64xf32>
    %144 = math.exp %143 : vector<2x64xf32>
    %cst_45 = arith.constant 1.000000e+00 : f32
    %145 = vector.broadcast %cst_45 : f32 to vector<2x64xf32>
    %146 = arith.addf %145, %144 : vector<2x64xf32>
    %147 = arith.divf %145, %146 : vector<2x64xf32>
    %148 = vector.extract_strided_slice %147 {offsets = [0, 0], sizes = [2, 32], strides = [1, 1]} : vector<2x64xf32> to vector<2x32xf32>
    %149 = vector.extract_strided_slice %147 {offsets = [0, 32], sizes = [2, 32], strides = [1, 1]} : vector<2x64xf32> to vector<2x32xf32>
    %150 = vector.extract_strided_slice %38 {offsets = [8, 0], sizes = [2, 32], strides = [1, 1]} : vector<16x32xf32> to vector<2x32xf32>
    %151 = vector.extract_strided_slice %139 {offsets = [0, 64], sizes = [2, 32], strides = [1, 1]} : vector<2x96xf32> to vector<2x32xf32>
    %152 = arith.addf %151, %40 : vector<2x32xf32>
    %153 = arith.mulf %148, %152 : vector<2x32xf32>
    %154 = arith.addf %150, %153 : vector<2x32xf32>
    %155 = math.tanh %154 : vector<2x32xf32>
    %cst_46 = arith.constant 1.000000e+00 : f32
    %156 = vector.broadcast %cst_46 : f32 to vector<2x32xf32>
    %157 = arith.subf %156, %149 : vector<2x32xf32>
    %158 = arith.mulf %157, %155 : vector<2x32xf32>
    %159 = arith.mulf %149, %136 : vector<2x32xf32>
    %160 = arith.addf %158, %159 : vector<2x32xf32>
    %c8 = arith.constant 8 : index
    %c0_47 = arith.constant 0 : index
    %161 = vector.load %arg21[%c8, %c0_47] : memref<16x32xf32, #tpu.memory_space<vmem>>, vector<2x32xf32>
    tpu.vector_store %arg21[%c8, %c0_47], %160 {strides = array<i32>} : memref<16x32xf32, #tpu.memory_space<vmem>>, vector<2x32xf32>,
    %162 = arith.truncf %160 : vector<2x32xf32> to vector<2x32xbf16>
    %cst_48 = arith.constant dense<0.000000e+00> : vector<2x96xf32>
    %163 = tpu.matmul %162, %39, %cst_48 {dimension_numbers = #tpu.dot_dimension_numbers<[1], [0], [0], [1], [0, 0, 1, 1], [], []>} : vector<2x32xbf16>, vector<32x96xbf16>, vector<2x96xf32> -> vector<2x96xf32>
    %164 = vector.extract_strided_slice %37 {offsets = [10, 0], sizes = [2, 64], strides = [1, 1]} : vector<16x64xf32> to vector<2x64xf32>
    %165 = vector.extract_strided_slice %163 {offsets = [0, 0], sizes = [2, 64], strides = [1, 1]} : vector<2x96xf32> to vector<2x64xf32>
    %166 = arith.addf %164, %165 : vector<2x64xf32>
    %167 = arith.negf %166 : vector<2x64xf32>
    %168 = math.exp %167 : vector<2x64xf32>
    %cst_49 = arith.constant 1.000000e+00 : f32
    %169 = vector.broadcast %cst_49 : f32 to vector<2x64xf32>
    %170 = arith.addf %169, %168 : vector<2x64xf32>
    %171 = arith.divf %169, %170 : vector<2x64xf32>
    %172 = vector.extract_strided_slice %171 {offsets = [0, 0], sizes = [2, 32], strides = [1, 1]} : vector<2x64xf32> to vector<2x32xf32>
    %173 = vector.extract_strided_slice %171 {offsets = [0, 32], sizes = [2, 32], strides = [1, 1]} : vector<2x64xf32> to vector<2x32xf32>
    %174 = vector.extract_strided_slice %38 {offsets = [10, 0], sizes = [2, 32], strides = [1, 1]} : vector<16x32xf32> to vector<2x32xf32>
    %175 = vector.extract_strided_slice %163 {offsets = [0, 64], sizes = [2, 32], strides = [1, 1]} : vector<2x96xf32> to vector<2x32xf32>
    %176 = arith.addf %175, %40 : vector<2x32xf32>
    %177 = arith.mulf %172, %176 : vector<2x32xf32>
    %178 = arith.addf %174, %177 : vector<2x32xf32>
    %179 = math.tanh %178 : vector<2x32xf32>
    %cst_50 = arith.constant 1.000000e+00 : f32
    %180 = vector.broadcast %cst_50 : f32 to vector<2x32xf32>
    %181 = arith.subf %180, %173 : vector<2x32xf32>
    %182 = arith.mulf %181, %179 : vector<2x32xf32>
    %183 = arith.mulf %173, %160 : vector<2x32xf32>
    %184 = arith.addf %182, %183 : vector<2x32xf32>
    %c10 = arith.constant 10 : index
    %c0_51 = arith.constant 0 : index
    %185 = vector.load %arg21[%c10, %c0_51] : memref<16x32xf32, #tpu.memory_space<vmem>>, vector<2x32xf32>
    tpu.vector_store %arg21[%c10, %c0_51], %184 {strides = array<i32>} : memref<16x32xf32, #tpu.memory_space<vmem>>, vector<2x32xf32>,
    %186 = arith.truncf %184 : vector<2x32xf32> to vector<2x32xbf16>
    %cst_52 = arith.constant dense<0.000000e+00> : vector<2x96xf32>
    %187 = tpu.matmul %186, %39, %cst_52 {dimension_numbers = #tpu.dot_dimension_numbers<[1], [0], [0], [1], [0, 0, 1, 1], [], []>} : vector<2x32xbf16>, vector<32x96xbf16>, vector<2x96xf32> -> vector<2x96xf32>
    %188 = vector.extract_strided_slice %37 {offsets = [12, 0], sizes = [2, 64], strides = [1, 1]} : vector<16x64xf32> to vector<2x64xf32>
    %189 = vector.extract_strided_slice %187 {offsets = [0, 0], sizes = [2, 64], strides = [1, 1]} : vector<2x96xf32> to vector<2x64xf32>
    %190 = arith.addf %188, %189 : vector<2x64xf32>
    %191 = arith.negf %190 : vector<2x64xf32>
    %192 = math.exp %191 : vector<2x64xf32>
    %cst_53 = arith.constant 1.000000e+00 : f32
    %193 = vector.broadcast %cst_53 : f32 to vector<2x64xf32>
    %194 = arith.addf %193, %192 : vector<2x64xf32>
    %195 = arith.divf %193, %194 : vector<2x64xf32>
    %196 = vector.extract_strided_slice %195 {offsets = [0, 0], sizes = [2, 32], strides = [1, 1]} : vector<2x64xf32> to vector<2x32xf32>
    %197 = vector.extract_strided_slice %195 {offsets = [0, 32], sizes = [2, 32], strides = [1, 1]} : vector<2x64xf32> to vector<2x32xf32>
    %198 = vector.extract_strided_slice %38 {offsets = [12, 0], sizes = [2, 32], strides = [1, 1]} : vector<16x32xf32> to vector<2x32xf32>
    %199 = vector.extract_strided_slice %187 {offsets = [0, 64], sizes = [2, 32], strides = [1, 1]} : vector<2x96xf32> to vector<2x32xf32>
    %200 = arith.addf %199, %40 : vector<2x32xf32>
    %201 = arith.mulf %196, %200 : vector<2x32xf32>
    %202 = arith.addf %198, %201 : vector<2x32xf32>
    %203 = math.tanh %202 : vector<2x32xf32>
    %cst_54 = arith.constant 1.000000e+00 : f32
    %204 = vector.broadcast %cst_54 : f32 to vector<2x32xf32>
    %205 = arith.subf %204, %197 : vector<2x32xf32>
    %206 = arith.mulf %205, %203 : vector<2x32xf32>
    %207 = arith.mulf %197, %184 : vector<2x32xf32>
    %208 = arith.addf %206, %207 : vector<2x32xf32>
    %c12 = arith.constant 12 : index
    %c0_55 = arith.constant 0 : index
    %209 = vector.load %arg21[%c12, %c0_55] : memref<16x32xf32, #tpu.memory_space<vmem>>, vector<2x32xf32>
    tpu.vector_store %arg21[%c12, %c0_55], %208 {strides = array<i32>} : memref<16x32xf32, #tpu.memory_space<vmem>>, vector<2x32xf32>,
    %210 = arith.truncf %208 : vector<2x32xf32> to vector<2x32xbf16>
    %cst_56 = arith.constant dense<0.000000e+00> : vector<2x96xf32>
    %211 = tpu.matmul %210, %39, %cst_56 {dimension_numbers = #tpu.dot_dimension_numbers<[1], [0], [0], [1], [0, 0, 1, 1], [], []>} : vector<2x32xbf16>, vector<32x96xbf16>, vector<2x96xf32> -> vector<2x96xf32>
    %212 = vector.extract_strided_slice %37 {offsets = [14, 0], sizes = [2, 64], strides = [1, 1]} : vector<16x64xf32> to vector<2x64xf32>
    %213 = vector.extract_strided_slice %211 {offsets = [0, 0], sizes = [2, 64], strides = [1, 1]} : vector<2x96xf32> to vector<2x64xf32>
    %214 = arith.addf %212, %213 : vector<2x64xf32>
    %215 = arith.negf %214 : vector<2x64xf32>
    %216 = math.exp %215 : vector<2x64xf32>
    %cst_57 = arith.constant 1.000000e+00 : f32
    %217 = vector.broadcast %cst_57 : f32 to vector<2x64xf32>
    %218 = arith.addf %217, %216 : vector<2x64xf32>
    %219 = arith.divf %217, %218 : vector<2x64xf32>
    %220 = vector.extract_strided_slice %219 {offsets = [0, 0], sizes = [2, 32], strides = [1, 1]} : vector<2x64xf32> to vector<2x32xf32>
    %221 = vector.extract_strided_slice %219 {offsets = [0, 32], sizes = [2, 32], strides = [1, 1]} : vector<2x64xf32> to vector<2x32xf32>
    %222 = vector.extract_strided_slice %38 {offsets = [14, 0], sizes = [2, 32], strides = [1, 1]} : vector<16x32xf32> to vector<2x32xf32>
    %223 = vector.extract_strided_slice %211 {offsets = [0, 64], sizes = [2, 32], strides = [1, 1]} : vector<2x96xf32> to vector<2x32xf32>
    %224 = arith.addf %223, %40 : vector<2x32xf32>
    %225 = arith.mulf %220, %224 : vector<2x32xf32>
    %226 = arith.addf %222, %225 : vector<2x32xf32>
    %227 = math.tanh %226 : vector<2x32xf32>
    %cst_58 = arith.constant 1.000000e+00 : f32
    %228 = vector.broadcast %cst_58 : f32 to vector<2x32xf32>
    %229 = arith.subf %228, %221 : vector<2x32xf32>
    %230 = arith.mulf %229, %227 : vector<2x32xf32>
    %231 = arith.mulf %221, %208 : vector<2x32xf32>
    %232 = arith.addf %230, %231 : vector<2x32xf32>
    %c14 = arith.constant 14 : index
    %c0_59 = arith.constant 0 : index
    %233 = vector.load %arg21[%c14, %c0_59] : memref<16x32xf32, #tpu.memory_space<vmem>>, vector<2x32xf32>
    tpu.vector_store %arg21[%c14, %c0_59], %232 {strides = array<i32>} : memref<16x32xf32, #tpu.memory_space<vmem>>, vector<2x32xf32>,
    %c0_60 = arith.constant 0 : index
    %c0_61 = arith.constant 0 : index
    %234 = vector.load %arg21[%c0_60, %c0_61] : memref<16x32xf32, #tpu.memory_space<vmem>>, vector<16x32xf32>
    %235 = arith.truncf %234 : vector<16x32xf32> to vector<16x32xbf16>
    %cst_62 = arith.constant dense<0.000000e+00> : vector<16x32xf32>
    %236 = tpu.matmul %27, %235, %cst_62 {dimension_numbers = #tpu.dot_dimension_numbers<[1], [0], [0], [1], [0, 0, 1, 1], [], []>} : vector<16x16xbf16>, vector<16x32xbf16>, vector<16x32xf32> -> vector<16x32xf32>
    %237 = vector.extract_strided_slice %234 {offsets = [0, 0], sizes = [16, 16], strides = [1, 1]} : vector<16x32xf32> to vector<16x16xf32>
    %238 = vector.extract_strided_slice %236 {offsets = [0, 16], sizes = [16, 16], strides = [1, 1]} : vector<16x32xf32> to vector<16x16xf32>
    %239 = vector.extract_strided_slice %236 {offsets = [0, 0], sizes = [16, 16], strides = [1, 1]} : vector<16x32xf32> to vector<16x16xf32>
    %240 = vector.extract_strided_slice %234 {offsets = [0, 16], sizes = [16, 16], strides = [1, 1]} : vector<16x32xf32> to vector<16x16xf32>
    %241 = tpu.concatenate %237, %238, %239, %240 in 1 : vector<16x16xf32>, vector<16x16xf32>, vector<16x16xf32>, vector<16x16xf32> -> vector<16x64xf32>
    %242 = arith.truncf %241 : vector<16x64xf32> to vector<16x64xbf16>
    %c0_63 = arith.constant 0 : index
    %c0_64 = arith.constant 0 : index
    %243 = vector.load %arg12[%c0_63, %c0_64] : memref<64x96xbf16, #tpu.memory_space<vmem>>, vector<64x96xbf16>
    %cst_65 = arith.constant dense<0.000000e+00> : vector<16x96xf32>
    %244 = tpu.matmul %242, %243, %cst_65 {dimension_numbers = #tpu.dot_dimension_numbers<[1], [0], [0], [1], [0, 0, 1, 1], [], []>} : vector<16x64xbf16>, vector<64x96xbf16>, vector<16x96xf32> -> vector<16x96xf32>
    %c0_66 = arith.constant 0 : index
    %c0_67 = arith.constant 0 : index
    %245 = vector.load %arg14[%c0_66, %c0_67] : memref<1x96xf32, #tpu.memory_space<vmem>>, vector<1x96xf32>
    %246 = vector.broadcast %245 : vector<1x96xf32> to vector<16x96xf32>
    %247 = arith.addf %244, %246 : vector<16x96xf32>
    %248 = vector.extract_strided_slice %247 {offsets = [0, 0], sizes = [16, 64], strides = [1, 1]} : vector<16x96xf32> to vector<16x64xf32>
    %249 = vector.extract_strided_slice %247 {offsets = [0, 64], sizes = [16, 32], strides = [1, 1]} : vector<16x96xf32> to vector<16x32xf32>
    %c0_68 = arith.constant 0 : index
    %c0_69 = arith.constant 0 : index
    %250 = vector.load %arg13[%c0_68, %c0_69] : memref<32x96xbf16, #tpu.memory_space<vmem>>, vector<32x96xbf16>
    %c0_70 = arith.constant 0 : index
    %c0_71 = arith.constant 0 : index
    %251 = vector.load %arg15[%c0_70, %c0_71] : memref<2x32xf32, #tpu.memory_space<vmem>>, vector<2x32xf32>
    %cst_72 = arith.constant 0.000000e+00 : f32
    %252 = vector.broadcast %cst_72 : f32 to vector<2x32xf32>
    %253 = arith.truncf %252 : vector<2x32xf32> to vector<2x32xbf16>
    %cst_73 = arith.constant dense<0.000000e+00> : vector<2x96xf32>
    %254 = tpu.matmul %253, %250, %cst_73 {dimension_numbers = #tpu.dot_dimension_numbers<[1], [0], [0], [1], [0, 0, 1, 1], [], []>} : vector<2x32xbf16>, vector<32x96xbf16>, vector<2x96xf32> -> vector<2x96xf32>
    %255 = vector.extract_strided_slice %248 {offsets = [0, 0], sizes = [2, 64], strides = [1, 1]} : vector<16x64xf32> to vector<2x64xf32>
    %256 = vector.extract_strided_slice %254 {offsets = [0, 0], sizes = [2, 64], strides = [1, 1]} : vector<2x96xf32> to vector<2x64xf32>
    %257 = arith.addf %255, %256 : vector<2x64xf32>
    %258 = arith.negf %257 : vector<2x64xf32>
    %259 = math.exp %258 : vector<2x64xf32>
    %cst_74 = arith.constant 1.000000e+00 : f32
    %260 = vector.broadcast %cst_74 : f32 to vector<2x64xf32>
    %261 = arith.addf %260, %259 : vector<2x64xf32>
    %262 = arith.divf %260, %261 : vector<2x64xf32>
    %263 = vector.extract_strided_slice %262 {offsets = [0, 0], sizes = [2, 32], strides = [1, 1]} : vector<2x64xf32> to vector<2x32xf32>
    %264 = vector.extract_strided_slice %262 {offsets = [0, 32], sizes = [2, 32], strides = [1, 1]} : vector<2x64xf32> to vector<2x32xf32>
    %265 = vector.extract_strided_slice %249 {offsets = [0, 0], sizes = [2, 32], strides = [1, 1]} : vector<16x32xf32> to vector<2x32xf32>
    %266 = vector.extract_strided_slice %254 {offsets = [0, 64], sizes = [2, 32], strides = [1, 1]} : vector<2x96xf32> to vector<2x32xf32>
    %267 = arith.addf %266, %251 : vector<2x32xf32>
    %268 = arith.mulf %263, %267 : vector<2x32xf32>
    %269 = arith.addf %265, %268 : vector<2x32xf32>
    %270 = math.tanh %269 : vector<2x32xf32>
    %cst_75 = arith.constant 1.000000e+00 : f32
    %271 = vector.broadcast %cst_75 : f32 to vector<2x32xf32>
    %272 = arith.subf %271, %264 : vector<2x32xf32>
    %273 = arith.mulf %272, %270 : vector<2x32xf32>
    %274 = arith.mulf %264, %252 : vector<2x32xf32>
    %275 = arith.addf %273, %274 : vector<2x32xf32>
    %c0_76 = arith.constant 0 : index
    %c0_77 = arith.constant 0 : index
    %276 = vector.load %arg21[%c0_76, %c0_77] : memref<16x32xf32, #tpu.memory_space<vmem>>, vector<2x32xf32>
    tpu.vector_store %arg21[%c0_76, %c0_77], %275 {strides = array<i32>} : memref<16x32xf32, #tpu.memory_space<vmem>>, vector<2x32xf32>,
    %277 = arith.truncf %275 : vector<2x32xf32> to vector<2x32xbf16>
    %cst_78 = arith.constant dense<0.000000e+00> : vector<2x96xf32>
    %278 = tpu.matmul %277, %250, %cst_78 {dimension_numbers = #tpu.dot_dimension_numbers<[1], [0], [0], [1], [0, 0, 1, 1], [], []>} : vector<2x32xbf16>, vector<32x96xbf16>, vector<2x96xf32> -> vector<2x96xf32>
    %279 = vector.extract_strided_slice %248 {offsets = [2, 0], sizes = [2, 64], strides = [1, 1]} : vector<16x64xf32> to vector<2x64xf32>
    %280 = vector.extract_strided_slice %278 {offsets = [0, 0], sizes = [2, 64], strides = [1, 1]} : vector<2x96xf32> to vector<2x64xf32>
    %281 = arith.addf %279, %280 : vector<2x64xf32>
    %282 = arith.negf %281 : vector<2x64xf32>
    %283 = math.exp %282 : vector<2x64xf32>
    %cst_79 = arith.constant 1.000000e+00 : f32
    %284 = vector.broadcast %cst_79 : f32 to vector<2x64xf32>
    %285 = arith.addf %284, %283 : vector<2x64xf32>
    %286 = arith.divf %284, %285 : vector<2x64xf32>
    %287 = vector.extract_strided_slice %286 {offsets = [0, 0], sizes = [2, 32], strides = [1, 1]} : vector<2x64xf32> to vector<2x32xf32>
    %288 = vector.extract_strided_slice %286 {offsets = [0, 32], sizes = [2, 32], strides = [1, 1]} : vector<2x64xf32> to vector<2x32xf32>
    %289 = vector.extract_strided_slice %249 {offsets = [2, 0], sizes = [2, 32], strides = [1, 1]} : vector<16x32xf32> to vector<2x32xf32>
    %290 = vector.extract_strided_slice %278 {offsets = [0, 64], sizes = [2, 32], strides = [1, 1]} : vector<2x96xf32> to vector<2x32xf32>
    %291 = arith.addf %290, %251 : vector<2x32xf32>
    %292 = arith.mulf %287, %291 : vector<2x32xf32>
    %293 = arith.addf %289, %292 : vector<2x32xf32>
    %294 = math.tanh %293 : vector<2x32xf32>
    %cst_80 = arith.constant 1.000000e+00 : f32
    %295 = vector.broadcast %cst_80 : f32 to vector<2x32xf32>
    %296 = arith.subf %295, %288 : vector<2x32xf32>
    %297 = arith.mulf %296, %294 : vector<2x32xf32>
    %298 = arith.mulf %288, %275 : vector<2x32xf32>
    %299 = arith.addf %297, %298 : vector<2x32xf32>
    %c2_81 = arith.constant 2 : index
    %c0_82 = arith.constant 0 : index
    %300 = vector.load %arg21[%c2_81, %c0_82] : memref<16x32xf32, #tpu.memory_space<vmem>>, vector<2x32xf32>
    tpu.vector_store %arg21[%c2_81, %c0_82], %299 {strides = array<i32>} : memref<16x32xf32, #tpu.memory_space<vmem>>, vector<2x32xf32>,
    %301 = arith.truncf %299 : vector<2x32xf32> to vector<2x32xbf16>
    %cst_83 = arith.constant dense<0.000000e+00> : vector<2x96xf32>
    %302 = tpu.matmul %301, %250, %cst_83 {dimension_numbers = #tpu.dot_dimension_numbers<[1], [0], [0], [1], [0, 0, 1, 1], [], []>} : vector<2x32xbf16>, vector<32x96xbf16>, vector<2x96xf32> -> vector<2x96xf32>
    %303 = vector.extract_strided_slice %248 {offsets = [4, 0], sizes = [2, 64], strides = [1, 1]} : vector<16x64xf32> to vector<2x64xf32>
    %304 = vector.extract_strided_slice %302 {offsets = [0, 0], sizes = [2, 64], strides = [1, 1]} : vector<2x96xf32> to vector<2x64xf32>
    %305 = arith.addf %303, %304 : vector<2x64xf32>
    %306 = arith.negf %305 : vector<2x64xf32>
    %307 = math.exp %306 : vector<2x64xf32>
    %cst_84 = arith.constant 1.000000e+00 : f32
    %308 = vector.broadcast %cst_84 : f32 to vector<2x64xf32>
    %309 = arith.addf %308, %307 : vector<2x64xf32>
    %310 = arith.divf %308, %309 : vector<2x64xf32>
    %311 = vector.extract_strided_slice %310 {offsets = [0, 0], sizes = [2, 32], strides = [1, 1]} : vector<2x64xf32> to vector<2x32xf32>
    %312 = vector.extract_strided_slice %310 {offsets = [0, 32], sizes = [2, 32], strides = [1, 1]} : vector<2x64xf32> to vector<2x32xf32>
    %313 = vector.extract_strided_slice %249 {offsets = [4, 0], sizes = [2, 32], strides = [1, 1]} : vector<16x32xf32> to vector<2x32xf32>
    %314 = vector.extract_strided_slice %302 {offsets = [0, 64], sizes = [2, 32], strides = [1, 1]} : vector<2x96xf32> to vector<2x32xf32>
    %315 = arith.addf %314, %251 : vector<2x32xf32>
    %316 = arith.mulf %311, %315 : vector<2x32xf32>
    %317 = arith.addf %313, %316 : vector<2x32xf32>
    %318 = math.tanh %317 : vector<2x32xf32>
    %cst_85 = arith.constant 1.000000e+00 : f32
    %319 = vector.broadcast %cst_85 : f32 to vector<2x32xf32>
    %320 = arith.subf %319, %312 : vector<2x32xf32>
    %321 = arith.mulf %320, %318 : vector<2x32xf32>
    %322 = arith.mulf %312, %299 : vector<2x32xf32>
    %323 = arith.addf %321, %322 : vector<2x32xf32>
    %c4_86 = arith.constant 4 : index
    %c0_87 = arith.constant 0 : index
    %324 = vector.load %arg21[%c4_86, %c0_87] : memref<16x32xf32, #tpu.memory_space<vmem>>, vector<2x32xf32>
    tpu.vector_store %arg21[%c4_86, %c0_87], %323 {strides = array<i32>} : memref<16x32xf32, #tpu.memory_space<vmem>>, vector<2x32xf32>,
    %325 = arith.truncf %323 : vector<2x32xf32> to vector<2x32xbf16>
    %cst_88 = arith.constant dense<0.000000e+00> : vector<2x96xf32>
    %326 = tpu.matmul %325, %250, %cst_88 {dimension_numbers = #tpu.dot_dimension_numbers<[1], [0], [0], [1], [0, 0, 1, 1], [], []>} : vector<2x32xbf16>, vector<32x96xbf16>, vector<2x96xf32> -> vector<2x96xf32>
    %327 = vector.extract_strided_slice %248 {offsets = [6, 0], sizes = [2, 64], strides = [1, 1]} : vector<16x64xf32> to vector<2x64xf32>
    %328 = vector.extract_strided_slice %326 {offsets = [0, 0], sizes = [2, 64], strides = [1, 1]} : vector<2x96xf32> to vector<2x64xf32>
    %329 = arith.addf %327, %328 : vector<2x64xf32>
    %330 = arith.negf %329 : vector<2x64xf32>
    %331 = math.exp %330 : vector<2x64xf32>
    %cst_89 = arith.constant 1.000000e+00 : f32
    %332 = vector.broadcast %cst_89 : f32 to vector<2x64xf32>
    %333 = arith.addf %332, %331 : vector<2x64xf32>
    %334 = arith.divf %332, %333 : vector<2x64xf32>
    %335 = vector.extract_strided_slice %334 {offsets = [0, 0], sizes = [2, 32], strides = [1, 1]} : vector<2x64xf32> to vector<2x32xf32>
    %336 = vector.extract_strided_slice %334 {offsets = [0, 32], sizes = [2, 32], strides = [1, 1]} : vector<2x64xf32> to vector<2x32xf32>
    %337 = vector.extract_strided_slice %249 {offsets = [6, 0], sizes = [2, 32], strides = [1, 1]} : vector<16x32xf32> to vector<2x32xf32>
    %338 = vector.extract_strided_slice %326 {offsets = [0, 64], sizes = [2, 32], strides = [1, 1]} : vector<2x96xf32> to vector<2x32xf32>
    %339 = arith.addf %338, %251 : vector<2x32xf32>
    %340 = arith.mulf %335, %339 : vector<2x32xf32>
    %341 = arith.addf %337, %340 : vector<2x32xf32>
    %342 = math.tanh %341 : vector<2x32xf32>
    %cst_90 = arith.constant 1.000000e+00 : f32
    %343 = vector.broadcast %cst_90 : f32 to vector<2x32xf32>
    %344 = arith.subf %343, %336 : vector<2x32xf32>
    %345 = arith.mulf %344, %342 : vector<2x32xf32>
    %346 = arith.mulf %336, %323 : vector<2x32xf32>
    %347 = arith.addf %345, %346 : vector<2x32xf32>
    %c6_91 = arith.constant 6 : index
    %c0_92 = arith.constant 0 : index
    %348 = vector.load %arg21[%c6_91, %c0_92] : memref<16x32xf32, #tpu.memory_space<vmem>>, vector<2x32xf32>
    tpu.vector_store %arg21[%c6_91, %c0_92], %347 {strides = array<i32>} : memref<16x32xf32, #tpu.memory_space<vmem>>, vector<2x32xf32>,
    %349 = arith.truncf %347 : vector<2x32xf32> to vector<2x32xbf16>
    %cst_93 = arith.constant dense<0.000000e+00> : vector<2x96xf32>
    %350 = tpu.matmul %349, %250, %cst_93 {dimension_numbers = #tpu.dot_dimension_numbers<[1], [0], [0], [1], [0, 0, 1, 1], [], []>} : vector<2x32xbf16>, vector<32x96xbf16>, vector<2x96xf32> -> vector<2x96xf32>
    %351 = vector.extract_strided_slice %248 {offsets = [8, 0], sizes = [2, 64], strides = [1, 1]} : vector<16x64xf32> to vector<2x64xf32>
    %352 = vector.extract_strided_slice %350 {offsets = [0, 0], sizes = [2, 64], strides = [1, 1]} : vector<2x96xf32> to vector<2x64xf32>
    %353 = arith.addf %351, %352 : vector<2x64xf32>
    %354 = arith.negf %353 : vector<2x64xf32>
    %355 = math.exp %354 : vector<2x64xf32>
    %cst_94 = arith.constant 1.000000e+00 : f32
    %356 = vector.broadcast %cst_94 : f32 to vector<2x64xf32>
    %357 = arith.addf %356, %355 : vector<2x64xf32>
    %358 = arith.divf %356, %357 : vector<2x64xf32>
    %359 = vector.extract_strided_slice %358 {offsets = [0, 0], sizes = [2, 32], strides = [1, 1]} : vector<2x64xf32> to vector<2x32xf32>
    %360 = vector.extract_strided_slice %358 {offsets = [0, 32], sizes = [2, 32], strides = [1, 1]} : vector<2x64xf32> to vector<2x32xf32>
    %361 = vector.extract_strided_slice %249 {offsets = [8, 0], sizes = [2, 32], strides = [1, 1]} : vector<16x32xf32> to vector<2x32xf32>
    %362 = vector.extract_strided_slice %350 {offsets = [0, 64], sizes = [2, 32], strides = [1, 1]} : vector<2x96xf32> to vector<2x32xf32>
    %363 = arith.addf %362, %251 : vector<2x32xf32>
    %364 = arith.mulf %359, %363 : vector<2x32xf32>
    %365 = arith.addf %361, %364 : vector<2x32xf32>
    %366 = math.tanh %365 : vector<2x32xf32>
    %cst_95 = arith.constant 1.000000e+00 : f32
    %367 = vector.broadcast %cst_95 : f32 to vector<2x32xf32>
    %368 = arith.subf %367, %360 : vector<2x32xf32>
    %369 = arith.mulf %368, %366 : vector<2x32xf32>
    %370 = arith.mulf %360, %347 : vector<2x32xf32>
    %371 = arith.addf %369, %370 : vector<2x32xf32>
    %c8_96 = arith.constant 8 : index
    %c0_97 = arith.constant 0 : index
    %372 = vector.load %arg21[%c8_96, %c0_97] : memref<16x32xf32, #tpu.memory_space<vmem>>, vector<2x32xf32>
    tpu.vector_store %arg21[%c8_96, %c0_97], %371 {strides = array<i32>} : memref<16x32xf32, #tpu.memory_space<vmem>>, vector<2x32xf32>,
    %373 = arith.truncf %371 : vector<2x32xf32> to vector<2x32xbf16>
    %cst_98 = arith.constant dense<0.000000e+00> : vector<2x96xf32>
    %374 = tpu.matmul %373, %250, %cst_98 {dimension_numbers = #tpu.dot_dimension_numbers<[1], [0], [0], [1], [0, 0, 1, 1], [], []>} : vector<2x32xbf16>, vector<32x96xbf16>, vector<2x96xf32> -> vector<2x96xf32>
    %375 = vector.extract_strided_slice %248 {offsets = [10, 0], sizes = [2, 64], strides = [1, 1]} : vector<16x64xf32> to vector<2x64xf32>
    %376 = vector.extract_strided_slice %374 {offsets = [0, 0], sizes = [2, 64], strides = [1, 1]} : vector<2x96xf32> to vector<2x64xf32>
    %377 = arith.addf %375, %376 : vector<2x64xf32>
    %378 = arith.negf %377 : vector<2x64xf32>
    %379 = math.exp %378 : vector<2x64xf32>
    %cst_99 = arith.constant 1.000000e+00 : f32
    %380 = vector.broadcast %cst_99 : f32 to vector<2x64xf32>
    %381 = arith.addf %380, %379 : vector<2x64xf32>
    %382 = arith.divf %380, %381 : vector<2x64xf32>
    %383 = vector.extract_strided_slice %382 {offsets = [0, 0], sizes = [2, 32], strides = [1, 1]} : vector<2x64xf32> to vector<2x32xf32>
    %384 = vector.extract_strided_slice %382 {offsets = [0, 32], sizes = [2, 32], strides = [1, 1]} : vector<2x64xf32> to vector<2x32xf32>
    %385 = vector.extract_strided_slice %249 {offsets = [10, 0], sizes = [2, 32], strides = [1, 1]} : vector<16x32xf32> to vector<2x32xf32>
    %386 = vector.extract_strided_slice %374 {offsets = [0, 64], sizes = [2, 32], strides = [1, 1]} : vector<2x96xf32> to vector<2x32xf32>
    %387 = arith.addf %386, %251 : vector<2x32xf32>
    %388 = arith.mulf %383, %387 : vector<2x32xf32>
    %389 = arith.addf %385, %388 : vector<2x32xf32>
    %390 = math.tanh %389 : vector<2x32xf32>
    %cst_100 = arith.constant 1.000000e+00 : f32
    %391 = vector.broadcast %cst_100 : f32 to vector<2x32xf32>
    %392 = arith.subf %391, %384 : vector<2x32xf32>
    %393 = arith.mulf %392, %390 : vector<2x32xf32>
    %394 = arith.mulf %384, %371 : vector<2x32xf32>
    %395 = arith.addf %393, %394 : vector<2x32xf32>
    %c10_101 = arith.constant 10 : index
    %c0_102 = arith.constant 0 : index
    %396 = vector.load %arg21[%c10_101, %c0_102] : memref<16x32xf32, #tpu.memory_space<vmem>>, vector<2x32xf32>
    tpu.vector_store %arg21[%c10_101, %c0_102], %395 {strides = array<i32>} : memref<16x32xf32, #tpu.memory_space<vmem>>, vector<2x32xf32>,
    %397 = arith.truncf %395 : vector<2x32xf32> to vector<2x32xbf16>
    %cst_103 = arith.constant dense<0.000000e+00> : vector<2x96xf32>
    %398 = tpu.matmul %397, %250, %cst_103 {dimension_numbers = #tpu.dot_dimension_numbers<[1], [0], [0], [1], [0, 0, 1, 1], [], []>} : vector<2x32xbf16>, vector<32x96xbf16>, vector<2x96xf32> -> vector<2x96xf32>
    %399 = vector.extract_strided_slice %248 {offsets = [12, 0], sizes = [2, 64], strides = [1, 1]} : vector<16x64xf32> to vector<2x64xf32>
    %400 = vector.extract_strided_slice %398 {offsets = [0, 0], sizes = [2, 64], strides = [1, 1]} : vector<2x96xf32> to vector<2x64xf32>
    %401 = arith.addf %399, %400 : vector<2x64xf32>
    %402 = arith.negf %401 : vector<2x64xf32>
    %403 = math.exp %402 : vector<2x64xf32>
    %cst_104 = arith.constant 1.000000e+00 : f32
    %404 = vector.broadcast %cst_104 : f32 to vector<2x64xf32>
    %405 = arith.addf %404, %403 : vector<2x64xf32>
    %406 = arith.divf %404, %405 : vector<2x64xf32>
    %407 = vector.extract_strided_slice %406 {offsets = [0, 0], sizes = [2, 32], strides = [1, 1]} : vector<2x64xf32> to vector<2x32xf32>
    %408 = vector.extract_strided_slice %406 {offsets = [0, 32], sizes = [2, 32], strides = [1, 1]} : vector<2x64xf32> to vector<2x32xf32>
    %409 = vector.extract_strided_slice %249 {offsets = [12, 0], sizes = [2, 32], strides = [1, 1]} : vector<16x32xf32> to vector<2x32xf32>
    %410 = vector.extract_strided_slice %398 {offsets = [0, 64], sizes = [2, 32], strides = [1, 1]} : vector<2x96xf32> to vector<2x32xf32>
    %411 = arith.addf %410, %251 : vector<2x32xf32>
    %412 = arith.mulf %407, %411 : vector<2x32xf32>
    %413 = arith.addf %409, %412 : vector<2x32xf32>
    %414 = math.tanh %413 : vector<2x32xf32>
    %cst_105 = arith.constant 1.000000e+00 : f32
    %415 = vector.broadcast %cst_105 : f32 to vector<2x32xf32>
    %416 = arith.subf %415, %408 : vector<2x32xf32>
    %417 = arith.mulf %416, %414 : vector<2x32xf32>
    %418 = arith.mulf %408, %395 : vector<2x32xf32>
    %419 = arith.addf %417, %418 : vector<2x32xf32>
    %c12_106 = arith.constant 12 : index
    %c0_107 = arith.constant 0 : index
    %420 = vector.load %arg21[%c12_106, %c0_107] : memref<16x32xf32, #tpu.memory_space<vmem>>, vector<2x32xf32>
    tpu.vector_store %arg21[%c12_106, %c0_107], %419 {strides = array<i32>} : memref<16x32xf32, #tpu.memory_space<vmem>>, vector<2x32xf32>,
    %421 = arith.truncf %419 : vector<2x32xf32> to vector<2x32xbf16>
    %cst_108 = arith.constant dense<0.000000e+00> : vector<2x96xf32>
    %422 = tpu.matmul %421, %250, %cst_108 {dimension_numbers = #tpu.dot_dimension_numbers<[1], [0], [0], [1], [0, 0, 1, 1], [], []>} : vector<2x32xbf16>, vector<32x96xbf16>, vector<2x96xf32> -> vector<2x96xf32>
    %423 = vector.extract_strided_slice %248 {offsets = [14, 0], sizes = [2, 64], strides = [1, 1]} : vector<16x64xf32> to vector<2x64xf32>
    %424 = vector.extract_strided_slice %422 {offsets = [0, 0], sizes = [2, 64], strides = [1, 1]} : vector<2x96xf32> to vector<2x64xf32>
    %425 = arith.addf %423, %424 : vector<2x64xf32>
    %426 = arith.negf %425 : vector<2x64xf32>
    %427 = math.exp %426 : vector<2x64xf32>
    %cst_109 = arith.constant 1.000000e+00 : f32
    %428 = vector.broadcast %cst_109 : f32 to vector<2x64xf32>
    %429 = arith.addf %428, %427 : vector<2x64xf32>
    %430 = arith.divf %428, %429 : vector<2x64xf32>
    %431 = vector.extract_strided_slice %430 {offsets = [0, 0], sizes = [2, 32], strides = [1, 1]} : vector<2x64xf32> to vector<2x32xf32>
    %432 = vector.extract_strided_slice %430 {offsets = [0, 32], sizes = [2, 32], strides = [1, 1]} : vector<2x64xf32> to vector<2x32xf32>
    %433 = vector.extract_strided_slice %249 {offsets = [14, 0], sizes = [2, 32], strides = [1, 1]} : vector<16x32xf32> to vector<2x32xf32>
    %434 = vector.extract_strided_slice %422 {offsets = [0, 64], sizes = [2, 32], strides = [1, 1]} : vector<2x96xf32> to vector<2x32xf32>
    %435 = arith.addf %434, %251 : vector<2x32xf32>
    %436 = arith.mulf %431, %435 : vector<2x32xf32>
    %437 = arith.addf %433, %436 : vector<2x32xf32>
    %438 = math.tanh %437 : vector<2x32xf32>
    %cst_110 = arith.constant 1.000000e+00 : f32
    %439 = vector.broadcast %cst_110 : f32 to vector<2x32xf32>
    %440 = arith.subf %439, %432 : vector<2x32xf32>
    %441 = arith.mulf %440, %438 : vector<2x32xf32>
    %442 = arith.mulf %432, %419 : vector<2x32xf32>
    %443 = arith.addf %441, %442 : vector<2x32xf32>
    %c14_111 = arith.constant 14 : index
    %c0_112 = arith.constant 0 : index
    %444 = vector.load %arg21[%c14_111, %c0_112] : memref<16x32xf32, #tpu.memory_space<vmem>>, vector<2x32xf32>
    tpu.vector_store %arg21[%c14_111, %c0_112], %443 {strides = array<i32>} : memref<16x32xf32, #tpu.memory_space<vmem>>, vector<2x32xf32>,
    %c0_113 = arith.constant 0 : index
    %c0_114 = arith.constant 0 : index
    %445 = vector.load %arg21[%c0_113, %c0_114] : memref<16x32xf32, #tpu.memory_space<vmem>>, vector<16x32xf32>
    %446 = arith.truncf %445 : vector<16x32xf32> to vector<16x32xbf16>
    %cst_115 = arith.constant dense<0.000000e+00> : vector<16x32xf32>
    %447 = tpu.matmul %27, %446, %cst_115 {dimension_numbers = #tpu.dot_dimension_numbers<[1], [0], [0], [1], [0, 0, 1, 1], [], []>} : vector<16x16xbf16>, vector<16x32xbf16>, vector<16x32xf32> -> vector<16x32xf32>
    %448 = vector.extract_strided_slice %445 {offsets = [0, 0], sizes = [16, 16], strides = [1, 1]} : vector<16x32xf32> to vector<16x16xf32>
    %449 = vector.extract_strided_slice %447 {offsets = [0, 16], sizes = [16, 16], strides = [1, 1]} : vector<16x32xf32> to vector<16x16xf32>
    %450 = tpu.concatenate %448, %449 in 1 : vector<16x16xf32>, vector<16x16xf32> -> vector<16x32xf32>
    %c0_116 = arith.constant 0 : index
    %c0_117 = arith.constant 0 : index
    %451 = vector.load %arg5[%c0_116, %c0_117] : memref<16x16xbf16, #tpu.memory_space<vmem>>, vector<16x16xbf16>
    %452 = arith.truncf %450 : vector<16x32xf32> to vector<16x32xbf16>
    %cst_118 = arith.constant dense<0.000000e+00> : vector<16x32xf32>
    %453 = tpu.matmul %451, %452, %cst_118 {dimension_numbers = #tpu.dot_dimension_numbers<[1], [0], [0], [1], [0, 0, 1, 1], [], []>} : vector<16x16xbf16>, vector<16x32xbf16>, vector<16x32xf32> -> vector<16x32xf32>
    %454 = arith.truncf %453 : vector<16x32xf32> to vector<16x32xbf16>
    %c0_119 = arith.constant 0 : index
    %c0_120 = arith.constant 0 : index
    %455 = vector.load %arg16[%c0_119, %c0_120] : memref<32x128xbf16, #tpu.memory_space<vmem>>, vector<32x128xbf16>
    %cst_121 = arith.constant dense<0.000000e+00> : vector<16x128xf32>
    %456 = tpu.matmul %454, %455, %cst_121 {dimension_numbers = #tpu.dot_dimension_numbers<[1], [0], [0], [1], [0, 0, 1, 1], [], []>} : vector<16x32xbf16>, vector<32x128xbf16>, vector<16x128xf32> -> vector<16x128xf32>
    %c0_122 = arith.constant 0 : index
    %c0_123 = arith.constant 0 : index
    %457 = vector.load %arg17[%c0_122, %c0_123] : memref<1x128xf32, #tpu.memory_space<vmem>>, vector<1x128xf32>
    %458 = vector.broadcast %457 : vector<1x128xf32> to vector<16x128xf32>
    %459 = arith.addf %456, %458 : vector<16x128xf32>
    %c0_124 = arith.constant 0 : index
    %c0_125 = arith.constant 0 : index
    %460 = vector.load %arg19[%c0_124, %c0_125] : memref<16x128xf32, #tpu.memory_space<vmem>>, vector<16x128xf32>
    tpu.vector_store %arg19[%c0_124, %c0_125], %459 {strides = array<i32>} : memref<16x128xf32, #tpu.memory_space<vmem>>, vector<16x128xf32>,
    %c0_126 = arith.constant 0 : index
    %c0_127 = arith.constant 0 : index
    %461 = vector.load %arg18[%c0_126, %c0_127] : memref<16x1xi32, #tpu.memory_space<vmem>>, vector<16x1xi32>
    %cst_128 = arith.constant dense<0xFF800000> : vector<16xf32>
    %462 = vector.multi_reduction <maximumf>, %459, %cst_128 [1] : vector<16x128xf32> to vector<16xf32>
    %463 = vector.shape_cast %462 : vector<16xf32> to vector<16x1xf32>
    %464 = vector.broadcast %463 : vector<16x1xf32> to vector<16x128xf32>
    %465 = arith.subf %459, %464 : vector<16x128xf32>
    %466 = math.exp %465 : vector<16x128xf32>
    %cst_129 = arith.constant dense<0.000000e+00> : vector<16xf32>
    %467 = vector.multi_reduction <add>, %466, %cst_129 [1] : vector<16x128xf32> to vector<16xf32>
    %468 = vector.shape_cast %467 : vector<16xf32> to vector<16x1xf32>
    %469 = math.log %468 : vector<16x1xf32>
    %470 = arith.addf %469, %463 : vector<16x1xf32>
    %471 = tpu.iota {dimensions = array<i32: 1>} : vector<16x128xi32>
    %472 = vector.broadcast %461 : vector<16x1xi32> to vector<16x128xi32>
    %473 = arith.cmpi eq, %471, %472 : vector<16x128xi32>
    %474 = arith.extui %473 : vector<16x128xi1> to vector<16x128xi32>
    %475 = arith.sitofp %474 : vector<16x128xi32> to vector<16x128xf32>
    %476 = arith.mulf %459, %475 : vector<16x128xf32>
    %cst_130 = arith.constant dense<0.000000e+00> : vector<16xf32>
    %477 = vector.multi_reduction <add>, %476, %cst_130 [1] : vector<16x128xf32> to vector<16xf32>
    %478 = vector.shape_cast %477 : vector<16xf32> to vector<16x1xf32>
    %c-1_i32 = arith.constant -1 : i32
    %479 = vector.broadcast %c-1_i32 : i32 to vector<16x1xi32>
    %480 = arith.cmpi ne, %461, %479 : vector<16x1xi32>
    %481 = arith.extui %480 : vector<16x1xi1> to vector<16x1xi32>
    %482 = arith.sitofp %481 : vector<16x1xi32> to vector<16x1xf32>
    %483 = arith.subf %470, %478 : vector<16x1xf32>
    %484 = arith.mulf %483, %482 : vector<16x1xf32>
    %cst_131 = arith.constant dense<0.000000e+00> : vector<1xf32>
    %485 = vector.multi_reduction <add>, %484, %cst_131 [0] : vector<16x1xf32> to vector<1xf32>
    %486 = vector.shape_cast %485 : vector<1xf32> to vector<1x1xf32>
    %cst_132 = arith.constant dense<0.000000e+00> : vector<1xf32>
    %487 = vector.multi_reduction <add>, %482, %cst_132 [0] : vector<16x1xf32> to vector<1xf32>
    %488 = vector.shape_cast %487 : vector<1xf32> to vector<1x1xf32>
    %cst_133 = arith.constant 1.000000e+00 : f32
    %489 = vector.broadcast %cst_133 : f32 to vector<1x1xf32>
    %490 = arith.maximumf %488, %489 : vector<1x1xf32>
    %491 = arith.divf %486, %490 : vector<1x1xf32>
    %c0_134 = arith.constant 0 : index
    %c0_135 = arith.constant 0 : index
    %492 = vector.load %arg20[%c0_134, %c0_135] : memref<1x1xf32, #tpu.memory_space<vmem>>, vector<1x1xf32>
    tpu.vector_store %arg20[%c0_134, %c0_135], %491 {strides = array<i32>} : memref<1x1xf32, #tpu.memory_space<vmem>>, vector<1x1xf32>,
    return
  }
}

</mosaic_0001>

<llo_original>
// kernel: tpu_custom_call.1
$region0: #{tpu_custom_call.1}
  #allocation0 [shape = 'u32[]', space=smem, size = 0x4, offset = 0x4, fixed_abs, tag = 'smem constant byte address 0x4 - core index']
  #allocation1 [shape = 'u32[144,128]{1,0:T(1,128)}', space=vmem, size = 0x12000, scoped, tag = 'internal scratch']
  #allocation2 [shape = 'f32[16,32]{1,0:T(8,128)}', space=vmem, size = 0x2000, scoped, tag = 'scratch operand']
  %s0 = inlined_call_operand.vmem [shape: s32[256,1], index: 0, kind: input, shape index: {}]
  %s1 = inlined_call_operand.vmem [shape: f32[256,1], index: 1, kind: input, shape index: {}]
  %s2 = inlined_call_operand.vmem [shape: bf16[128,33], index: 2, kind: input, shape index: {}]
  %s3 = inlined_call_operand.vmem [shape: bf16[16,256], index: 3, kind: input, shape index: {}]
  %s4 = inlined_call_operand.vmem [shape: bf16[16,16], index: 4, kind: input, shape index: {}]
  %s5 = inlined_call_operand.vmem [shape: bf16[16,16], index: 5, kind: input, shape index: {}]
  %s6 = inlined_call_operand.vmem [shape: bf16[32,32], index: 6, kind: input, shape index: {}]
  %s7 = inlined_call_operand.vmem [shape: f32[1,32], index: 7, kind: input, shape index: {}]
  %s8 = inlined_call_operand.vmem [shape: bf16[64,96], index: 8, kind: input, shape index: {}]
  %s9 = inlined_call_operand.vmem [shape: bf16[32,96], index: 9, kind: input, shape index: {}]
  %s10 = inlined_call_operand.vmem [shape: f32[1,96], index: 10, kind: input, shape index: {}]
  %s11 = inlined_call_operand.vmem [shape: f32[2,32], index: 11, kind: input, shape index: {}]
  %s12 = inlined_call_operand.vmem [shape: bf16[64,96], index: 12, kind: input, shape index: {}]
  %s13 = inlined_call_operand.vmem [shape: bf16[32,96], index: 13, kind: input, shape index: {}]
  %s14 = inlined_call_operand.vmem [shape: f32[1,96], index: 14, kind: input, shape index: {}]
  %s15 = inlined_call_operand.vmem [shape: f32[2,32], index: 15, kind: input, shape index: {}]
  %s16 = inlined_call_operand.vmem [shape: bf16[32,128], index: 16, kind: input, shape index: {}]
  %s17 = inlined_call_operand.vmem [shape: f32[1,128], index: 17, kind: input, shape index: {}]
  %s18 = inlined_call_operand.vmem [shape: s32[16,1], index: 18, kind: input, shape index: {}]
  %s19 = inlined_call_operand.hbm [shape: f32[16,128], index: 19, kind: output, shape index: {0}]
  %s20 = inlined_call_operand.hbm [shape: f32[1,1], index: 20, kind: output, shape index: {1}]
  %21 = xla_tuple %s19, %s20
  %s22 = sld [smem:[#allocation0]]
  $region94: #{tpu_custom_call.1} parent=0
    _
  %s24 = ssub.s32 1, %s22
  %s25 = scalar_select 0, %s24, %s22
  $region1: #{tpu_custom_call.1} parent=0
    #allocation3 [shape = 'u8[8192]{0}', space=vmem, size = 0x2000, scoped, tag = 'output window, operand 0, single buffered']
    #allocation4 [shape = 's32[1]{0}', space=sflag, size = 0x4, scoped, tag = 'scoped memory for tpu_custom_call.1']
    #allocation5 [shape = 'u8[512]{0}', space=vmem, size = 0x400, scoped, tag = 'output window, operand 1, single buffered']
    #allocation6 [shape = 's32[1]{0}', space=sflag, size = 0x4, scoped, tag = 'scoped memory for tpu_custom_call.1']
    %26 = vsyncpa [#allocation4], 0
    %27 = vsyncpa [#allocation6], 0
    // Predicated region
    $region2: #{tpu_custom_call.1} parent=1 // pred_check
      _
    $region3: #{tpu_custom_call.1} parent=1 // pred_check_branch
      %29 = sbr.rel (0) target = $region5
    $region4: #{tpu_custom_call.1} parent=1 // pred_region
      _
    $region5: #{tpu_custom_call.1} parent=1 // pred_fallthru
      _
    // Predicated region
    $region6: #{tpu_custom_call.1} parent=1 // pred_check
      _
    $region7: #{tpu_custom_call.1} parent=1 // pred_check_branch
      %31 = sbr.rel (0) target = $region9
    $region8: #{tpu_custom_call.1} parent=1 // pred_region
      _
    $region9: #{tpu_custom_call.1} parent=1 // pred_fallthru
      _
    // Predicated region
    $region10: #{tpu_custom_call.1} parent=1 // pred_check
      _
    $region11: #{tpu_custom_call.1} parent=1 // pred_check_branch
      %33 = sbr.rel (0) target = $region13
    $region12: #{tpu_custom_call.1} parent=1 // pred_region
      _
    $region13: #{tpu_custom_call.1} parent=1 // pred_fallthru
      _
    // Predicated region
    $region14: #{tpu_custom_call.1} parent=1 // pred_check
      _
    $region15: #{tpu_custom_call.1} parent=1 // pred_check_branch
      %35 = sbr.rel (0) target = $region17
    $region16: #{tpu_custom_call.1} parent=1 // pred_region
      _
    $region17: #{tpu_custom_call.1} parent=1 // pred_fallthru
      _
    // Predicated region
    $region18: #{tpu_custom_call.1} parent=1 // pred_check
      _
    $region19: #{tpu_custom_call.1} parent=1 // pred_check_branch
      %37 = sbr.rel (0) target = $region21
    $region20: #{tpu_custom_call.1} parent=1 // pred_region
      _
    $region21: #{tpu_custom_call.1} parent=1 // pred_fallthru
      _
    // Predicated region
    $region22: #{tpu_custom_call.1} parent=1 // pred_check
      _
    $region23: #{tpu_custom_call.1} parent=1 // pred_check_branch
      %39 = sbr.rel (0) target = $region25
    $region24: #{tpu_custom_call.1} parent=1 // pred_region
      _
    $region25: #{tpu_custom_call.1} parent=1 // pred_fallthru
      _
    // Predicated region
    $region26: #{tpu_custom_call.1} parent=1 // pred_check
      _
    $region27: #{tpu_custom_call.1} parent=1 // pred_check_branch
      %41 = sbr.rel (0) target = $region29
    $region28: #{tpu_custom_call.1} parent=1 // pred_region
      _
    $region29: #{tpu_custom_call.1} parent=1 // pred_fallthru
      _
    // Predicated region
    $region30: #{tpu_custom_call.1} parent=1 // pred_check
      _
    $region31: #{tpu_custom_call.1} parent=1 // pred_check_branch
      %43 = sbr.rel (0) target = $region33
    $region32: #{tpu_custom_call.1} parent=1 // pred_region
      _
    $region33: #{tpu_custom_call.1} parent=1 // pred_fallthru
      _
    // Predicated region
    $region34: #{tpu_custom_call.1} parent=1 // pred_check
      _
    $region35: #{tpu_custom_call.1} parent=1 // pred_check_branch
      %45 = sbr.rel (0) target = $region37
    $region36: #{tpu_custom_call.1} parent=1 // pred_region
      _
    $region37: #{tpu_custom_call.1} parent=1 // pred_fallthru
      _
    // Predicated region
    $region38: #{tpu_custom_call.1} parent=1 // pred_check
      _
    $region39: #{tpu_custom_call.1} parent=1 // pred_check_branch
      %47 = sbr.rel (0) target = $region41
    $region40: #{tpu_custom_call.1} parent=1 // pred_region
      _
    $region41: #{tpu_custom_call.1} parent=1 // pred_fallthru
      _
    // Predicated region
    $region42: #{tpu_custom_call.1} parent=1 // pred_check
      _
    $region43: #{tpu_custom_call.1} parent=1 // pred_check_branch
      %49 = sbr.rel (0) target = $region45
    $region44: #{tpu_custom_call.1} parent=1 // pred_region
      _
    $region45: #{tpu_custom_call.1} parent=1 // pred_fallthru
      _
    // Predicated region
    $region46: #{tpu_custom_call.1} parent=1 // pred_check
      _
    $region47: #{tpu_custom_call.1} parent=1 // pred_check_branch
      %51 = sbr.rel (0) target = $region49
    $region48: #{tpu_custom_call.1} parent=1 // pred_region
      _
    $region49: #{tpu_custom_call.1} parent=1 // pred_fallthru
      _
    // Predicated region
    $region50: #{tpu_custom_call.1} parent=1 // pred_check
      _
    $region51: #{tpu_custom_call.1} parent=1 // pred_check_branch
      %53 = sbr.rel (0) target = $region53
    $region52: #{tpu_custom_call.1} parent=1 // pred_region
      _
    $region53: #{tpu_custom_call.1} parent=1 // pred_fallthru
      _
    // Predicated region
    $region54: #{tpu_custom_call.1} parent=1 // pred_check
      _
    $region55: #{tpu_custom_call.1} parent=1 // pred_check_branch
      %55 = sbr.rel (0) target = $region57
    $region56: #{tpu_custom_call.1} parent=1 // pred_region
      _
    $region57: #{tpu_custom_call.1} parent=1 // pred_fallthru
      _
    // Predicated region
    $region58: #{tpu_custom_call.1} parent=1 // pred_check
      _
    $region59: #{tpu_custom_call.1} parent=1 // pred_check_branch
      %57 = sbr.rel (0) target = $region61
    $region60: #{tpu_custom_call.1} parent=1 // pred_region
      _
    $region61: #{tpu_custom_call.1} parent=1 // pred_fallthru
      _
    // Predicated region
    $region62: #{tpu_custom_call.1} parent=1 // pred_check
      _
    $region63: #{tpu_custom_call.1} parent=1 // pred_check_branch
      %59 = sbr.rel (0) target = $region65
    $region64: #{tpu_custom_call.1} parent=1 // pred_region
      _
    $region65: #{tpu_custom_call.1} parent=1 // pred_fallthru
      _
    // Predicated region
    $region66: #{tpu_custom_call.1} parent=1 // pred_check
      _
    $region67: #{tpu_custom_call.1} parent=1 // pred_check_branch
      %61 = sbr.rel (0) target = $region69
    $region68: #{tpu_custom_call.1} parent=1 // pred_region
      _
    $region69: #{tpu_custom_call.1} parent=1 // pred_fallthru
      _
    // Predicated region
    $region70: #{tpu_custom_call.1} parent=1 // pred_check
      _
    $region71: #{tpu_custom_call.1} parent=1 // pred_check_branch
      %63 = sbr.rel (0) target = $region73
    $region72: #{tpu_custom_call.1} parent=1 // pred_region
      _
    $region73: #{tpu_custom_call.1} parent=1 // pred_fallthru
      _
    // Predicated region
    $region74: #{tpu_custom_call.1} parent=1 // pred_check
      _
    $region75: #{tpu_custom_call.1} parent=1 // pred_check_branch
      %65 = sbr.rel (0) target = $region77
    $region76: #{tpu_custom_call.1} parent=1 // pred_region
      _
    $region77: #{tpu_custom_call.1} parent=1 // pred_fallthru
      _
    %v67 = vlaneseq
    %v68 = vand.u32 %v67, 127
    %v69 = vld [vmem:[%s0] sm:$0xff]
    %v70 = vld [vmem:[%s0 + $0x8] sm:$0xff]
    %v71 = vld [vmem:[%s0 + $0x10] sm:$0xff]
    %v72 = vld [vmem:[%s0 + $0x18] sm:$0xff]
    %v73 = vld [vmem:[%s0 + $0x20] sm:$0xff]
    %v74 = vld [vmem:[%s0 + $0x28] sm:$0xff]
    %v75 = vld [vmem:[%s0 + $0x30] sm:$0xff]
    %v76 = vld [vmem:[%s0 + $0x38] sm:$0xff]
    %v77 = vld [vmem:[%s0 + $0x40] sm:$0xff]
    %v78 = vld [vmem:[%s0 + $0x48] sm:$0xff]
    %v79 = vld [vmem:[%s0 + $0x50] sm:$0xff]
    %v80 = vld [vmem:[%s0 + $0x58] sm:$0xff]
    %v81 = vld [vmem:[%s0 + $0x60] sm:$0xff]
    %v82 = vld [vmem:[%s0 + $0x68] sm:$0xff]
    %v83 = vld [vmem:[%s0 + $0x70] sm:$0xff]
    %v84 = vld [vmem:[%s0 + $0x78] sm:$0xff]
    %v85 = vld [vmem:[%s0 + $0x80] sm:$0xff]
    %v86 = vld [vmem:[%s0 + $0x88] sm:$0xff]
    %v87 = vld [vmem:[%s0 + $0x90] sm:$0xff]
    %v88 = vld [vmem:[%s0 + $0x98] sm:$0xff]
    %v89 = vld [vmem:[%s0 + $0xa0] sm:$0xff]
    %v90 = vld [vmem:[%s0 + $0xa8] sm:$0xff]
    %v91 = vld [vmem:[%s0 + $0xb0] sm:$0xff]
    %v92 = vld [vmem:[%s0 + $0xb8] sm:$0xff]
    %v93 = vld [vmem:[%s0 + $0xc0] sm:$0xff]
    %v94 = vld [vmem:[%s0 + $0xc8] sm:$0xff]
    %v95 = vld [vmem:[%s0 + $0xd0] sm:$0xff]
    %v96 = vld [vmem:[%s0 + $0xd8] sm:$0xff]
    %v97 = vld [vmem:[%s0 + $0xe0] sm:$0xff]
    %v98 = vld [vmem:[%s0 + $0xe8] sm:$0xff]
    %v99 = vld [vmem:[%s0 + $0xf0] sm:$0xff]
    %v100 = vld [vmem:[%s0 + $0xf8] sm:$0xff]
    %101 = vset.pattern.permute.xlu0 0
    %102 = vperm.xlu0 %101, %v69
    %v103 = vpop.permute.xlu0 %102
    %104 = vset.pattern.permute.xlu0 0
    %105 = vperm.xlu0 %104, %v70
    %v106 = vpop.permute.xlu0 %105
    %107 = vset.pattern.permute.xlu0 0
    %108 = vperm.xlu0 %107, %v71
    %v109 = vpop.permute.xlu0 %108
    %110 = vset.pattern.permute.xlu0 0
    %111 = vperm.xlu0 %110, %v72
    %v112 = vpop.permute.xlu0 %111
    %113 = vset.pattern.permute.xlu0 0
    %114 = vperm.xlu0 %113, %v73
    %v115 = vpop.permute.xlu0 %114
    %116 = vset.pattern.permute.xlu0 0
    %117 = vperm.xlu0 %116, %v74
    %v118 = vpop.permute.xlu0 %117
    %119 = vset.pattern.permute.xlu0 0
    %120 = vperm.xlu0 %119, %v75
    %v121 = vpop.permute.xlu0 %120
    %122 = vset.pattern.permute.xlu0 0
    %123 = vperm.xlu0 %122, %v76
    %v124 = vpop.permute.xlu0 %123
    %125 = vset.pattern.permute.xlu0 0
    %126 = vperm.xlu0 %125, %v77
    %v127 = vpop.permute.xlu0 %126
    %128 = vset.pattern.permute.xlu0 0
    %129 = vperm.xlu0 %128, %v78
    %v130 = vpop.permute.xlu0 %129
    %131 = vset.pattern.permute.xlu0 0
    %132 = vperm.xlu0 %131, %v79
    %v133 = vpop.permute.xlu0 %132
    %134 = vset.pattern.permute.xlu0 0
    %135 = vperm.xlu0 %134, %v80
    %v136 = vpop.permute.xlu0 %135
    %137 = vset.pattern.permute.xlu0 0
    %138 = vperm.xlu0 %137, %v81
    %v139 = vpop.permute.xlu0 %138
    %140 = vset.pattern.permute.xlu0 0
    %141 = vperm.xlu0 %140, %v82
    %v142 = vpop.permute.xlu0 %141
    %143 = vset.pattern.permute.xlu0 0
    %144 = vperm.xlu0 %143, %v83
    %v145 = vpop.permute.xlu0 %144
    %146 = vset.pattern.permute.xlu0 0
    %147 = vperm.xlu0 %146, %v84
    %v148 = vpop.permute.xlu0 %147
    %149 = vset.pattern.permute.xlu0 0
    %150 = vperm.xlu0 %149, %v85
    %v151 = vpop.permute.xlu0 %150
    %152 = vset.pattern.permute.xlu0 0
    %153 = vperm.xlu0 %152, %v86
    %v154 = vpop.permute.xlu0 %153
    %155 = vset.pattern.permute.xlu0 0
    %156 = vperm.xlu0 %155, %v87
    %v157 = vpop.permute.xlu0 %156
    %158 = vset.pattern.permute.xlu0 0
    %159 = vperm.xlu0 %158, %v88
    %v160 = vpop.permute.xlu0 %159
    %161 = vset.pattern.permute.xlu0 0
    %162 = vperm.xlu0 %161, %v89
    %v163 = vpop.permute.xlu0 %162
    %164 = vset.pattern.permute.xlu0 0
    %165 = vperm.xlu0 %164, %v90
    %v166 = vpop.permute.xlu0 %165
    %167 = vset.pattern.permute.xlu0 0
    %168 = vperm.xlu0 %167, %v91
    %v169 = vpop.permute.xlu0 %168
    %170 = vset.pattern.permute.xlu0 0
    %171 = vperm.xlu0 %170, %v92
    %v172 = vpop.permute.xlu0 %171
    %173 = vset.pattern.permute.xlu0 0
    %174 = vperm.xlu0 %173, %v93
    %v175 = vpop.permute.xlu0 %174
    %176 = vset.pattern.permute.xlu0 0
    %177 = vperm.xlu0 %176, %v94
    %v178 = vpop.permute.xlu0 %177
    %179 = vset.pattern.permute.xlu0 0
    %180 = vperm.xlu0 %179, %v95
    %v181 = vpop.permute.xlu0 %180
    %182 = vset.pattern.permute.xlu0 0
    %183 = vperm.xlu0 %182, %v96
    %v184 = vpop.permute.xlu0 %183
    %185 = vset.pattern.permute.xlu0 0
    %186 = vperm.xlu0 %185, %v97
    %v187 = vpop.permute.xlu0 %186
    %188 = vset.pattern.permute.xlu0 0
    %189 = vperm.xlu0 %188, %v98
    %v190 = vpop.permute.xlu0 %189
    %191 = vset.pattern.permute.xlu0 0
    %192 = vperm.xlu0 %191, %v99
    %v193 = vpop.permute.xlu0 %192
    %194 = vset.pattern.permute.xlu0 0
    %195 = vperm.xlu0 %194, %v100
    %v196 = vpop.permute.xlu0 %195
    %vm197 = vcmp.eq.s32.totalorder %v68, %v103
    %vm198 = vcmp.eq.s32.totalorder %v68, %v106
    %vm199 = vcmp.eq.s32.totalorder %v68, %v109
    %vm200 = vcmp.eq.s32.totalorder %v68, %v112
    %vm201 = vcmp.eq.s32.totalorder %v68, %v115
    %vm202 = vcmp.eq.s32.totalorder %v68, %v118
    %vm203 = vcmp.eq.s32.totalorder %v68, %v121
    %vm204 = vcmp.eq.s32.totalorder %v68, %v124
    %vm205 = vcmp.eq.s32.totalorder %v68, %v127
    %vm206 = vcmp.eq.s32.totalorder %v68, %v130
    %vm207 = vcmp.eq.s32.totalorder %v68, %v133
    %vm208 = vcmp.eq.s32.totalorder %v68, %v136
    %vm209 = vcmp.eq.s32.totalorder %v68, %v139
    %vm210 = vcmp.eq.s32.totalorder %v68, %v142
    %vm211 = vcmp.eq.s32.totalorder %v68, %v145
    %vm212 = vcmp.eq.s32.totalorder %v68, %v148
    %vm213 = vcmp.eq.s32.totalorder %v68, %v151
    %vm214 = vcmp.eq.s32.totalorder %v68, %v154
    %vm215 = vcmp.eq.s32.totalorder %v68, %v157
    %vm216 = vcmp.eq.s32.totalorder %v68, %v160
    %vm217 = vcmp.eq.s32.totalorder %v68, %v163
    %vm218 = vcmp.eq.s32.totalorder %v68, %v166
    %vm219 = vcmp.eq.s32.totalorder %v68, %v169
    %vm220 = vcmp.eq.s32.totalorder %v68, %v172
    %vm221 = vcmp.eq.s32.totalorder %v68, %v175
    %vm222 = vcmp.eq.s32.totalorder %v68, %v178
    %vm223 = vcmp.eq.s32.totalorder %v68, %v181
    %vm224 = vcmp.eq.s32.totalorder %v68, %v184
    %vm225 = vcmp.eq.s32.totalorder %v68, %v187
    %vm226 = vcmp.eq.s32.totalorder %v68, %v190
    %vm227 = vcmp.eq.s32.totalorder %v68, %v193
    %vm228 = vcmp.eq.s32.totalorder %v68, %v196
    %v229 = vsel %vm197, 1, 0
    %v230 = vsel %vm198, 1, 0
    %v231 = vsel %vm199, 1, 0
    %v232 = vsel %vm200, 1, 0
    %v233 = vsel %vm201, 1, 0
    %v234 = vsel %vm202, 1, 0
    %v235 = vsel %vm203, 1, 0
    %v236 = vsel %vm204, 1, 0
    %v237 = vsel %vm205, 1, 0
    %v238 = vsel %vm206, 1, 0
    %v239 = vsel %vm207, 1, 0
    %v240 = vsel %vm208, 1, 0
    %v241 = vsel %vm209, 1, 0
    %v242 = vsel %vm210, 1, 0
    %v243 = vsel %vm211, 1, 0
    %v244 = vsel %vm212, 1, 0
    %v245 = vsel %vm213, 1, 0
    %v246 = vsel %vm214, 1, 0
    %v247 = vsel %vm215, 1, 0
    %v248 = vsel %vm216, 1, 0
    %v249 = vsel %vm217, 1, 0
    %v250 = vsel %vm218, 1, 0
    %v251 = vsel %vm219, 1, 0
    %v252 = vsel %vm220, 1, 0
    %v253 = vsel %vm221, 1, 0
    %v254 = vsel %vm222, 1, 0
    %v255 = vsel %vm223, 1, 0
    %v256 = vsel %vm224, 1, 0
    %v257 = vsel %vm225, 1, 0
    %v258 = vsel %vm226, 1, 0
    %v259 = vsel %vm227, 1, 0
    %v260 = vsel %vm228, 1, 0
    %v261 = vcvt.s32.f32 %v229
    %v262 = vcvt.s32.f32 %v230
    %v263 = vcvt.s32.f32 %v231
    %v264 = vcvt.s32.f32 %v232
    %v265 = vcvt.s32.f32 %v233
    %v266 = vcvt.s32.f32 %v234
    %v267 = vcvt.s32.f32 %v235
    %v268 = vcvt.s32.f32 %v236
    %v269 = vcvt.s32.f32 %v237
    %v270 = vcvt.s32.f32 %v238
    %v271 = vcvt.s32.f32 %v239
    %v272 = vcvt.s32.f32 %v240
    %v273 = vcvt.s32.f32 %v241
    %v274 = vcvt.s32.f32 %v242
    %v275 = vcvt.s32.f32 %v243
    %v276 = vcvt.s32.f32 %v244
    %v277 = vcvt.s32.f32 %v245
    %v278 = vcvt.s32.f32 %v246
    %v279 = vcvt.s32.f32 %v247
    %v280 = vcvt.s32.f32 %v248
    %v281 = vcvt.s32.f32 %v249
    %v282 = vcvt.s32.f32 %v250
    %v283 = vcvt.s32.f32 %v251
    %v284 = vcvt.s32.f32 %v252
    %v285 = vcvt.s32.f32 %v253
    %v286 = vcvt.s32.f32 %v254
    %v287 = vcvt.s32.f32 %v255
    %v288 = vcvt.s32.f32 %v256
    %v289 = vcvt.s32.f32 %v257
    %v290 = vcvt.s32.f32 %v258
    %v291 = vcvt.s32.f32 %v259
    %v292 = vcvt.s32.f32 %v260
    %v293 = vld [vmem:[%s1] sm:$0xff]
    %v294 = vld [vmem:[%s1 + $0x8] sm:$0xff]
    %v295 = vld [vmem:[%s1 + $0x10] sm:$0xff]
    %v296 = vld [vmem:[%s1 + $0x18] sm:$0xff]
    %v297 = vld [vmem:[%s1 + $0x20] sm:$0xff]
    %v298 = vld [vmem:[%s1 + $0x28] sm:$0xff]
    %v299 = vld [vmem:[%s1 + $0x30] sm:$0xff]
    %v300 = vld [vmem:[%s1 + $0x38] sm:$0xff]
    %v301 = vld [vmem:[%s1 + $0x40] sm:$0xff]
    %v302 = vld [vmem:[%s1 + $0x48] sm:$0xff]
    %v303 = vld [vmem:[%s1 + $0x50] sm:$0xff]
    %v304 = vld [vmem:[%s1 + $0x58] sm:$0xff]
    %v305 = vld [vmem:[%s1 + $0x60] sm:$0xff]
    %v306 = vld [vmem:[%s1 + $0x68] sm:$0xff]
    %v307 = vld [vmem:[%s1 + $0x70] sm:$0xff]
    %v308 = vld [vmem:[%s1 + $0x78] sm:$0xff]
    %v309 = vld [vmem:[%s1 + $0x80] sm:$0xff]
    %v310 = vld [vmem:[%s1 + $0x88] sm:$0xff]
    %v311 = vld [vmem:[%s1 + $0x90] sm:$0xff]
    %v312 = vld [vmem:[%s1 + $0x98] sm:$0xff]
    %v313 = vld [vmem:[%s1 + $0xa0] sm:$0xff]
    %v314 = vld [vmem:[%s1 + $0xa8] sm:$0xff]
    %v315 = vld [vmem:[%s1 + $0xb0] sm:$0xff]
    %v316 = vld [vmem:[%s1 + $0xb8] sm:$0xff]
    %v317 = vld [vmem:[%s1 + $0xc0] sm:$0xff]
    %v318 = vld [vmem:[%s1 + $0xc8] sm:$0xff]
    %v319 = vld [vmem:[%s1 + $0xd0] sm:$0xff]
    %v320 = vld [vmem:[%s1 + $0xd8] sm:$0xff]
    %v321 = vld [vmem:[%s1 + $0xe0] sm:$0xff]
    %v322 = vld [vmem:[%s1 + $0xe8] sm:$0xff]
    %v323 = vld [vmem:[%s1 + $0xf0] sm:$0xff]
    %v324 = vld [vmem:[%s1 + $0xf8] sm:$0xff]
    %326 = vset.pattern.permute.xlu0 0
    %327 = vperm.xlu0 %326, %v293
    %v328 = vpop.permute.xlu0 %327
    %331 = vset.pattern.permute.xlu0 0
    %332 = vperm.xlu0 %331, %v294
    %v333 = vpop.permute.xlu0 %332
    %336 = vset.pattern.permute.xlu0 0
    %337 = vperm.xlu0 %336, %v295
    %v338 = vpop.permute.xlu0 %337
    %341 = vset.pattern.permute.xlu0 0
    %342 = vperm.xlu0 %341, %v296
    %v343 = vpop.permute.xlu0 %342
    %346 = vset.pattern.permute.xlu0 0
    %347 = vperm.xlu0 %346, %v297
    %v348 = vpop.permute.xlu0 %347
    %351 = vset.pattern.permute.xlu0 0
    %352 = vperm.xlu0 %351, %v298
    %v353 = vpop.permute.xlu0 %352
    %356 = vset.pattern.permute.xlu0 0
    %357 = vperm.xlu0 %356, %v299
    %v358 = vpop.permute.xlu0 %357
    %361 = vset.pattern.permute.xlu0 0
    %362 = vperm.xlu0 %361, %v300
    %v363 = vpop.permute.xlu0 %362
    %366 = vset.pattern.permute.xlu0 0
    %367 = vperm.xlu0 %366, %v301
    %v368 = vpop.permute.xlu0 %367
    %371 = vset.pattern.permute.xlu0 0
    %372 = vperm.xlu0 %371, %v302
    %v373 = vpop.permute.xlu0 %372
    %376 = vset.pattern.permute.xlu0 0
    %377 = vperm.xlu0 %376, %v303
    %v378 = vpop.permute.xlu0 %377
    %381 = vset.pattern.permute.xlu0 0
    %382 = vperm.xlu0 %381, %v304
    %v383 = vpop.permute.xlu0 %382
    %386 = vset.pattern.permute.xlu0 0
    %387 = vperm.xlu0 %386, %v305
    %v388 = vpop.permute.xlu0 %387
    %391 = vset.pattern.permute.xlu0 0
    %392 = vperm.xlu0 %391, %v306
    %v393 = vpop.permute.xlu0 %392
    %396 = vset.pattern.permute.xlu0 0
    %397 = vperm.xlu0 %396, %v307
    %v398 = vpop.permute.xlu0 %397
    %401 = vset.pattern.permute.xlu0 0
    %402 = vperm.xlu0 %401, %v308
    %v403 = vpop.permute.xlu0 %402
    %406 = vset.pattern.permute.xlu0 0
    %407 = vperm.xlu0 %406, %v309
    %v408 = vpop.permute.xlu0 %407
    %411 = vset.pattern.permute.xlu0 0
    %412 = vperm.xlu0 %411, %v310
    %v413 = vpop.permute.xlu0 %412
    %416 = vset.pattern.permute.xlu0 0
    %417 = vperm.xlu0 %416, %v311
    %v418 = vpop.permute.xlu0 %417
    %421 = vset.pattern.permute.xlu0 0
    %422 = vperm.xlu0 %421, %v312
    %v423 = vpop.permute.xlu0 %422
    %426 = vset.pattern.permute.xlu0 0
    %427 = vperm.xlu0 %426, %v313
    %v428 = vpop.permute.xlu0 %427
    %431 = vset.pattern.permute.xlu0 0
    %432 = vperm.xlu0 %431, %v314
    %v433 = vpop.permute.xlu0 %432
    %436 = vset.pattern.permute.xlu0 0
    %437 = vperm.xlu0 %436, %v315
    %v438 = vpop.permute.xlu0 %437
    %441 = vset.pattern.permute.xlu0 0
    %442 = vperm.xlu0 %441, %v316
    %v443 = vpop.permute.xlu0 %442
    %446 = vset.pattern.permute.xlu0 0
    %447 = vperm.xlu0 %446, %v317
    %v448 = vpop.permute.xlu0 %447
    %451 = vset.pattern.permute.xlu0 0
    %452 = vperm.xlu0 %451, %v318
    %v453 = vpop.permute.xlu0 %452
    %456 = vset.pattern.permute.xlu0 0
    %457 = vperm.xlu0 %456, %v319
    %v458 = vpop.permute.xlu0 %457
    %461 = vset.pattern.permute.xlu0 0
    %462 = vperm.xlu0 %461, %v320
    %v463 = vpop.permute.xlu0 %462
    %466 = vset.pattern.permute.xlu0 0
    %467 = vperm.xlu0 %466, %v321
    %v468 = vpop.permute.xlu0 %467
    %471 = vset.pattern.permute.xlu0 0
    %472 = vperm.xlu0 %471, %v322
    %v473 = vpop.permute.xlu0 %472
    %476 = vset.pattern.permute.xlu0 0
    %477 = vperm.xlu0 %476, %v323
    %v478 = vpop.permute.xlu0 %477
    %481 = vset.pattern.permute.xlu0 0
    %482 = vperm.xlu0 %481, %v324
    %v483 = vpop.permute.xlu0 %482
    %v485 = vmul.f32 %v261, %v328
    %v486 = vmul.f32 %v262, %v333
    %v487 = vmul.f32 %v263, %v338
    %v488 = vmul.f32 %v264, %v343
    %v489 = vmul.f32 %v265, %v348
    %v490 = vmul.f32 %v266, %v353
    %v491 = vmul.f32 %v267, %v358
    %v492 = vmul.f32 %v268, %v363
    %v493 = vmul.f32 %v269, %v368
    %v494 = vmul.f32 %v270, %v373
    %v495 = vmul.f32 %v271, %v378
    %v496 = vmul.f32 %v272, %v383
    %v497 = vmul.f32 %v273, %v388
    %v498 = vmul.f32 %v274, %v393
    %v499 = vmul.f32 %v275, %v398
    %v500 = vmul.f32 %v276, %v403
    %v501 = vmul.f32 %v277, %v408
    %v502 = vmul.f32 %v278, %v413
    %v503 = vmul.f32 %v279, %v418
    %v504 = vmul.f32 %v280, %v423
    %v505 = vmul.f32 %v281, %v428
    %v506 = vmul.f32 %v282, %v433
    %v507 = vmul.f32 %v283, %v438
    %v508 = vmul.f32 %v284, %v443
    %v509 = vmul.f32 %v285, %v448
    %v510 = vmul.f32 %v286, %v453
    %v511 = vmul.f32 %v287, %v458
    %v512 = vmul.f32 %v288, %v463
    %v513 = vmul.f32 %v289, %v468
    %v514 = vmul.f32 %v290, %v473
    %v515 = vmul.f32 %v291, %v478
    %v516 = vmul.f32 %v292, %v483
    %v517 = vpack.c.bf16 %v486, %v485
    %v518 = vpack.c.bf16 %v488, %v487
    %v519 = vpack.c.bf16 %v490, %v489
    %v520 = vpack.c.bf16 %v492, %v491
    %v521 = vpack.c.bf16 %v494, %v493
    %v522 = vpack.c.bf16 %v496, %v495
    %v523 = vpack.c.bf16 %v498, %v497
    %v524 = vpack.c.bf16 %v500, %v499
    %v525 = vpack.c.bf16 %v502, %v501
    %v526 = vpack.c.bf16 %v504, %v503
    %v527 = vpack.c.bf16 %v506, %v505
    %v528 = vpack.c.bf16 %v508, %v507
    %v529 = vpack.c.bf16 %v510, %v509
    %v530 = vpack.c.bf16 %v512, %v511
    %v531 = vpack.c.bf16 %v514, %v513
    %v532 = vpack.c.bf16 %v516, %v515
    %v533 = vld [vmem:[%s2] sm:$0xf]
    %v534 = vld [vmem:[%s2 + $0x4] sm:$0xf]
    %v535 = vld [vmem:[%s2 + $0x8] sm:$0xf]
    %v536 = vld [vmem:[%s2 + $0xc] sm:$0xf]
    %v537 = vld [vmem:[%s2 + $0x10] sm:$0xf]
    %v538 = vld [vmem:[%s2 + $0x14] sm:$0xf]
    %v539 = vld [vmem:[%s2 + $0x18] sm:$0xf]
    %v540 = vld [vmem:[%s2 + $0x1c] sm:$0xf]
    %v541 = vld [vmem:[%s2 + $0x20] sm:$0xf]
    %v542 = vld [vmem:[%s2 + $0x24] sm:$0xf]
    %v543 = vld [vmem:[%s2 + $0x28] sm:$0xf]
    %v544 = vld [vmem:[%s2 + $0x2c] sm:$0xf]
    %v545 = vld [vmem:[%s2 + $0x30] sm:$0xf]
    %v546 = vld [vmem:[%s2 + $0x34] sm:$0xf]
    %v547 = vld [vmem:[%s2 + $0x38] sm:$0xf]
    %v548 = vld [vmem:[%s2 + $0x3c] sm:$0xf]
    %v565 = vunpack.c.l.b16 %v533
    %v566 = vunpack.c.l.b16 %v534
    %v567 = vunpack.c.l.b16 %v535
    %v568 = vunpack.c.l.b16 %v536
    %v569 = vunpack.c.l.b16 %v537
    %v570 = vunpack.c.l.b16 %v538
    %v571 = vunpack.c.l.b16 %v539
    %v572 = vunpack.c.l.b16 %v540
    %v573 = vunpack.c.l.b16 %v541
    %v574 = vunpack.c.l.b16 %v542
    %v575 = vunpack.c.l.b16 %v543
    %v576 = vunpack.c.l.b16 %v544
    %v577 = vunpack.c.l.b16 %v545
    %v578 = vunpack.c.l.b16 %v546
    %v579 = vunpack.c.l.b16 %v547
    %v580 = vunpack.c.l.b16 %v548
    %v581 = vpack.c.b16 %v566, %v565
    %v582 = vpack.c.b16 %v568, %v567
    %v583 = vpack.c.b16 %v570, %v569
    %v584 = vpack.c.b16 %v572, %v571
    %v585 = vpack.c.b16 %v574, %v573
    %v586 = vpack.c.b16 %v576, %v575
    %v587 = vpack.c.b16 %v578, %v577
    %v588 = vpack.c.b16 %v580, %v579
    %597 = vmatprep.subr.bf16.mxu0 0
    %598 = vmatpush1.bf16.msra.mxu0 %v581
    %599 = vmatprep.subr.bf16.mxu0 0
    %600 = vmatpush1.bf16.msra.mxu0 %v582
    %601 = vmatprep.subr.bf16.mxu0 0
    %602 = vmatpush1.bf16.msra.mxu0 %v583
    %603 = vmatprep.subr.bf16.mxu0 0
    %604 = vmatpush1.bf16.msra.mxu0 %v584
    %605 = vmatprep.subr.bf16.mxu0 0
    %606 = vmatpush1.bf16.msra.mxu0 %v585
    %607 = vmatprep.subr.bf16.mxu0 0
    %608 = vmatpush1.bf16.msra.mxu0 %v586
    %609 = vmatprep.subr.bf16.mxu0 0
    %610 = vmatpush1.bf16.msra.mxu0 %v587
    %611 = vmatprep.subr.bf16.mxu0 0
    %612 = vmatpush1.bf16.msra.mxu0 %v588
    %613 = vmatprep.subr.bf16.mxu0 0
    %614 = vmatpush1.bf16.msra.mxu0 0
    %615 = vmatprep.subr.bf16.mxu0 0
    %616 = vmatpush1.bf16.msra.mxu0 0
    %617 = vmatprep.subr.bf16.mxu0 0
    %618 = vmatpush1.bf16.msra.mxu0 0
    %619 = vmatprep.subr.bf16.mxu0 0
    %620 = vmatpush1.bf16.msra.mxu0 0
    %621 = vmatprep.subr.bf16.mxu0 0
    %622 = vmatpush1.bf16.msra.mxu0 0
    %623 = vmatprep.subr.bf16.mxu0 0
    %624 = vmatpush1.bf16.msra.mxu0 0
    %625 = vmatprep.subr.bf16.mxu0 0
    %626 = vmatpush1.bf16.msra.mxu0 0
    %627 = vmatprep.subr.bf16.mxu0 0
    %628 = vmatpush1.bf16.msra.mxu0 0
    %629 = vmatprep.mubr.bf16.mxu0 0
    %630 = vmatmul.mubr.bf16.gmra.mrb[0].mxu0 %v517
    %v631 = vpop.f32.mrb[0].mxu0
    %v632 = vadd.f32 0.0, %v631
    %v633 = vpop.f32.mrb[0].mxu0
    %v634 = vpop.f32.mrb[0].mxu0
    %v635 = vadd.f32 0.0, %v634
    %v636 = vpop.f32.mrb[0].mxu0
    %637 = vmatprep.mubr.bf16.mxu0 0
    %638 = vmatmul.mubr.bf16.gmra.mrb[0].mxu0 %v518
    %v639 = vpop.f32.mrb[0].mxu0
    %v640 = vadd.f32 0.0, %v639
    %v641 = vpop.f32.mrb[0].mxu0
    %v642 = vpop.f32.mrb[0].mxu0
    %v643 = vadd.f32 0.0, %v642
    %v644 = vpop.f32.mrb[0].mxu0
    %645 = vmatprep.mubr.bf16.mxu0 0
    %646 = vmatmul.mubr.bf16.gmra.mrb[0].mxu0 %v519
    %v647 = vpop.f32.mrb[0].mxu0
    %v648 = vadd.f32 0.0, %v647
    %v649 = vpop.f32.mrb[0].mxu0
    %v650 = vpop.f32.mrb[0].mxu0
    %v651 = vadd.f32 0.0, %v650
    %v652 = vpop.f32.mrb[0].mxu0
    %653 = vmatprep.mubr.bf16.mxu0 0
    %654 = vmatmul.mubr.bf16.gmra.mrb[0].mxu0 %v520
    %v655 = vpop.f32.mrb[0].mxu0
    %v656 = vadd.f32 0.0, %v655
    %v657 = vpop.f32.mrb[0].mxu0
    %v658 = vpop.f32.mrb[0].mxu0
    %v659 = vadd.f32 0.0, %v658
    %v660 = vpop.f32.mrb[0].mxu0
    %661 = vmatprep.mubr.bf16.mxu0 0
    %662 = vmatmul.mubr.bf16.gmra.mrb[0].mxu0 %v521
    %v663 = vpop.f32.mrb[0].mxu0
    %v664 = vadd.f32 0.0, %v663
    %v665 = vpop.f32.mrb[0].mxu0
    %v666 = vpop.f32.mrb[0].mxu0
    %v667 = vadd.f32 0.0, %v666
    %v668 = vpop.f32.mrb[0].mxu0
    %669 = vmatprep.mubr.bf16.mxu0 0
    %670 = vmatmul.mubr.bf16.gmra.mrb[0].mxu0 %v522
    %v671 = vpop.f32.mrb[0].mxu0
    %v672 = vadd.f32 0.0, %v671
    %v673 = vpop.f32.mrb[0].mxu0
    %v674 = vpop.f32.mrb[0].mxu0
    %v675 = vadd.f32 0.0, %v674
    %v676 = vpop.f32.mrb[0].mxu0
    %677 = vmatprep.mubr.bf16.mxu0 0
    %678 = vmatmul.mubr.bf16.gmra.mrb[0].mxu0 %v523
    %v679 = vpop.f32.mrb[0].mxu0
    %v680 = vadd.f32 0.0, %v679
    %v681 = vpop.f32.mrb[0].mxu0
    %v682 = vpop.f32.mrb[0].mxu0
    %v683 = vadd.f32 0.0, %v682
    %v684 = vpop.f32.mrb[0].mxu0
    %685 = vmatprep.mubr.bf16.mxu0 0
    %686 = vmatmul.mubr.bf16.gmra.mrb[0].mxu0 %v524
    %v687 = vpop.f32.mrb[0].mxu0
    %v688 = vadd.f32 0.0, %v687
    %v689 = vpop.f32.mrb[0].mxu0
    %v690 = vpop.f32.mrb[0].mxu0
    %v691 = vadd.f32 0.0, %v690
    %v692 = vpop.f32.mrb[0].mxu0
    %693 = vmatprep.mubr.bf16.mxu0 0
    %694 = vmatmul.mubr.bf16.gmra.mrb[0].mxu0 %v525
    %v695 = vpop.f32.mrb[0].mxu0
    %v696 = vadd.f32 0.0, %v695
    %v697 = vpop.f32.mrb[0].mxu0
    %v698 = vpop.f32.mrb[0].mxu0
    %v699 = vadd.f32 0.0, %v698
    %v700 = vpop.f32.mrb[0].mxu0
    %701 = vmatprep.mubr.bf16.mxu0 0
    %702 = vmatmul.mubr.bf16.gmra.mrb[0].mxu0 %v526
    %v703 = vpop.f32.mrb[0].mxu0
    %v704 = vadd.f32 0.0, %v703
    %v705 = vpop.f32.mrb[0].mxu0
    %v706 = vpop.f32.mrb[0].mxu0
    %v707 = vadd.f32 0.0, %v706
    %v708 = vpop.f32.mrb[0].mxu0
    %709 = vmatprep.mubr.bf16.mxu0 0
    %710 = vmatmul.mubr.bf16.gmra.mrb[0].mxu0 %v527
    %v711 = vpop.f32.mrb[0].mxu0
    %v712 = vadd.f32 0.0, %v711
    %v713 = vpop.f32.mrb[0].mxu0
    %v714 = vpop.f32.mrb[0].mxu0
    %v715 = vadd.f32 0.0, %v714
    %v716 = vpop.f32.mrb[0].mxu0
    %717 = vmatprep.mubr.bf16.mxu0 0
    %718 = vmatmul.mubr.bf16.gmra.mrb[0].mxu0 %v528
    %v719 = vpop.f32.mrb[0].mxu0
    %v720 = vadd.f32 0.0, %v719
    %v721 = vpop.f32.mrb[0].mxu0
    %v722 = vpop.f32.mrb[0].mxu0
    %v723 = vadd.f32 0.0, %v722
    %v724 = vpop.f32.mrb[0].mxu0
    %725 = vmatprep.mubr.bf16.mxu0 0
    %726 = vmatmul.mubr.bf16.gmra.mrb[0].mxu0 %v529
    %v727 = vpop.f32.mrb[0].mxu0
    %v728 = vadd.f32 0.0, %v727
    %v729 = vpop.f32.mrb[0].mxu0
    %v730 = vpop.f32.mrb[0].mxu0
    %v731 = vadd.f32 0.0, %v730
    %v732 = vpop.f32.mrb[0].mxu0
    %733 = vmatprep.mubr.bf16.mxu0 0
    %734 = vmatmul.mubr.bf16.gmra.mrb[0].mxu0 %v530
    %v735 = vpop.f32.mrb[0].mxu0
    %v736 = vadd.f32 0.0, %v735
    %v737 = vpop.f32.mrb[0].mxu0
    %v738 = vpop.f32.mrb[0].mxu0
    %v739 = vadd.f32 0.0, %v738
    %v740 = vpop.f32.mrb[0].mxu0
    %741 = vmatprep.mubr.bf16.mxu0 0
    %742 = vmatmul.mubr.bf16.gmra.mrb[0].mxu0 %v531
    %v743 = vpop.f32.mrb[0].mxu0
    %v744 = vadd.f32 0.0, %v743
    %v745 = vpop.f32.mrb[0].mxu0
    %v746 = vpop.f32.mrb[0].mxu0
    %v747 = vadd.f32 0.0, %v746
    %v748 = vpop.f32.mrb[0].mxu0
    %749 = vmatprep.mubr.bf16.mxu0 0
    %750 = vmatmul.mubr.bf16.gmra.mrb[0].mxu0 %v532
    %v751 = vpop.f32.mrb[0].mxu0
    %v752 = vadd.f32 0.0, %v751
    %v753 = vpop.f32.mrb[0].mxu0
    %v754 = vpop.f32.mrb[0].mxu0
    %v755 = vadd.f32 0.0, %v754
    %v756 = vpop.f32.mrb[0].mxu0
    %757 = vdwg.mxu0
    %v758 = vld [vmem:[%s3] sm:$0xff]
    %v759 = vld [vmem:[%s3 + $0x8] sm:$0xff]
    %v760 = vpack.c.bf16 %v635, %v632
    %v761 = vpack.c.bf16 %v643, %v640
    %v762 = vpack.c.bf16 %v651, %v648
    %v763 = vpack.c.bf16 %v659, %v656
    %v764 = vpack.c.bf16 %v667, %v664
    %v765 = vpack.c.bf16 %v675, %v672
    %v766 = vpack.c.bf16 %v683, %v680
    %v767 = vpack.c.bf16 %v691, %v688
    %v768 = vpack.c.bf16 %v699, %v696
    %v769 = vpack.c.bf16 %v707, %v704
    %v770 = vpack.c.bf16 %v715, %v712
    %v771 = vpack.c.bf16 %v723, %v720
    %v772 = vpack.c.bf16 %v731, %v728
    %v773 = vpack.c.bf16 %v739, %v736
    %v774 = vpack.c.bf16 %v747, %v744
    %v775 = vpack.c.bf16 %v755, %v752
    %v778 = vunpack.c.l.b16 %v758
    %v779 = vunpack.c.h.b16 %v758
    %v780 = vunpack.c.l.b16 %v759
    %v781 = vunpack.c.h.b16 %v759
    %v782 = vpack.c.b16 %v780, %v778
    %v783 = vpack.c.b16 %v781, %v779
    %786 = vmatprep.subr.bf16.mxu0 0
    %787 = vmatpush1.bf16.msra.mxu0 %v760
    %788 = vmatprep.subr.bf16.mxu0 0
    %789 = vmatpush1.bf16.msra.mxu0 %v761
    %790 = vmatprep.subr.bf16.mxu0 0
    %791 = vmatpush1.bf16.msra.mxu0 %v762
    %792 = vmatprep.subr.bf16.mxu0 0
    %793 = vmatpush1.bf16.msra.mxu0 %v763
    %794 = vmatprep.subr.bf16.mxu0 0
    %795 = vmatpush1.bf16.msra.mxu0 %v764
    %796 = vmatprep.subr.bf16.mxu0 0
    %797 = vmatpush1.bf16.msra.mxu0 %v765
    %798 = vmatprep.subr.bf16.mxu0 0
    %799 = vmatpush1.bf16.msra.mxu0 %v766
    %800 = vmatprep.subr.bf16.mxu0 0
    %801 = vmatpush1.bf16.msra.mxu0 %v767
    %802 = vmatprep.subr.bf16.mxu0 0
    %803 = vmatpush1.bf16.msra.mxu0 %v768
    %804 = vmatprep.subr.bf16.mxu0 0
    %805 = vmatpush1.bf16.msra.mxu0 %v769
    %806 = vmatprep.subr.bf16.mxu0 0
    %807 = vmatpush1.bf16.msra.mxu0 %v770
    %808 = vmatprep.subr.bf16.mxu0 0
    %809 = vmatpush1.bf16.msra.mxu0 %v771
    %810 = vmatprep.subr.bf16.mxu0 0
    %811 = vmatpush1.bf16.msra.mxu0 %v772
    %812 = vmatprep.subr.bf16.mxu0 0
    %813 = vmatpush1.bf16.msra.mxu0 %v773
    %814 = vmatprep.subr.bf16.mxu0 0
    %815 = vmatpush1.bf16.msra.mxu0 %v774
    %816 = vmatprep.subr.bf16.mxu0 0
    %817 = vmatpush1.bf16.msra.mxu0 %v775
    %818 = vmatprep.mubr.bf16.mxu0 %v783
    %819 = vmatmul.mubr.bf16.gmra.mrb[0].mxu0 %v782
    %v820 = vpop.f32.mrb[0].mxu0
    %v821 = vadd.f32 0.0, %v820
    %v822 = vpop.f32.mrb[0].mxu0
    %v823 = vpop.f32.mrb[0].mxu0
    %v824 = vadd.f32 0.0, %v823
    %v825 = vpop.f32.mrb[0].mxu0
    %826 = vdwg.mxu0
    %v827 = vmax.f32 %v821, 1.0
    %v828 = vmax.f32 %v824, 1.0
    %830 = vset.pattern.permute.xlu0 32
    %831 = vperm.xlu0 %830, %v827
    %v832 = vpop.permute.xlu0 %831
    %835 = vset.pattern.permute.xlu0 32
    %836 = vperm.xlu0 %835, %v828
    %v837 = vpop.permute.xlu0 %836
    %v839 = vrcp.pop %v832
    %v840 = vmul.f32 %v821, %v839
    %v841 = vrcp.pop %v837
    %v842 = vmul.f32 %v824, %v841
    %v843 = vpack.c.bf16 %v842, %v840
    %v844 = vld [vmem:[%s6] sm:$0xf]
    %v845 = vld [vmem:[%s6 + $0x4] sm:$0xf]
    %v846 = vld [vmem:[%s6 + $0x8] sm:$0xf]
    %v847 = vld [vmem:[%s6 + $0xc] sm:$0xf]
    %v848 = vld [vmem:[%s7] sm:$0x1]
    %v850 = vlaneseq
    %v851 = vshrl.u32 %v850, 7
    %v852 = vsub.s32 0, %v851
    %v853 = vrot.slane %v848, %v852
    %v859 = vunpack.c.l.b16 %v844
    %v860 = vunpack.c.l.b16 %v845
    %v861 = vunpack.c.l.b16 %v846
    %v862 = vunpack.c.l.b16 %v847
    %v863 = vpack.c.b16 %v860, %v859
    %v864 = vpack.c.b16 %v862, %v861
    %vm867 = vcmask 261120
    %v869 = vsel %vm867, %v843, 0
    %871 = vmatprep.subr.bf16.mxu0 0
    %872 = vmatpush1.bf16.msra.mxu0 %v863
    %873 = vmatprep.subr.bf16.mxu0 0
    %874 = vmatpush1.bf16.msra.mxu0 %v864
    %875 = vmatprep.subr.bf16.mxu0 0
    %876 = vmatpush1.bf16.msra.mxu0 0
    %877 = vmatprep.subr.bf16.mxu0 0
    %878 = vmatpush1.bf16.msra.mxu0 0
    %879 = vmatprep.subr.bf16.mxu0 0
    %880 = vmatpush1.bf16.msra.mxu0 0
    %881 = vmatprep.subr.bf16.mxu0 0
    %882 = vmatpush1.bf16.msra.mxu0 0
    %883 = vmatprep.subr.bf16.mxu0 0
    %884 = vmatpush1.bf16.msra.mxu0 0
    %885 = vmatprep.subr.bf16.mxu0 0
    %886 = vmatpush1.bf16.msra.mxu0 0
    %887 = vmatprep.subr.bf16.mxu0 0
    %888 = vmatpush1.bf16.msra.mxu0 0
    %889 = vmatprep.subr.bf16.mxu0 0
    %890 = vmatpush1.bf16.msra.mxu0 0
    %891 = vmatprep.subr.bf16.mxu0 0
    %892 = vmatpush1.bf16.msra.mxu0 0
    %893 = vmatprep.subr.bf16.mxu0 0
    %894 = vmatpush1.bf16.msra.mxu0 0
    %895 = vmatprep.subr.bf16.mxu0 0
    %896 = vmatpush1.bf16.msra.mxu0 0
    %897 = vmatprep.subr.bf16.mxu0 0
    %898 = vmatpush1.bf16.msra.mxu0 0
    %899 = vmatprep.subr.bf16.mxu0 0
    %900 = vmatpush1.bf16.msra.mxu0 0
    %901 = vmatprep.subr.bf16.mxu0 0
    %902 = vmatpush1.bf16.msra.mxu0 0
    %903 = vmatprep.mubr.bf16.mxu0 0
    %904 = vmatmul.mubr.bf16.gmra.mrb[0].mxu0 %v869
    %v905 = vpop.f32.mrb[0].mxu0
    %v906 = vadd.f32 %v853, %v905
    %v907 = vpop.f32.mrb[0].mxu0
    %v908 = vpop.f32.mrb[0].mxu0
    %v909 = vadd.f32 %v853, %v908
    %v910 = vpop.f32.mrb[0].mxu0
    %911 = vdwg.mxu0
    %v912 = vld [vmem:[%s4] sm:$0xf]
    %v913 = vld [vmem:[%s4 + $0x4] sm:$0xf]
    %v914 = vpack.c.bf16 %v909, %v906
    %v917 = vunpack.c.l.b16 %v912
    %v918 = vunpack.c.l.b16 %v913
    %v919 = vpack.c.b16 %v918, %v917
    %vm920 = vcmask 130048
    %v922 = vsel %vm920, %v919, 0
    %924 = vmatprep.subr.bf16.mxu0 0
    %925 = vmatpush1.bf16.msra.mxu0 %v914
    %926 = vmatprep.subr.bf16.mxu0 0
    %927 = vmatpush1.bf16.msra.mxu0 0
    %928 = vmatprep.subr.bf16.mxu0 0
    %929 = vmatpush1.bf16.msra.mxu0 0
    %930 = vmatprep.subr.bf16.mxu0 0
    %931 = vmatpush1.bf16.msra.mxu0 0
    %932 = vmatprep.subr.bf16.mxu0 0
    %933 = vmatpush1.bf16.msra.mxu0 0
    %934 = vmatprep.subr.bf16.mxu0 0
    %935 = vmatpush1.bf16.msra.mxu0 0
    %936 = vmatprep.subr.bf16.mxu0 0
    %937 = vmatpush1.bf16.msra.mxu0 0
    %938 = vmatprep.subr.bf16.mxu0 0
    %939 = vmatpush1.bf16.msra.mxu0 0
    %940 = vmatprep.subr.bf16.mxu0 0
    %941 = vmatpush1.bf16.msra.mxu0 0
    %942 = vmatprep.subr.bf16.mxu0 0
    %943 = vmatpush1.bf16.msra.mxu0 0
    %944 = vmatprep.subr.bf16.mxu0 0
    %945 = vmatpush1.bf16.msra.mxu0 0
    %946 = vmatprep.subr.bf16.mxu0 0
    %947 = vmatpush1.bf16.msra.mxu0 0
    %948 = vmatprep.subr.bf16.mxu0 0
    %949 = vmatpush1.bf16.msra.mxu0 0
    %950 = vmatprep.subr.bf16.mxu0 0
    %951 = vmatpush1.bf16.msra.mxu0 0
    %952 = vmatprep.subr.bf16.mxu0 0
    %953 = vmatpush1.bf16.msra.mxu0 0
    %954 = vmatprep.subr.bf16.mxu0 0
    %955 = vmatpush1.bf16.msra.mxu0 0
    %956 = vmatprep.mubr.bf16.mxu0 0
    %957 = vmatmul.mubr.bf16.gmra.mrb[0].mxu0 %v922
    %v958 = vpop.f32.mrb[0].mxu0
    %v959 = vadd.f32 0.0, %v958
    %v960 = vpop.f32.mrb[0].mxu0
    %v961 = vpop.f32.mrb[0].mxu0
    %v962 = vadd.f32 0.0, %v961
    %v963 = vpop.f32.mrb[0].mxu0
    %964 = vdwg.mxu0
    %967 = vrot.lane.b32.xlu0 %v959, 32
    %v968 = vpop.permute.xlu0 %967
    %969 = vrot.lane.b32.xlu0 %v962, 32
    %v970 = vpop.permute.xlu0 %969
    %v973 = vsel %vm867, %v906, %v968
    %v974 = vsel %vm867, %v909, %v970
    %v975 = vpack.c.bf16 %v974, %v973
    %v976 = vld [vmem:[%s8] sm:$0xf]
    %v977 = vld [vmem:[%s8 + $0x4] sm:$0xf]
    %v978 = vld [vmem:[%s8 + $0x8] sm:$0xf]
    %v979 = vld [vmem:[%s8 + $0xc] sm:$0xf]
    %v980 = vld [vmem:[%s8 + $0x10] sm:$0xf]
    %v981 = vld [vmem:[%s8 + $0x14] sm:$0xf]
    %v982 = vld [vmem:[%s8 + $0x18] sm:$0xf]
    %v983 = vld [vmem:[%s8 + $0x1c] sm:$0xf]
    %v984 = vld [vmem:[%s10] sm:$0x1]
    %v986 = vlaneseq
    %v987 = vshrl.u32 %v986, 7
    %v988 = vsub.s32 0, %v987
    %v989 = vrot.slane %v984, %v988
    %v999 = vunpack.c.l.b16 %v976
    %v1000 = vunpack.c.l.b16 %v977
    %v1001 = vunpack.c.l.b16 %v978
    %v1002 = vunpack.c.l.b16 %v979
    %v1003 = vunpack.c.l.b16 %v980
    %v1004 = vunpack.c.l.b16 %v981
    %v1005 = vunpack.c.l.b16 %v982
    %v1006 = vunpack.c.l.b16 %v983
    %v1007 = vpack.c.b16 %v1000, %v999
    %v1008 = vpack.c.b16 %v1002, %v1001
    %v1009 = vpack.c.b16 %v1004, %v1003
    %v1010 = vpack.c.b16 %v1006, %v1005
    %vm1015 = vcmask 523264
    %v1017 = vsel %vm1015, %v975, 0
    %1019 = vmatprep.subr.bf16.mxu0 0
    %1020 = vmatpush1.bf16.msra.mxu0 %v1007
    %1021 = vmatprep.subr.bf16.mxu0 0
    %1022 = vmatpush1.bf16.msra.mxu0 %v1008
    %1023 = vmatprep.subr.bf16.mxu0 0
    %1024 = vmatpush1.bf16.msra.mxu0 %v1009
    %1025 = vmatprep.subr.bf16.mxu0 0
    %1026 = vmatpush1.bf16.msra.mxu0 %v1010
    %1027 = vmatprep.subr.bf16.mxu0 0
    %1028 = vmatpush1.bf16.msra.mxu0 0
    %1029 = vmatprep.subr.bf16.mxu0 0
    %1030 = vmatpush1.bf16.msra.mxu0 0
    %1031 = vmatprep.subr.bf16.mxu0 0
    %1032 = vmatpush1.bf16.msra.mxu0 0
    %1033 = vmatprep.subr.bf16.mxu0 0
    %1034 = vmatpush1.bf16.msra.mxu0 0
    %1035 = vmatprep.subr.bf16.mxu0 0
    %1036 = vmatpush1.bf16.msra.mxu0 0
    %1037 = vmatprep.subr.bf16.mxu0 0
    %1038 = vmatpush1.bf16.msra.mxu0 0
    %1039 = vmatprep.subr.bf16.mxu0 0
    %1040 = vmatpush1.bf16.msra.mxu0 0
    %1041 = vmatprep.subr.bf16.mxu0 0
    %1042 = vmatpush1.bf16.msra.mxu0 0
    %1043 = vmatprep.subr.bf16.mxu0 0
    %1044 = vmatpush1.bf16.msra.mxu0 0
    %1045 = vmatprep.subr.bf16.mxu0 0
    %1046 = vmatpush1.bf16.msra.mxu0 0
    %1047 = vmatprep.subr.bf16.mxu0 0
    %1048 = vmatpush1.bf16.msra.mxu0 0
    %1049 = vmatprep.subr.bf16.mxu0 0
    %1050 = vmatpush1.bf16.msra.mxu0 0
    %1051 = vmatprep.mubr.bf16.mxu0 0
    %1052 = vmatmul.mubr.bf16.gmra.mrb[0].mxu0 %v1017
    %v1053 = vpop.f32.mrb[0].mxu0
    %v1054 = vadd.f32 %v989, %v1053
    %v1055 = vpop.f32.mrb[0].mxu0
    %v1056 = vpop.f32.mrb[0].mxu0
    %v1057 = vadd.f32 %v989, %v1056
    %v1058 = vpop.f32.mrb[0].mxu0
    %1059 = vdwg.mxu0
    %v1060 = vld [vmem:[%s9] sm:$0xf]
    %v1061 = vld [vmem:[%s9 + $0x4] sm:$0xf]
    %v1062 = vld [vmem:[%s9 + $0x8] sm:$0xf]
    %v1063 = vld [vmem:[%s9 + $0xc] sm:$0xf]
    %v1064 = vld [vmem:[%s11] sm:$0x3]
    %v1069 = vunpack.c.l.b16 %v1060
    %v1070 = vunpack.c.l.b16 %v1061
    %v1071 = vunpack.c.l.b16 %v1062
    %v1072 = vunpack.c.l.b16 %v1063
    %v1073 = vpack.c.b16 %v1070, %v1069
    %v1074 = vpack.c.b16 %v1072, %v1071
    %v1078 = vsel %vm867, 0, 0
    %1080 = vmatprep.subr.bf16.mxu0 0
    %1081 = vmatpush1.bf16.msra.mxu0 %v1073
    %1082 = vmatprep.subr.bf16.mxu0 0
    %1083 = vmatpush1.bf16.msra.mxu0 %v1074
    %1084 = vmatprep.subr.bf16.mxu0 0
    %1085 = vmatpush1.bf16.msra.mxu0 0
    %1086 = vmatprep.subr.bf16.mxu0 0
    %1087 = vmatpush1.bf16.msra.mxu0 0
    %1088 = vmatprep.subr.bf16.mxu0 0
    %1089 = vmatpush1.bf16.msra.mxu0 0
    %1090 = vmatprep.subr.bf16.mxu0 0
    %1091 = vmatpush1.bf16.msra.mxu0 0
    %1092 = vmatprep.subr.bf16.mxu0 0
    %1093 = vmatpush1.bf16.msra.mxu0 0
    %1094 = vmatprep.subr.bf16.mxu0 0
    %1095 = vmatpush1.bf16.msra.mxu0 0
    %1096 = vmatprep.subr.bf16.mxu0 0
    %1097 = vmatpush1.bf16.msra.mxu0 0
    %1098 = vmatprep.subr.bf16.mxu0 0
    %1099 = vmatpush1.bf16.msra.mxu0 0
    %1100 = vmatprep.subr.bf16.mxu0 0
    %1101 = vmatpush1.bf16.msra.mxu0 0
    %1102 = vmatprep.subr.bf16.mxu0 0
    %1103 = vmatpush1.bf16.msra.mxu0 0
    %1104 = vmatprep.subr.bf16.mxu0 0
    %1105 = vmatpush1.bf16.msra.mxu0 0
    %1106 = vmatprep.subr.bf16.mxu0 0
    %1107 = vmatpush1.bf16.msra.mxu0 0
    %1108 = vmatprep.subr.bf16.mxu0 0
    %1109 = vmatpush1.bf16.msra.mxu0 0
    %1110 = vmatprep.subr.bf16.mxu0 0
    %1111 = vmatpush1.bf16.msra.mxu0 0
    %1112 = vmatprep.mubr.bf16.mxu0 0
    %1113 = vmatmul.mubr.bf16.gmra.mrb[0].mxu0 %v1078
    %v1114 = vpop.f32.mrb[0].mxu0
    %v1115 = vadd.f32 0.0, %v1114
    %v1116 = vpop.f32.mrb[0].mxu0
    %v1117 = vpop.f32.mrb[0].mxu0
    %v1118 = vpop.f32.mrb[0].mxu0
    %1119 = vdwg.mxu0
    %v1120 = vadd.f32 %v1054, %v1115
    %v1121 = vxor.u32 %v1120, 2147483648
    %v1122 = vmul.f32 %v1121, 1.442695
    %v1123 = vpow.pop %v1122
    %v1124 = vadd.f32 %v1123, 1.0
    %v1125 = vrcp.pop %v1124
    %v1126 = vmul.f32 1.0, %v1125
    %1128 = vrot.lane.b32.xlu0 %v1064, 64
    %v1129 = vpop.permute.xlu0 %1128
    %v1131 = vadd.f32 %v1115, %v1129
    %1133 = vrot.lane.b32.xlu0 %v1131, 64
    %v1134 = vpop.permute.xlu0 %1133
    %v1136 = vmul.f32 %v1126, %v1134
    %1138 = vrot.lane.b32.xlu0 %v1136, 64
    %v1139 = vpop.permute.xlu0 %1138
    %v1141 = vadd.f32 %v1054, %v1139
    %v1142 = vtanh.pop %v1141
    %v1143 = vsub.f32 1.0, %v1126
    %1145 = vrot.lane.b32.xlu0 %v1142, 96
    %v1146 = vpop.permute.xlu0 %1145
    %v1148 = vmul.f32 %v1143, %v1146
    %v1149 = vmul.f32 %v1126, 0.0
    %v1150 = vadd.f32 %v1148, %v1149
    %1152 = vrot.lane.b32.xlu0 %v1150, 96
    %v1153 = vpop.permute.xlu0 %1152
    %vm1155 = vcmask 254976
    %1156 = vst.msk [vmem:[#allocation2] sm:$0x3] %vm1155, %v1153
    %v1157 = vpack.c.bf16 %v1150, %v1150
    %1159 = vrot.lane.b32.xlu0 %v1157, 96
    %v1160 = vpop.permute.xlu0 %1159
    %v1162 = vsel %vm867, %v1160, 0
    %1164 = vmatprep.subr.bf16.mxu0 0
    %1165 = vmatpush1.bf16.msra.mxu0 %v1073
    %1166 = vmatprep.subr.bf16.mxu0 0
    %1167 = vmatpush1.bf16.msra.mxu0 %v1074
    %1168 = vmatprep.subr.bf16.mxu0 0
    %1169 = vmatpush1.bf16.msra.mxu0 0
    %1170 = vmatprep.subr.bf16.mxu0 0
    %1171 = vmatpush1.bf16.msra.mxu0 0
    %1172 = vmatprep.subr.bf16.mxu0 0
    %1173 = vmatpush1.bf16.msra.mxu0 0
    %1174 = vmatprep.subr.bf16.mxu0 0
    %1175 = vmatpush1.bf16.msra.mxu0 0
    %1176 = vmatprep.subr.bf16.mxu0 0
    %1177 = vmatpush1.bf16.msra.mxu0 0
    %1178 = vmatprep.subr.bf16.mxu0 0
    %1179 = vmatpush1.bf16.msra.mxu0 0
    %1180 = vmatprep.subr.bf16.mxu0 0
    %1181 = vmatpush1.bf16.msra.mxu0 0
    %1182 = vmatprep.subr.bf16.mxu0 0
    %1183 = vmatpush1.bf16.msra.mxu0 0
    %1184 = vmatprep.subr.bf16.mxu0 0
    %1185 = vmatpush1.bf16.msra.mxu0 0
    %1186 = vmatprep.subr.bf16.mxu0 0
    %1187 = vmatpush1.bf16.msra.mxu0 0
    %1188 = vmatprep.subr.bf16.mxu0 0
    %1189 = vmatpush1.bf16.msra.mxu0 0
    %1190 = vmatprep.subr.bf16.mxu0 0
    %1191 = vmatpush1.bf16.msra.mxu0 0
    %1192 = vmatprep.subr.bf16.mxu0 0
    %1193 = vmatpush1.bf16.msra.mxu0 0
    %1194 = vmatprep.subr.bf16.mxu0 0
    %1195 = vmatpush1.bf16.msra.mxu0 0
    %1196 = vmatprep.mubr.bf16.mxu0 0
    %1197 = vmatmul.mubr.bf16.gmra.mrb[0].mxu0 %v1162
    %v1198 = vpop.f32.mrb[0].mxu0
    %v1199 = vadd.f32 0.0, %v1198
    %v1200 = vpop.f32.mrb[0].mxu0
    %v1201 = vpop.f32.mrb[0].mxu0
    %v1202 = vpop.f32.mrb[0].mxu0
    %1203 = vdwg.mxu0
    %v1205 = vrot.slane %v1199, 6
    %v1207 = vadd.f32 %v1054, %v1205
    %v1208 = vxor.u32 %v1207, 2147483648
    %v1209 = vmul.f32 %v1208, 1.442695
    %v1210 = vpow.pop %v1209
    %v1211 = vadd.f32 %v1210, 1.0
    %v1212 = vrcp.pop %v1211
    %v1213 = vmul.f32 1.0, %v1212
    %v1214 = vadd.f32 %v1199, %v1129
    %v1216 = vrot.slane %v1214, 6
    %1217 = vrot.lane.b32.xlu0 %v1216, 64
    %v1218 = vpop.permute.xlu0 %1217
    %v1220 = vmul.f32 %v1213, %v1218
    %1222 = vrot.lane.b32.xlu0 %v1220, 64
    %v1223 = vpop.permute.xlu0 %1222
    %v1225 = vadd.f32 %v1054, %v1223
    %v1226 = vtanh.pop %v1225
    %v1227 = vsub.f32 1.0, %v1213
    %1229 = vrot.lane.b32.xlu0 %v1226, 96
    %v1230 = vpop.permute.xlu0 %1229
    %v1232 = vmul.f32 %v1227, %v1230
    %v1233 = vrot.slane %v1150, 6
    %v1235 = vmul.f32 %v1213, %v1233
    %v1236 = vadd.f32 %v1232, %v1235
    %1238 = vrot.lane.b32.xlu0 %v1236, 96
    %v1239 = vpop.permute.xlu0 %1238
    %vm1241 = vcmask 257026
    %1242 = vst.msk [vmem:[#allocation2] sm:$0xc] %vm1241, %v1239
    %v1243 = vpack.c.bf16 %v1236, %v1236
    %v1245 = vrot.slane %v1243, 1
    %1246 = vrot.lane.b32.xlu0 %v1245, 96
    %v1247 = vpop.permute.xlu0 %1246
    %v1249 = vsel %vm867, %v1247, 0
    %1251 = vmatprep.subr.bf16.mxu0 0
    %1252 = vmatpush1.bf16.msra.mxu0 %v1073
    %1253 = vmatprep.subr.bf16.mxu0 0
    %1254 = vmatpush1.bf16.msra.mxu0 %v1074
    %1255 = vmatprep.subr.bf16.mxu0 0
    %1256 = vmatpush1.bf16.msra.mxu0 0
    %1257 = vmatprep.subr.bf16.mxu0 0
    %1258 = vmatpush1.bf16.msra.mxu0 0
    %1259 = vmatprep.subr.bf16.mxu0 0
    %1260 = vmatpush1.bf16.msra.mxu0 0
    %1261 = vmatprep.subr.bf16.mxu0 0
    %1262 = vmatpush1.bf16.msra.mxu0 0
    %1263 = vmatprep.subr.bf16.mxu0 0
    %1264 = vmatpush1.bf16.msra.mxu0 0
    %1265 = vmatprep.subr.bf16.mxu0 0
    %1266 = vmatpush1.bf16.msra.mxu0 0
    %1267 = vmatprep.subr.bf16.mxu0 0
    %1268 = vmatpush1.bf16.msra.mxu0 0
    %1269 = vmatprep.subr.bf16.mxu0 0
    %1270 = vmatpush1.bf16.msra.mxu0 0
    %1271 = vmatprep.subr.bf16.mxu0 0
    %1272 = vmatpush1.bf16.msra.mxu0 0
    %1273 = vmatprep.subr.bf16.mxu0 0
    %1274 = vmatpush1.bf16.msra.mxu0 0
    %1275 = vmatprep.subr.bf16.mxu0 0
    %1276 = vmatpush1.bf16.msra.mxu0 0
    %1277 = vmatprep.subr.bf16.mxu0 0
    %1278 = vmatpush1.bf16.msra.mxu0 0
    %1279 = vmatprep.subr.bf16.mxu0 0
    %1280 = vmatpush1.bf16.msra.mxu0 0
    %1281 = vmatprep.subr.bf16.mxu0 0
    %1282 = vmatpush1.bf16.msra.mxu0 0
    %1283 = vmatprep.mubr.bf16.mxu0 0
    %1284 = vmatmul.mubr.bf16.gmra.mrb[0].mxu0 %v1249
    %v1285 = vpop.f32.mrb[0].mxu0
    %v1286 = vadd.f32 0.0, %v1285
    %v1287 = vpop.f32.mrb[0].mxu0
    %v1288 = vpop.f32.mrb[0].mxu0
    %v1289 = vpop.f32.mrb[0].mxu0
    %1290 = vdwg.mxu0
    %v1292 = vrot.slane %v1286, 4
    %v1294 = vadd.f32 %v1054, %v1292
    %v1295 = vxor.u32 %v1294, 2147483648
    %v1296 = vmul.f32 %v1295, 1.442695
    %v1297 = vpow.pop %v1296
    %v1298 = vadd.f32 %v1297, 1.0
    %v1299 = vrcp.pop %v1298
    %v1300 = vmul.f32 1.0, %v1299
    %v1301 = vadd.f32 %v1286, %v1129
    %v1303 = vrot.slane %v1301, 4
    %1304 = vrot.lane.b32.xlu0 %v1303, 64
    %v1305 = vpop.permute.xlu0 %1304
    %v1307 = vmul.f32 %v1300, %v1305
    %1309 = vrot.lane.b32.xlu0 %v1307, 64
    %v1310 = vpop.permute.xlu0 %1309
    %v1312 = vadd.f32 %v1054, %v1310
    %v1313 = vtanh.pop %v1312
    %v1314 = vsub.f32 1.0, %v1300
    %1316 = vrot.lane.b32.xlu0 %v1313, 96
    %v1317 = vpop.permute.xlu0 %1316
    %v1319 = vmul.f32 %v1314, %v1317
    %v1320 = vrot.slane %v1236, 6
    %v1322 = vmul.f32 %v1300, %v1320
    %v1323 = vadd.f32 %v1319, %v1322
    %1325 = vrot.lane.b32.xlu0 %v1323, 96
    %v1326 = vpop.permute.xlu0 %1325
    %vm1328 = vcmask 259076
    %1329 = vst.msk [vmem:[#allocation2] sm:$0x30] %vm1328, %v1326
    %v1330 = vpack.c.bf16 %v1323, %v1323
    %v1332 = vrot.slane %v1330, 2
    %1333 = vrot.lane.b32.xlu0 %v1332, 96
    %v1334 = vpop.permute.xlu0 %1333
    %v1336 = vsel %vm867, %v1334, 0
    %1338 = vmatprep.subr.bf16.mxu0 0
    %1339 = vmatpush1.bf16.msra.mxu0 %v1073
    %1340 = vmatprep.subr.bf16.mxu0 0
    %1341 = vmatpush1.bf16.msra.mxu0 %v1074
    %1342 = vmatprep.subr.bf16.mxu0 0
    %1343 = vmatpush1.bf16.msra.mxu0 0
    %1344 = vmatprep.subr.bf16.mxu0 0
    %1345 = vmatpush1.bf16.msra.mxu0 0
    %1346 = vmatprep.subr.bf16.mxu0 0
    %1347 = vmatpush1.bf16.msra.mxu0 0
    %1348 = vmatprep.subr.bf16.mxu0 0
    %1349 = vmatpush1.bf16.msra.mxu0 0
    %1350 = vmatprep.subr.bf16.mxu0 0
    %1351 = vmatpush1.bf16.msra.mxu0 0
    %1352 = vmatprep.subr.bf16.mxu0 0
    %1353 = vmatpush1.bf16.msra.mxu0 0
    %1354 = vmatprep.subr.bf16.mxu0 0
    %1355 = vmatpush1.bf16.msra.mxu0 0
    %1356 = vmatprep.subr.bf16.mxu0 0
    %1357 = vmatpush1.bf16.msra.mxu0 0
    %1358 = vmatprep.subr.bf16.mxu0 0
    %1359 = vmatpush1.bf16.msra.mxu0 0
    %1360 = vmatprep.subr.bf16.mxu0 0
    %1361 = vmatpush1.bf16.msra.mxu0 0
    %1362 = vmatprep.subr.bf16.mxu0 0
    %1363 = vmatpush1.bf16.msra.mxu0 0
    %1364 = vmatprep.subr.bf16.mxu0 0
    %1365 = vmatpush1.bf16.msra.mxu0 0
    %1366 = vmatprep.subr.bf16.mxu0 0
    %1367 = vmatpush1.bf16.msra.mxu0 0
    %1368 = vmatprep.subr.bf16.mxu0 0
    %1369 = vmatpush1.bf16.msra.mxu0 0
    %1370 = vmatprep.mubr.bf16.mxu0 0
    %1371 = vmatmul.mubr.bf16.gmra.mrb[0].mxu0 %v1336
    %v1372 = vpop.f32.mrb[0].mxu0
    %v1373 = vadd.f32 0.0, %v1372
    %v1374 = vpop.f32.mrb[0].mxu0
    %v1375 = vpop.f32.mrb[0].mxu0
    %v1376 = vpop.f32.mrb[0].mxu0
    %1377 = vdwg.mxu0
    %v1379 = vrot.slane %v1373, 2
    %v1381 = vadd.f32 %v1054, %v1379
    %v1382 = vxor.u32 %v1381, 2147483648
    %v1383 = vmul.f32 %v1382, 1.442695
    %v1384 = vpow.pop %v1383
    %v1385 = vadd.f32 %v1384, 1.0
    %v1386 = vrcp.pop %v1385
    %v1387 = vmul.f32 1.0, %v1386
    %v1388 = vadd.f32 %v1373, %v1129
    %v1390 = vrot.slane %v1388, 2
    %1391 = vrot.lane.b32.xlu0 %v1390, 64
    %v1392 = vpop.permute.xlu0 %1391
    %v1394 = vmul.f32 %v1387, %v1392
    %1396 = vrot.lane.b32.xlu0 %v1394, 64
    %v1397 = vpop.permute.xlu0 %1396
    %v1399 = vadd.f32 %v1054, %v1397
    %v1400 = vtanh.pop %v1399
    %v1401 = vsub.f32 1.0, %v1387
    %1403 = vrot.lane.b32.xlu0 %v1400, 96
    %v1404 = vpop.permute.xlu0 %1403
    %v1406 = vmul.f32 %v1401, %v1404
    %v1407 = vrot.slane %v1323, 6
    %v1409 = vmul.f32 %v1387, %v1407
    %v1410 = vadd.f32 %v1406, %v1409
    %1412 = vrot.lane.b32.xlu0 %v1410, 96
    %v1413 = vpop.permute.xlu0 %1412
    %vm1415 = vcmask 261126
    %1416 = vst.msk [vmem:[#allocation2] sm:$0xc0] %vm1415, %v1413
    %v1417 = vpack.c.bf16 %v1410, %v1410
    %v1419 = vrot.slane %v1417, 3
    %1420 = vrot.lane.b32.xlu0 %v1419, 96
    %v1421 = vpop.permute.xlu0 %1420
    %v1423 = vsel %vm867, %v1421, 0
    %1425 = vmatprep.subr.bf16.mxu0 0
    %1426 = vmatpush1.bf16.msra.mxu0 %v1073
    %1427 = vmatprep.subr.bf16.mxu0 0
    %1428 = vmatpush1.bf16.msra.mxu0 %v1074
    %1429 = vmatprep.subr.bf16.mxu0 0
    %1430 = vmatpush1.bf16.msra.mxu0 0
    %1431 = vmatprep.subr.bf16.mxu0 0
    %1432 = vmatpush1.bf16.msra.mxu0 0
    %1433 = vmatprep.subr.bf16.mxu0 0
    %1434 = vmatpush1.bf16.msra.mxu0 0
    %1435 = vmatprep.subr.bf16.mxu0 0
    %1436 = vmatpush1.bf16.msra.mxu0 0
    %1437 = vmatprep.subr.bf16.mxu0 0
    %1438 = vmatpush1.bf16.msra.mxu0 0
    %1439 = vmatprep.subr.bf16.mxu0 0
    %1440 = vmatpush1.bf16.msra.mxu0 0
    %1441 = vmatprep.subr.bf16.mxu0 0
    %1442 = vmatpush1.bf16.msra.mxu0 0
    %1443 = vmatprep.subr.bf16.mxu0 0
    %1444 = vmatpush1.bf16.msra.mxu0 0
    %1445 = vmatprep.subr.bf16.mxu0 0
    %1446 = vmatpush1.bf16.msra.mxu0 0
    %1447 = vmatprep.subr.bf16.mxu0 0
    %1448 = vmatpush1.bf16.msra.mxu0 0
    %1449 = vmatprep.subr.bf16.mxu0 0
    %1450 = vmatpush1.bf16.msra.mxu0 0
    %1451 = vmatprep.subr.bf16.mxu0 0
    %1452 = vmatpush1.bf16.msra.mxu0 0
    %1453 = vmatprep.subr.bf16.mxu0 0
    %1454 = vmatpush1.bf16.msra.mxu0 0
    %1455 = vmatprep.subr.bf16.mxu0 0
    %1456 = vmatpush1.bf16.msra.mxu0 0
    %1457 = vmatprep.mubr.bf16.mxu0 0
    %1458 = vmatmul.mubr.bf16.gmra.mrb[0].mxu0 %v1423
    %v1459 = vpop.f32.mrb[0].mxu0
    %v1460 = vadd.f32 0.0, %v1459
    %v1461 = vpop.f32.mrb[0].mxu0
    %v1462 = vpop.f32.mrb[0].mxu0
    %v1463 = vpop.f32.mrb[0].mxu0
    %1464 = vdwg.mxu0
    %v1465 = vadd.f32 %v1057, %v1460
    %v1466 = vxor.u32 %v1465, 2147483648
    %v1467 = vmul.f32 %v1466, 1.442695
    %v1468 = vpow.pop %v1467
    %v1469 = vadd.f32 %v1468, 1.0
    %v1470 = vrcp.pop %v1469
    %v1471 = vmul.f32 1.0, %v1470
    %v1472 = vadd.f32 %v1460, %v1129
    %1474 = vrot.lane.b32.xlu0 %v1472, 64
    %v1475 = vpop.permute.xlu0 %1474
    %v1477 = vmul.f32 %v1471, %v1475
    %1479 = vrot.lane.b32.xlu0 %v1477, 64
    %v1480 = vpop.permute.xlu0 %1479
    %v1482 = vadd.f32 %v1057, %v1480
    %v1483 = vtanh.pop %v1482
    %v1484 = vsub.f32 1.0, %v1471
    %1486 = vrot.lane.b32.xlu0 %v1483, 96
    %v1487 = vpop.permute.xlu0 %1486
    %v1489 = vmul.f32 %v1484, %v1487
    %v1490 = vrot.slane %v1410, 6
    %v1492 = vmul.f32 %v1471, %v1490
    %v1493 = vadd.f32 %v1489, %v1492
    %1495 = vrot.lane.b32.xlu0 %v1493, 96
    %v1496 = vpop.permute.xlu0 %1495
    %1498 = vst.msk [vmem:[#allocation2 + $0x8] sm:$0x3] %vm1155, %v1496
    %v1499 = vpack.c.bf16 %v1493, %v1493
    %1501 = vrot.lane.b32.xlu0 %v1499, 96
    %v1502 = vpop.permute.xlu0 %1501
    %v1504 = vsel %vm867, %v1502, 0
    %1506 = vmatprep.subr.bf16.mxu0 0
    %1507 = vmatpush1.bf16.msra.mxu0 %v1073
    %1508 = vmatprep.subr.bf16.mxu0 0
    %1509 = vmatpush1.bf16.msra.mxu0 %v1074
    %1510 = vmatprep.subr.bf16.mxu0 0
    %1511 = vmatpush1.bf16.msra.mxu0 0
    %1512 = vmatprep.subr.bf16.mxu0 0
    %1513 = vmatpush1.bf16.msra.mxu0 0
    %1514 = vmatprep.subr.bf16.mxu0 0
    %1515 = vmatpush1.bf16.msra.mxu0 0
    %1516 = vmatprep.subr.bf16.mxu0 0
    %1517 = vmatpush1.bf16.msra.mxu0 0
    %1518 = vmatprep.subr.bf16.mxu0 0
    %1519 = vmatpush1.bf16.msra.mxu0 0
    %1520 = vmatprep.subr.bf16.mxu0 0
    %1521 = vmatpush1.bf16.msra.mxu0 0
    %1522 = vmatprep.subr.bf16.mxu0 0
    %1523 = vmatpush1.bf16.msra.mxu0 0
    %1524 = vmatprep.subr.bf16.mxu0 0
    %1525 = vmatpush1.bf16.msra.mxu0 0
    %1526 = vmatprep.subr.bf16.mxu0 0
    %1527 = vmatpush1.bf16.msra.mxu0 0
    %1528 = vmatprep.subr.bf16.mxu0 0
    %1529 = vmatpush1.bf16.msra.mxu0 0
    %1530 = vmatprep.subr.bf16.mxu0 0
    %1531 = vmatpush1.bf16.msra.mxu0 0
    %1532 = vmatprep.subr.bf16.mxu0 0
    %1533 = vmatpush1.bf16.msra.mxu0 0
    %1534 = vmatprep.subr.bf16.mxu0 0
    %1535 = vmatpush1.bf16.msra.mxu0 0
    %1536 = vmatprep.subr.bf16.mxu0 0
    %1537 = vmatpush1.bf16.msra.mxu0 0
    %1538 = vmatprep.mubr.bf16.mxu0 0
    %1539 = vmatmul.mubr.bf16.gmra.mrb[0].mxu0 %v1504
    %v1540 = vpop.f32.mrb[0].mxu0
    %v1541 = vadd.f32 0.0, %v1540
    %v1542 = vpop.f32.mrb[0].mxu0
    %v1543 = vpop.f32.mrb[0].mxu0
    %v1544 = vpop.f32.mrb[0].mxu0
    %1545 = vdwg.mxu0
    %v1547 = vrot.slane %v1541, 6
    %v1549 = vadd.f32 %v1057, %v1547
    %v1550 = vxor.u32 %v1549, 2147483648
    %v1551 = vmul.f32 %v1550, 1.442695
    %v1552 = vpow.pop %v1551
    %v1553 = vadd.f32 %v1552, 1.0
    %v1554 = vrcp.pop %v1553
    %v1555 = vmul.f32 1.0, %v1554
    %v1556 = vadd.f32 %v1541, %v1129
    %v1558 = vrot.slane %v1556, 6
    %1559 = vrot.lane.b32.xlu0 %v1558, 64
    %v1560 = vpop.permute.xlu0 %1559
    %v1562 = vmul.f32 %v1555, %v1560
    %1564 = vrot.lane.b32.xlu0 %v1562, 64
    %v1565 = vpop.permute.xlu0 %1564
    %v1567 = vadd.f32 %v1057, %v1565
    %v1568 = vtanh.pop %v1567
    %v1569 = vsub.f32 1.0, %v1555
    %1571 = vrot.lane.b32.xlu0 %v1568, 96
    %v1572 = vpop.permute.xlu0 %1571
    %v1574 = vmul.f32 %v1569, %v1572
    %v1575 = vrot.slane %v1493, 6
    %v1577 = vmul.f32 %v1555, %v1575
    %v1578 = vadd.f32 %v1574, %v1577
    %1580 = vrot.lane.b32.xlu0 %v1578, 96
    %v1581 = vpop.permute.xlu0 %1580
    %1583 = vst.msk [vmem:[#allocation2 + $0x8] sm:$0xc] %vm1241, %v1581
    %v1584 = vpack.c.bf16 %v1578, %v1578
    %v1586 = vrot.slane %v1584, 1
    %1587 = vrot.lane.b32.xlu0 %v1586, 96
    %v1588 = vpop.permute.xlu0 %1587
    %v1590 = vsel %vm867, %v1588, 0
    %1592 = vmatprep.subr.bf16.mxu0 0
    %1593 = vmatpush1.bf16.msra.mxu0 %v1073
    %1594 = vmatprep.subr.bf16.mxu0 0
    %1595 = vmatpush1.bf16.msra.mxu0 %v1074
    %1596 = vmatprep.subr.bf16.mxu0 0
    %1597 = vmatpush1.bf16.msra.mxu0 0
    %1598 = vmatprep.subr.bf16.mxu0 0
    %1599 = vmatpush1.bf16.msra.mxu0 0
    %1600 = vmatprep.subr.bf16.mxu0 0
    %1601 = vmatpush1.bf16.msra.mxu0 0
    %1602 = vmatprep.subr.bf16.mxu0 0
    %1603 = vmatpush1.bf16.msra.mxu0 0
    %1604 = vmatprep.subr.bf16.mxu0 0
    %1605 = vmatpush1.bf16.msra.mxu0 0
    %1606 = vmatprep.subr.bf16.mxu0 0
    %1607 = vmatpush1.bf16.msra.mxu0 0
    %1608 = vmatprep.subr.bf16.mxu0 0
    %1609 = vmatpush1.bf16.msra.mxu0 0
    %1610 = vmatprep.subr.bf16.mxu0 0
    %1611 = vmatpush1.bf16.msra.mxu0 0
    %1612 = vmatprep.subr.bf16.mxu0 0
    %1613 = vmatpush1.bf16.msra.mxu0 0
    %1614 = vmatprep.subr.bf16.mxu0 0
    %1615 = vmatpush1.bf16.msra.mxu0 0
    %1616 = vmatprep.subr.bf16.mxu0 0
    %1617 = vmatpush1.bf16.msra.mxu0 0
    %1618 = vmatprep.subr.bf16.mxu0 0
    %1619 = vmatpush1.bf16.msra.mxu0 0
    %1620 = vmatprep.subr.bf16.mxu0 0
    %1621 = vmatpush1.bf16.msra.mxu0 0
    %1622 = vmatprep.subr.bf16.mxu0 0
    %1623 = vmatpush1.bf16.msra.mxu0 0
    %1624 = vmatprep.mubr.bf16.mxu0 0
    %1625 = vmatmul.mubr.bf16.gmra.mrb[0].mxu0 %v1590
    %v1626 = vpop.f32.mrb[0].mxu0
    %v1627 = vadd.f32 0.0, %v1626
    %v1628 = vpop.f32.mrb[0].mxu0
    %v1629 = vpop.f32.mrb[0].mxu0
    %v1630 = vpop.f32.mrb[0].mxu0
    %1631 = vdwg.mxu0
    %v1633 = vrot.slane %v1627, 4
    %v1635 = vadd.f32 %v1057, %v1633
    %v1636 = vxor.u32 %v1635, 2147483648
    %v1637 = vmul.f32 %v1636, 1.442695
    %v1638 = vpow.pop %v1637
    %v1639 = vadd.f32 %v1638, 1.0
    %v1640 = vrcp.pop %v1639
    %v1641 = vmul.f32 1.0, %v1640
    %v1642 = vadd.f32 %v1627, %v1129
    %v1644 = vrot.slane %v1642, 4
    %1645 = vrot.lane.b32.xlu0 %v1644, 64
    %v1646 = vpop.permute.xlu0 %1645
    %v1648 = vmul.f32 %v1641, %v1646
    %1650 = vrot.lane.b32.xlu0 %v1648, 64
    %v1651 = vpop.permute.xlu0 %1650
    %v1653 = vadd.f32 %v1057, %v1651
    %v1654 = vtanh.pop %v1653
    %v1655 = vsub.f32 1.0, %v1641
    %1657 = vrot.lane.b32.xlu0 %v1654, 96
    %v1658 = vpop.permute.xlu0 %1657
    %v1660 = vmul.f32 %v1655, %v1658
    %v1661 = vrot.slane %v1578, 6
    %v1663 = vmul.f32 %v1641, %v1661
    %v1664 = vadd.f32 %v1660, %v1663
    %1666 = vrot.lane.b32.xlu0 %v1664, 96
    %v1667 = vpop.permute.xlu0 %1666
    %1669 = vst.msk [vmem:[#allocation2 + $0x8] sm:$0x30] %vm1328, %v1667
    %v1670 = vpack.c.bf16 %v1664, %v1664
    %v1672 = vrot.slane %v1670, 2
    %1673 = vrot.lane.b32.xlu0 %v1672, 96
    %v1674 = vpop.permute.xlu0 %1673
    %v1676 = vsel %vm867, %v1674, 0
    %1678 = vmatprep.subr.bf16.mxu0 0
    %1679 = vmatpush1.bf16.msra.mxu0 %v1073
    %1680 = vmatprep.subr.bf16.mxu0 0
    %1681 = vmatpush1.bf16.msra.mxu0 %v1074
    %1682 = vmatprep.subr.bf16.mxu0 0
    %1683 = vmatpush1.bf16.msra.mxu0 0
    %1684 = vmatprep.subr.bf16.mxu0 0
    %1685 = vmatpush1.bf16.msra.mxu0 0
    %1686 = vmatprep.subr.bf16.mxu0 0
    %1687 = vmatpush1.bf16.msra.mxu0 0
    %1688 = vmatprep.subr.bf16.mxu0 0
    %1689 = vmatpush1.bf16.msra.mxu0 0
    %1690 = vmatprep.subr.bf16.mxu0 0
    %1691 = vmatpush1.bf16.msra.mxu0 0
    %1692 = vmatprep.subr.bf16.mxu0 0
    %1693 = vmatpush1.bf16.msra.mxu0 0
    %1694 = vmatprep.subr.bf16.mxu0 0
    %1695 = vmatpush1.bf16.msra.mxu0 0
    %1696 = vmatprep.subr.bf16.mxu0 0
    %1697 = vmatpush1.bf16.msra.mxu0 0
    %1698 = vmatprep.subr.bf16.mxu0 0
    %1699 = vmatpush1.bf16.msra.mxu0 0
    %1700 = vmatprep.subr.bf16.mxu0 0
    %1701 = vmatpush1.bf16.msra.mxu0 0
    %1702 = vmatprep.subr.bf16.mxu0 0
    %1703 = vmatpush1.bf16.msra.mxu0 0
    %1704 = vmatprep.subr.bf16.mxu0 0
    %1705 = vmatpush1.bf16.msra.mxu0 0
    %1706 = vmatprep.subr.bf16.mxu0 0
    %1707 = vmatpush1.bf16.msra.mxu0 0
    %1708 = vmatprep.subr.bf16.mxu0 0
    %1709 = vmatpush1.bf16.msra.mxu0 0
    %1710 = vmatprep.mubr.bf16.mxu0 0
    %1711 = vmatmul.mubr.bf16.gmra.mrb[0].mxu0 %v1676
    %v1712 = vpop.f32.mrb[0].mxu0
    %v1713 = vadd.f32 0.0, %v1712
    %v1714 = vpop.f32.mrb[0].mxu0
    %v1715 = vpop.f32.mrb[0].mxu0
    %v1716 = vpop.f32.mrb[0].mxu0
    %1717 = vdwg.mxu0
    %v1719 = vrot.slane %v1713, 2
    %v1721 = vadd.f32 %v1057, %v1719
    %v1722 = vxor.u32 %v1721, 2147483648
    %v1723 = vmul.f32 %v1722, 1.442695
    %v1724 = vpow.pop %v1723
    %v1725 = vadd.f32 %v1724, 1.0
    %v1726 = vrcp.pop %v1725
    %v1727 = vmul.f32 1.0, %v1726
    %v1728 = vadd.f32 %v1713, %v1129
    %v1730 = vrot.slane %v1728, 2
    %1731 = vrot.lane.b32.xlu0 %v1730, 64
    %v1732 = vpop.permute.xlu0 %1731
    %v1734 = vmul.f32 %v1727, %v1732
    %1736 = vrot.lane.b32.xlu0 %v1734, 64
    %v1737 = vpop.permute.xlu0 %1736
    %v1739 = vadd.f32 %v1057, %v1737
    %v1740 = vtanh.pop %v1739
    %v1741 = vsub.f32 1.0, %v1727
    %1743 = vrot.lane.b32.xlu0 %v1740, 96
    %v1744 = vpop.permute.xlu0 %1743
    %v1746 = vmul.f32 %v1741, %v1744
    %v1747 = vrot.slane %v1664, 6
    %v1749 = vmul.f32 %v1727, %v1747
    %v1750 = vadd.f32 %v1746, %v1749
    %1752 = vrot.lane.b32.xlu0 %v1750, 96
    %v1753 = vpop.permute.xlu0 %1752
    %1755 = vst.msk [vmem:[#allocation2 + $0x8] sm:$0xc0] %vm1415, %v1753
    %v1756 = vld [vmem:[#allocation2] sm:$0xff]
    %v1757 = vld [vmem:[#allocation2 + $0x8] sm:$0xff]
    %v1758 = vpack.c.bf16 %v1757, %v1756
    %1759 = vmatprep.subr.bf16.mxu0 0
    %1760 = vmatpush1.bf16.msra.mxu0 %v1758
    %1761 = vmatprep.subr.bf16.mxu0 0
    %1762 = vmatpush1.bf16.msra.mxu0 0
    %1763 = vmatprep.subr.bf16.mxu0 0
    %1764 = vmatpush1.bf16.msra.mxu0 0
    %1765 = vmatprep.subr.bf16.mxu0 0
    %1766 = vmatpush1.bf16.msra.mxu0 0
    %1767 = vmatprep.subr.bf16.mxu0 0
    %1768 = vmatpush1.bf16.msra.mxu0 0
    %1769 = vmatprep.subr.bf16.mxu0 0
    %1770 = vmatpush1.bf16.msra.mxu0 0
    %1771 = vmatprep.subr.bf16.mxu0 0
    %1772 = vmatpush1.bf16.msra.mxu0 0
    %1773 = vmatprep.subr.bf16.mxu0 0
    %1774 = vmatpush1.bf16.msra.mxu0 0
    %1775 = vmatprep.subr.bf16.mxu0 0
    %1776 = vmatpush1.bf16.msra.mxu0 0
    %1777 = vmatprep.subr.bf16.mxu0 0
    %1778 = vmatpush1.bf16.msra.mxu0 0
    %1779 = vmatprep.subr.bf16.mxu0 0
    %1780 = vmatpush1.bf16.msra.mxu0 0
    %1781 = vmatprep.subr.bf16.mxu0 0
    %1782 = vmatpush1.bf16.msra.mxu0 0
    %1783 = vmatprep.subr.bf16.mxu0 0
    %1784 = vmatpush1.bf16.msra.mxu0 0
    %1785 = vmatprep.subr.bf16.mxu0 0
    %1786 = vmatpush1.bf16.msra.mxu0 0
    %1787 = vmatprep.subr.bf16.mxu0 0
    %1788 = vmatpush1.bf16.msra.mxu0 0
    %1789 = vmatprep.subr.bf16.mxu0 0
    %1790 = vmatpush1.bf16.msra.mxu0 0
    %1791 = vmatprep.mubr.bf16.mxu0 0
    %1792 = vmatmul.mubr.bf16.gmra.mrb[0].mxu0 %v922
    %v1793 = vpop.f32.mrb[0].mxu0
    %v1794 = vadd.f32 0.0, %v1793
    %v1795 = vpop.f32.mrb[0].mxu0
    %v1796 = vpop.f32.mrb[0].mxu0
    %v1797 = vadd.f32 0.0, %v1796
    %v1798 = vpop.f32.mrb[0].mxu0
    %1799 = vdwg.mxu0
    %1802 = vrot.lane.b32.xlu0 %v1794, 32
    %v1803 = vpop.permute.xlu0 %1802
    %1804 = vrot.lane.b32.xlu0 %v1797, 32
    %v1805 = vpop.permute.xlu0 %1804
    %1810 = vrot.lane.b32.xlu0 %v1756, 32
    %v1811 = vpop.permute.xlu0 %1810
    %1812 = vrot.lane.b32.xlu0 %v1757, 32
    %v1813 = vpop.permute.xlu0 %1812
    %v1816 = vsel %vm920, %v1756, %v1794
    %v1817 = vsel %vm920, %v1757, %v1797
    %v1818 = vsel %vm867, %v1816, %v1803
    %v1819 = vsel %vm867, %v1817, %v1805
    %vm1820 = vcmask 392192
    %v1821 = vsel %vm1820, %v1818, %v1811
    %v1822 = vsel %vm1820, %v1819, %v1813
    %v1823 = vpack.c.bf16 %v1822, %v1821
    %v1824 = vld [vmem:[%s12] sm:$0xf]
    %v1825 = vld [vmem:[%s12 + $0x4] sm:$0xf]
    %v1826 = vld [vmem:[%s12 + $0x8] sm:$0xf]
    %v1827 = vld [vmem:[%s12 + $0xc] sm:$0xf]
    %v1828 = vld [vmem:[%s12 + $0x10] sm:$0xf]
    %v1829 = vld [vmem:[%s12 + $0x14] sm:$0xf]
    %v1830 = vld [vmem:[%s12 + $0x18] sm:$0xf]
    %v1831 = vld [vmem:[%s12 + $0x1c] sm:$0xf]
    %v1832 = vld [vmem:[%s14] sm:$0x1]
    %v1834 = vlaneseq
    %v1835 = vshrl.u32 %v1834, 7
    %v1836 = vsub.s32 0, %v1835
    %v1837 = vrot.slane %v1832, %v1836
    %v1847 = vunpack.c.l.b16 %v1824
    %v1848 = vunpack.c.l.b16 %v1825
    %v1849 = vunpack.c.l.b16 %v1826
    %v1850 = vunpack.c.l.b16 %v1827
    %v1851 = vunpack.c.l.b16 %v1828
    %v1852 = vunpack.c.l.b16 %v1829
    %v1853 = vunpack.c.l.b16 %v1830
    %v1854 = vunpack.c.l.b16 %v1831
    %v1855 = vpack.c.b16 %v1848, %v1847
    %v1856 = vpack.c.b16 %v1850, %v1849
    %v1857 = vpack.c.b16 %v1852, %v1851
    %v1858 = vpack.c.b16 %v1854, %v1853
    %v1864 = vsel %vm1015, %v1823, 0
    %1866 = vmatprep.subr.bf16.mxu0 0
    %1867 = vmatpush1.bf16.msra.mxu0 %v1855
    %1868 = vmatprep.subr.bf16.mxu0 0
    %1869 = vmatpush1.bf16.msra.mxu0 %v1856
    %1870 = vmatprep.subr.bf16.mxu0 0
    %1871 = vmatpush1.bf16.msra.mxu0 %v1857
    %1872 = vmatprep.subr.bf16.mxu0 0
    %1873 = vmatpush1.bf16.msra.mxu0 %v1858
    %1874 = vmatprep.subr.bf16.mxu0 0
    %1875 = vmatpush1.bf16.msra.mxu0 0
    %1876 = vmatprep.subr.bf16.mxu0 0
    %1877 = vmatpush1.bf16.msra.mxu0 0
    %1878 = vmatprep.subr.bf16.mxu0 0
    %1879 = vmatpush1.bf16.msra.mxu0 0
    %1880 = vmatprep.subr.bf16.mxu0 0
    %1881 = vmatpush1.bf16.msra.mxu0 0
    %1882 = vmatprep.subr.bf16.mxu0 0
    %1883 = vmatpush1.bf16.msra.mxu0 0
    %1884 = vmatprep.subr.bf16.mxu0 0
    %1885 = vmatpush1.bf16.msra.mxu0 0
    %1886 = vmatprep.subr.bf16.mxu0 0
    %1887 = vmatpush1.bf16.msra.mxu0 0
    %1888 = vmatprep.subr.bf16.mxu0 0
    %1889 = vmatpush1.bf16.msra.mxu0 0
    %1890 = vmatprep.subr.bf16.mxu0 0
    %1891 = vmatpush1.bf16.msra.mxu0 0
    %1892 = vmatprep.subr.bf16.mxu0 0
    %1893 = vmatpush1.bf16.msra.mxu0 0
    %1894 = vmatprep.subr.bf16.mxu0 0
    %1895 = vmatpush1.bf16.msra.mxu0 0
    %1896 = vmatprep.subr.bf16.mxu0 0
    %1897 = vmatpush1.bf16.msra.mxu0 0
    %1898 = vmatprep.mubr.bf16.mxu0 0
    %1899 = vmatmul.mubr.bf16.gmra.mrb[0].mxu0 %v1864
    %v1900 = vpop.f32.mrb[0].mxu0
    %v1901 = vadd.f32 %v1837, %v1900
    %v1902 = vpop.f32.mrb[0].mxu0
    %v1903 = vpop.f32.mrb[0].mxu0
    %v1904 = vadd.f32 %v1837, %v1903
    %v1905 = vpop.f32.mrb[0].mxu0
    %1906 = vdwg.mxu0
    %v1907 = vld [vmem:[%s13] sm:$0xf]
    %v1908 = vld [vmem:[%s13 + $0x4] sm:$0xf]
    %v1909 = vld [vmem:[%s13 + $0x8] sm:$0xf]
    %v1910 = vld [vmem:[%s13 + $0xc] sm:$0xf]
    %v1911 = vld [vmem:[%s15] sm:$0x3]
    %v1916 = vunpack.c.l.b16 %v1907
    %v1917 = vunpack.c.l.b16 %v1908
    %v1918 = vunpack.c.l.b16 %v1909
    %v1919 = vunpack.c.l.b16 %v1910
    %v1920 = vpack.c.b16 %v1917, %v1916
    %v1921 = vpack.c.b16 %v1919, %v1918
    %1924 = vmatprep.subr.bf16.mxu0 0
    %1925 = vmatpush1.bf16.msra.mxu0 %v1920
    %1926 = vmatprep.subr.bf16.mxu0 0
    %1927 = vmatpush1.bf16.msra.mxu0 %v1921
    %1928 = vmatprep.subr.bf16.mxu0 0
    %1929 = vmatpush1.bf16.msra.mxu0 0
    %1930 = vmatprep.subr.bf16.mxu0 0
    %1931 = vmatpush1.bf16.msra.mxu0 0
    %1932 = vmatprep.subr.bf16.mxu0 0
    %1933 = vmatpush1.bf16.msra.mxu0 0
    %1934 = vmatprep.subr.bf16.mxu0 0
    %1935 = vmatpush1.bf16.msra.mxu0 0
    %1936 = vmatprep.subr.bf16.mxu0 0
    %1937 = vmatpush1.bf16.msra.mxu0 0
    %1938 = vmatprep.subr.bf16.mxu0 0
    %1939 = vmatpush1.bf16.msra.mxu0 0
    %1940 = vmatprep.subr.bf16.mxu0 0
    %1941 = vmatpush1.bf16.msra.mxu0 0
    %1942 = vmatprep.subr.bf16.mxu0 0
    %1943 = vmatpush1.bf16.msra.mxu0 0
    %1944 = vmatprep.subr.bf16.mxu0 0
    %1945 = vmatpush1.bf16.msra.mxu0 0
    %1946 = vmatprep.subr.bf16.mxu0 0
    %1947 = vmatpush1.bf16.msra.mxu0 0
    %1948 = vmatprep.subr.bf16.mxu0 0
    %1949 = vmatpush1.bf16.msra.mxu0 0
    %1950 = vmatprep.subr.bf16.mxu0 0
    %1951 = vmatpush1.bf16.msra.mxu0 0
    %1952 = vmatprep.subr.bf16.mxu0 0
    %1953 = vmatpush1.bf16.msra.mxu0 0
    %1954 = vmatprep.subr.bf16.mxu0 0
    %1955 = vmatpush1.bf16.msra.mxu0 0
    %1956 = vmatprep.mubr.bf16.mxu0 0
    %1957 = vmatmul.mubr.bf16.gmra.mrb[0].mxu0 %v1078
    %v1958 = vpop.f32.mrb[0].mxu0
    %v1959 = vadd.f32 0.0, %v1958
    %v1960 = vpop.f32.mrb[0].mxu0
    %v1961 = vpop.f32.mrb[0].mxu0
    %v1962 = vpop.f32.mrb[0].mxu0
    %1963 = vdwg.mxu0
    %v1964 = vadd.f32 %v1901, %v1959
    %v1965 = vxor.u32 %v1964, 2147483648
    %v1966 = vmul.f32 %v1965, 1.442695
    %v1967 = vpow.pop %v1966
    %v1968 = vadd.f32 %v1967, 1.0
    %v1969 = vrcp.pop %v1968
    %v1970 = vmul.f32 1.0, %v1969
    %1972 = vrot.lane.b32.xlu0 %v1911, 64
    %v1973 = vpop.permute.xlu0 %1972
    %v1975 = vadd.f32 %v1959, %v1973
    %1977 = vrot.lane.b32.xlu0 %v1975, 64
    %v1978 = vpop.permute.xlu0 %1977
    %v1980 = vmul.f32 %v1970, %v1978
    %1982 = vrot.lane.b32.xlu0 %v1980, 64
    %v1983 = vpop.permute.xlu0 %1982
    %v1985 = vadd.f32 %v1901, %v1983
    %v1986 = vtanh.pop %v1985
    %v1987 = vsub.f32 1.0, %v1970
    %1989 = vrot.lane.b32.xlu0 %v1986, 96
    %v1990 = vpop.permute.xlu0 %1989
    %v1992 = vmul.f32 %v1987, %v1990
    %v1993 = vmul.f32 %v1970, 0.0
    %v1994 = vadd.f32 %v1992, %v1993
    %1996 = vrot.lane.b32.xlu0 %v1994, 96
    %v1997 = vpop.permute.xlu0 %1996
    %1999 = vst.msk [vmem:[#allocation2] sm:$0x3] %vm1155, %v1997
    %v2000 = vpack.c.bf16 %v1994, %v1994
    %2002 = vrot.lane.b32.xlu0 %v2000, 96
    %v2003 = vpop.permute.xlu0 %2002
    %v2005 = vsel %vm867, %v2003, 0
    %2007 = vmatprep.subr.bf16.mxu0 0
    %2008 = vmatpush1.bf16.msra.mxu0 %v1920
    %2009 = vmatprep.subr.bf16.mxu0 0
    %2010 = vmatpush1.bf16.msra.mxu0 %v1921
    %2011 = vmatprep.subr.bf16.mxu0 0
    %2012 = vmatpush1.bf16.msra.mxu0 0
    %2013 = vmatprep.subr.bf16.mxu0 0
    %2014 = vmatpush1.bf16.msra.mxu0 0
    %2015 = vmatprep.subr.bf16.mxu0 0
    %2016 = vmatpush1.bf16.msra.mxu0 0
    %2017 = vmatprep.subr.bf16.mxu0 0
    %2018 = vmatpush1.bf16.msra.mxu0 0
    %2019 = vmatprep.subr.bf16.mxu0 0
    %2020 = vmatpush1.bf16.msra.mxu0 0
    %2021 = vmatprep.subr.bf16.mxu0 0
    %2022 = vmatpush1.bf16.msra.mxu0 0
    %2023 = vmatprep.subr.bf16.mxu0 0
    %2024 = vmatpush1.bf16.msra.mxu0 0
    %2025 = vmatprep.subr.bf16.mxu0 0
    %2026 = vmatpush1.bf16.msra.mxu0 0
    %2027 = vmatprep.subr.bf16.mxu0 0
    %2028 = vmatpush1.bf16.msra.mxu0 0
    %2029 = vmatprep.subr.bf16.mxu0 0
    %2030 = vmatpush1.bf16.msra.mxu0 0
    %2031 = vmatprep.subr.bf16.mxu0 0
    %2032 = vmatpush1.bf16.msra.mxu0 0
    %2033 = vmatprep.subr.bf16.mxu0 0
    %2034 = vmatpush1.bf16.msra.mxu0 0
    %2035 = vmatprep.subr.bf16.mxu0 0
    %2036 = vmatpush1.bf16.msra.mxu0 0
    %2037 = vmatprep.subr.bf16.mxu0 0
    %2038 = vmatpush1.bf16.msra.mxu0 0
    %2039 = vmatprep.mubr.bf16.mxu0 0
    %2040 = vmatmul.mubr.bf16.gmra.mrb[0].mxu0 %v2005
    %v2041 = vpop.f32.mrb[0].mxu0
    %v2042 = vadd.f32 0.0, %v2041
    %v2043 = vpop.f32.mrb[0].mxu0
    %v2044 = vpop.f32.mrb[0].mxu0
    %v2045 = vpop.f32.mrb[0].mxu0
    %2046 = vdwg.mxu0
    %v2048 = vrot.slane %v2042, 6
    %v2050 = vadd.f32 %v1901, %v2048
    %v2051 = vxor.u32 %v2050, 2147483648
    %v2052 = vmul.f32 %v2051, 1.442695
    %v2053 = vpow.pop %v2052
    %v2054 = vadd.f32 %v2053, 1.0
    %v2055 = vrcp.pop %v2054
    %v2056 = vmul.f32 1.0, %v2055
    %v2057 = vadd.f32 %v2042, %v1973
    %v2059 = vrot.slane %v2057, 6
    %2060 = vrot.lane.b32.xlu0 %v2059, 64
    %v2061 = vpop.permute.xlu0 %2060
    %v2063 = vmul.f32 %v2056, %v2061
    %2065 = vrot.lane.b32.xlu0 %v2063, 64
    %v2066 = vpop.permute.xlu0 %2065
    %v2068 = vadd.f32 %v1901, %v2066
    %v2069 = vtanh.pop %v2068
    %v2070 = vsub.f32 1.0, %v2056
    %2072 = vrot.lane.b32.xlu0 %v2069, 96
    %v2073 = vpop.permute.xlu0 %2072
    %v2075 = vmul.f32 %v2070, %v2073
    %v2076 = vrot.slane %v1994, 6
    %v2078 = vmul.f32 %v2056, %v2076
    %v2079 = vadd.f32 %v2075, %v2078
    %2081 = vrot.lane.b32.xlu0 %v2079, 96
    %v2082 = vpop.permute.xlu0 %2081
    %2084 = vst.msk [vmem:[#allocation2] sm:$0xc] %vm1241, %v2082
    %v2085 = vpack.c.bf16 %v2079, %v2079
    %v2087 = vrot.slane %v2085, 1
    %2088 = vrot.lane.b32.xlu0 %v2087, 96
    %v2089 = vpop.permute.xlu0 %2088
    %v2091 = vsel %vm867, %v2089, 0
    %2093 = vmatprep.subr.bf16.mxu0 0
    %2094 = vmatpush1.bf16.msra.mxu0 %v1920
    %2095 = vmatprep.subr.bf16.mxu0 0
    %2096 = vmatpush1.bf16.msra.mxu0 %v1921
    %2097 = vmatprep.subr.bf16.mxu0 0
    %2098 = vmatpush1.bf16.msra.mxu0 0
    %2099 = vmatprep.subr.bf16.mxu0 0
    %2100 = vmatpush1.bf16.msra.mxu0 0
    %2101 = vmatprep.subr.bf16.mxu0 0
    %2102 = vmatpush1.bf16.msra.mxu0 0
    %2103 = vmatprep.subr.bf16.mxu0 0
    %2104 = vmatpush1.bf16.msra.mxu0 0
    %2105 = vmatprep.subr.bf16.mxu0 0
    %2106 = vmatpush1.bf16.msra.mxu0 0
    %2107 = vmatprep.subr.bf16.mxu0 0
    %2108 = vmatpush1.bf16.msra.mxu0 0
    %2109 = vmatprep.subr.bf16.mxu0 0
    %2110 = vmatpush1.bf16.msra.mxu0 0
    %2111 = vmatprep.subr.bf16.mxu0 0
    %2112 = vmatpush1.bf16.msra.mxu0 0
    %2113 = vmatprep.subr.bf16.mxu0 0
    %2114 = vmatpush1.bf16.msra.mxu0 0
    %2115 = vmatprep.subr.bf16.mxu0 0
    %2116 = vmatpush1.bf16.msra.mxu0 0
    %2117 = vmatprep.subr.bf16.mxu0 0
    %2118 = vmatpush1.bf16.msra.mxu0 0
    %2119 = vmatprep.subr.bf16.mxu0 0
    %2120 = vmatpush1.bf16.msra.mxu0 0
    %2121 = vmatprep.subr.bf16.mxu0 0
    %2122 = vmatpush1.bf16.msra.mxu0 0
    %2123 = vmatprep.subr.bf16.mxu0 0
    %2124 = vmatpush1.bf16.msra.mxu0 0
    %2125 = vmatprep.mubr.bf16.mxu0 0
    %2126 = vmatmul.mubr.bf16.gmra.mrb[0].mxu0 %v2091
    %v2127 = vpop.f32.mrb[0].mxu0
    %v2128 = vadd.f32 0.0, %v2127
    %v2129 = vpop.f32.mrb[0].mxu0
    %v2130 = vpop.f32.mrb[0].mxu0
    %v2131 = vpop.f32.mrb[0].mxu0
    %2132 = vdwg.mxu0
    %v2134 = vrot.slane %v2128, 4
    %v2136 = vadd.f32 %v1901, %v2134
    %v2137 = vxor.u32 %v2136, 2147483648
    %v2138 = vmul.f32 %v2137, 1.442695
    %v2139 = vpow.pop %v2138
    %v2140 = vadd.f32 %v2139, 1.0
    %v2141 = vrcp.pop %v2140
    %v2142 = vmul.f32 1.0, %v2141
    %v2143 = vadd.f32 %v2128, %v1973
    %v2145 = vrot.slane %v2143, 4
    %2146 = vrot.lane.b32.xlu0 %v2145, 64
    %v2147 = vpop.permute.xlu0 %2146
    %v2149 = vmul.f32 %v2142, %v2147
    %2151 = vrot.lane.b32.xlu0 %v2149, 64
    %v2152 = vpop.permute.xlu0 %2151
    %v2154 = vadd.f32 %v1901, %v2152
    %v2155 = vtanh.pop %v2154
    %v2156 = vsub.f32 1.0, %v2142
    %2158 = vrot.lane.b32.xlu0 %v2155, 96
    %v2159 = vpop.permute.xlu0 %2158
    %v2161 = vmul.f32 %v2156, %v2159
    %v2162 = vrot.slane %v2079, 6
    %v2164 = vmul.f32 %v2142, %v2162
    %v2165 = vadd.f32 %v2161, %v2164
    %2167 = vrot.lane.b32.xlu0 %v2165, 96
    %v2168 = vpop.permute.xlu0 %2167
    %2170 = vst.msk [vmem:[#allocation2] sm:$0x30] %vm1328, %v2168
    %v2171 = vpack.c.bf16 %v2165, %v2165
    %v2173 = vrot.slane %v2171, 2
    %2174 = vrot.lane.b32.xlu0 %v2173, 96
    %v2175 = vpop.permute.xlu0 %2174
    %v2177 = vsel %vm867, %v2175, 0
    %2179 = vmatprep.subr.bf16.mxu0 0
    %2180 = vmatpush1.bf16.msra.mxu0 %v1920
    %2181 = vmatprep.subr.bf16.mxu0 0
    %2182 = vmatpush1.bf16.msra.mxu0 %v1921
    %2183 = vmatprep.subr.bf16.mxu0 0
    %2184 = vmatpush1.bf16.msra.mxu0 0
    %2185 = vmatprep.subr.bf16.mxu0 0
    %2186 = vmatpush1.bf16.msra.mxu0 0
    %2187 = vmatprep.subr.bf16.mxu0 0
    %2188 = vmatpush1.bf16.msra.mxu0 0
    %2189 = vmatprep.subr.bf16.mxu0 0
    %2190 = vmatpush1.bf16.msra.mxu0 0
    %2191 = vmatprep.subr.bf16.mxu0 0
    %2192 = vmatpush1.bf16.msra.mxu0 0
    %2193 = vmatprep.subr.bf16.mxu0 0
    %2194 = vmatpush1.bf16.msra.mxu0 0
    %2195 = vmatprep.subr.bf16.mxu0 0
    %2196 = vmatpush1.bf16.msra.mxu0 0
    %2197 = vmatprep.subr.bf16.mxu0 0
    %2198 = vmatpush1.bf16.msra.mxu0 0
    %2199 = vmatprep.subr.bf16.mxu0 0
    %2200 = vmatpush1.bf16.msra.mxu0 0
    %2201 = vmatprep.subr.bf16.mxu0 0
    %2202 = vmatpush1.bf16.msra.mxu0 0
    %2203 = vmatprep.subr.bf16.mxu0 0
    %2204 = vmatpush1.bf16.msra.mxu0 0
    %2205 = vmatprep.subr.bf16.mxu0 0
    %2206 = vmatpush1.bf16.msra.mxu0 0
    %2207 = vmatprep.subr.bf16.mxu0 0
    %2208 = vmatpush1.bf16.msra.mxu0 0
    %2209 = vmatprep.subr.bf16.mxu0 0
    %2210 = vmatpush1.bf16.msra.mxu0 0
    %2211 = vmatprep.mubr.bf16.mxu0 0
    %2212 = vmatmul.mubr.bf16.gmra.mrb[0].mxu0 %v2177
    %v2213 = vpop.f32.mrb[0].mxu0
    %v2214 = vadd.f32 0.0, %v2213
    %v2215 = vpop.f32.mrb[0].mxu0
    %v2216 = vpop.f32.mrb[0].mxu0
    %v2217 = vpop.f32.mrb[0].mxu0
    %2218 = vdwg.mxu0
    %v2220 = vrot.slane %v2214, 2
    %v2222 = vadd.f32 %v1901, %v2220
    %v2223 = vxor.u32 %v2222, 2147483648
    %v2224 = vmul.f32 %v2223, 1.442695
    %v2225 = vpow.pop %v2224
    %v2226 = vadd.f32 %v2225, 1.0
    %v2227 = vrcp.pop %v2226
    %v2228 = vmul.f32 1.0, %v2227
    %v2229 = vadd.f32 %v2214, %v1973
    %v2231 = vrot.slane %v2229, 2
    %2232 = vrot.lane.b32.xlu0 %v2231, 64
    %v2233 = vpop.permute.xlu0 %2232
    %v2235 = vmul.f32 %v2228, %v2233
    %2237 = vrot.lane.b32.xlu0 %v2235, 64
    %v2238 = vpop.permute.xlu0 %2237
    %v2240 = vadd.f32 %v1901, %v2238
    %v2241 = vtanh.pop %v2240
    %v2242 = vsub.f32 1.0, %v2228
    %2244 = vrot.lane.b32.xlu0 %v2241, 96
    %v2245 = vpop.permute.xlu0 %2244
    %v2247 = vmul.f32 %v2242, %v2245
    %v2248 = vrot.slane %v2165, 6
    %v2250 = vmul.f32 %v2228, %v2248
    %v2251 = vadd.f32 %v2247, %v2250
    %2253 = vrot.lane.b32.xlu0 %v2251, 96
    %v2254 = vpop.permute.xlu0 %2253
    %2256 = vst.msk [vmem:[#allocation2] sm:$0xc0] %vm1415, %v2254
    %v2257 = vpack.c.bf16 %v2251, %v2251
    %v2259 = vrot.slane %v2257, 3
    %2260 = vrot.lane.b32.xlu0 %v2259, 96
    %v2261 = vpop.permute.xlu0 %2260
    %v2263 = vsel %vm867, %v2261, 0
    %2265 = vmatprep.subr.bf16.mxu0 0
    %2266 = vmatpush1.bf16.msra.mxu0 %v1920
    %2267 = vmatprep.subr.bf16.mxu0 0
    %2268 = vmatpush1.bf16.msra.mxu0 %v1921
    %2269 = vmatprep.subr.bf16.mxu0 0
    %2270 = vmatpush1.bf16.msra.mxu0 0
    %2271 = vmatprep.subr.bf16.mxu0 0
    %2272 = vmatpush1.bf16.msra.mxu0 0
    %2273 = vmatprep.subr.bf16.mxu0 0
    %2274 = vmatpush1.bf16.msra.mxu0 0
    %2275 = vmatprep.subr.bf16.mxu0 0
    %2276 = vmatpush1.bf16.msra.mxu0 0
    %2277 = vmatprep.subr.bf16.mxu0 0
    %2278 = vmatpush1.bf16.msra.mxu0 0
    %2279 = vmatprep.subr.bf16.mxu0 0
    %2280 = vmatpush1.bf16.msra.mxu0 0
    %2281 = vmatprep.subr.bf16.mxu0 0
    %2282 = vmatpush1.bf16.msra.mxu0 0
    %2283 = vmatprep.subr.bf16.mxu0 0
    %2284 = vmatpush1.bf16.msra.mxu0 0
    %2285 = vmatprep.subr.bf16.mxu0 0
    %2286 = vmatpush1.bf16.msra.mxu0 0
    %2287 = vmatprep.subr.bf16.mxu0 0
    %2288 = vmatpush1.bf16.msra.mxu0 0
    %2289 = vmatprep.subr.bf16.mxu0 0
    %2290 = vmatpush1.bf16.msra.mxu0 0
    %2291 = vmatprep.subr.bf16.mxu0 0
    %2292 = vmatpush1.bf16.msra.mxu0 0
    %2293 = vmatprep.subr.bf16.mxu0 0
    %2294 = vmatpush1.bf16.msra.mxu0 0
    %2295 = vmatprep.subr.bf16.mxu0 0
    %2296 = vmatpush1.bf16.msra.mxu0 0
    %2297 = vmatprep.mubr.bf16.mxu0 0
    %2298 = vmatmul.mubr.bf16.gmra.mrb[0].mxu0 %v2263
    %v2299 = vpop.f32.mrb[0].mxu0
    %v2300 = vadd.f32 0.0, %v2299
    %v2301 = vpop.f32.mrb[0].mxu0
    %v2302 = vpop.f32.mrb[0].mxu0
    %v2303 = vpop.f32.mrb[0].mxu0
    %2304 = vdwg.mxu0
    %v2305 = vadd.f32 %v1904, %v2300
    %v2306 = vxor.u32 %v2305, 2147483648
    %v2307 = vmul.f32 %v2306, 1.442695
    %v2308 = vpow.pop %v2307
    %v2309 = vadd.f32 %v2308, 1.0
    %v2310 = vrcp.pop %v2309
    %v2311 = vmul.f32 1.0, %v2310
    %v2312 = vadd.f32 %v2300, %v1973
    %2314 = vrot.lane.b32.xlu0 %v2312, 64
    %v2315 = vpop.permute.xlu0 %2314
    %v2317 = vmul.f32 %v2311, %v2315
    %2319 = vrot.lane.b32.xlu0 %v2317, 64
    %v2320 = vpop.permute.xlu0 %2319
    %v2322 = vadd.f32 %v1904, %v2320
    %v2323 = vtanh.pop %v2322
    %v2324 = vsub.f32 1.0, %v2311
    %2326 = vrot.lane.b32.xlu0 %v2323, 96
    %v2327 = vpop.permute.xlu0 %2326
    %v2329 = vmul.f32 %v2324, %v2327
    %v2330 = vrot.slane %v2251, 6
    %v2332 = vmul.f32 %v2311, %v2330
    %v2333 = vadd.f32 %v2329, %v2332
    %2335 = vrot.lane.b32.xlu0 %v2333, 96
    %v2336 = vpop.permute.xlu0 %2335
    %2338 = vst.msk [vmem:[#allocation2 + $0x8] sm:$0x3] %vm1155, %v2336
    %v2339 = vpack.c.bf16 %v2333, %v2333
    %2341 = vrot.lane.b32.xlu0 %v2339, 96
    %v2342 = vpop.permute.xlu0 %2341
    %v2344 = vsel %vm867, %v2342, 0
    %2346 = vmatprep.subr.bf16.mxu0 0
    %2347 = vmatpush1.bf16.msra.mxu0 %v1920
    %2348 = vmatprep.subr.bf16.mxu0 0
    %2349 = vmatpush1.bf16.msra.mxu0 %v1921
    %2350 = vmatprep.subr.bf16.mxu0 0
    %2351 = vmatpush1.bf16.msra.mxu0 0
    %2352 = vmatprep.subr.bf16.mxu0 0
    %2353 = vmatpush1.bf16.msra.mxu0 0
    %2354 = vmatprep.subr.bf16.mxu0 0
    %2355 = vmatpush1.bf16.msra.mxu0 0
    %2356 = vmatprep.subr.bf16.mxu0 0
    %2357 = vmatpush1.bf16.msra.mxu0 0
    %2358 = vmatprep.subr.bf16.mxu0 0
    %2359 = vmatpush1.bf16.msra.mxu0 0
    %2360 = vmatprep.subr.bf16.mxu0 0
    %2361 = vmatpush1.bf16.msra.mxu0 0
    %2362 = vmatprep.subr.bf16.mxu0 0
    %2363 = vmatpush1.bf16.msra.mxu0 0
    %2364 = vmatprep.subr.bf16.mxu0 0
    %2365 = vmatpush1.bf16.msra.mxu0 0
    %2366 = vmatprep.subr.bf16.mxu0 0
    %2367 = vmatpush1.bf16.msra.mxu0 0
    %2368 = vmatprep.subr.bf16.mxu0 0
    %2369 = vmatpush1.bf16.msra.mxu0 0
    %2370 = vmatprep.subr.bf16.mxu0 0
    %2371 = vmatpush1.bf16.msra.mxu0 0
    %2372 = vmatprep.subr.bf16.mxu0 0
    %2373 = vmatpush1.bf16.msra.mxu0 0
    %2374 = vmatprep.subr.bf16.mxu0 0
    %2375 = vmatpush1.bf16.msra.mxu0 0
    %2376 = vmatprep.subr.bf16.mxu0 0
    %2377 = vmatpush1.bf16.msra.mxu0 0
    %2378 = vmatprep.mubr.bf16.mxu0 0
    %2379 = vmatmul.mubr.bf16.gmra.mrb[0].mxu0 %v2344
    %v2380 = vpop.f32.mrb[0].mxu0
    %v2381 = vadd.f32 0.0, %v2380
    %v2382 = vpop.f32.mrb[0].mxu0
    %v2383 = vpop.f32.mrb[0].mxu0
    %v2384 = vpop.f32.mrb[0].mxu0
    %2385 = vdwg.mxu0
    %v2387 = vrot.slane %v2381, 6
    %v2389 = vadd.f32 %v1904, %v2387
    %v2390 = vxor.u32 %v2389, 2147483648
    %v2391 = vmul.f32 %v2390, 1.442695
    %v2392 = vpow.pop %v2391
    %v2393 = vadd.f32 %v2392, 1.0
    %v2394 = vrcp.pop %v2393
    %v2395 = vmul.f32 1.0, %v2394
    %v2396 = vadd.f32 %v2381, %v1973
    %v2398 = vrot.slane %v2396, 6
    %2399 = vrot.lane.b32.xlu0 %v2398, 64
    %v2400 = vpop.permute.xlu0 %2399
    %v2402 = vmul.f32 %v2395, %v2400
    %2404 = vrot.lane.b32.xlu0 %v2402, 64
    %v2405 = vpop.permute.xlu0 %2404
    %v2407 = vadd.f32 %v1904, %v2405
    %v2408 = vtanh.pop %v2407
    %v2409 = vsub.f32 1.0, %v2395
    %2411 = vrot.lane.b32.xlu0 %v2408, 96
    %v2412 = vpop.permute.xlu0 %2411
    %v2414 = vmul.f32 %v2409, %v2412
    %v2415 = vrot.slane %v2333, 6
    %v2417 = vmul.f32 %v2395, %v2415
    %v2418 = vadd.f32 %v2414, %v2417
    %2420 = vrot.lane.b32.xlu0 %v2418, 96
    %v2421 = vpop.permute.xlu0 %2420
    %2423 = vst.msk [vmem:[#allocation2 + $0x8] sm:$0xc] %vm1241, %v2421
    %v2424 = vpack.c.bf16 %v2418, %v2418
    %v2426 = vrot.slane %v2424, 1
    %2427 = vrot.lane.b32.xlu0 %v2426, 96
    %v2428 = vpop.permute.xlu0 %2427
    %v2430 = vsel %vm867, %v2428, 0
    %2432 = vmatprep.subr.bf16.mxu0 0
    %2433 = vmatpush1.bf16.msra.mxu0 %v1920
    %2434 = vmatprep.subr.bf16.mxu0 0
    %2435 = vmatpush1.bf16.msra.mxu0 %v1921
    %2436 = vmatprep.subr.bf16.mxu0 0
    %2437 = vmatpush1.bf16.msra.mxu0 0
    %2438 = vmatprep.subr.bf16.mxu0 0
    %2439 = vmatpush1.bf16.msra.mxu0 0
    %2440 = vmatprep.subr.bf16.mxu0 0
    %2441 = vmatpush1.bf16.msra.mxu0 0
    %2442 = vmatprep.subr.bf16.mxu0 0
    %2443 = vmatpush1.bf16.msra.mxu0 0
    %2444 = vmatprep.subr.bf16.mxu0 0
    %2445 = vmatpush1.bf16.msra.mxu0 0
    %2446 = vmatprep.subr.bf16.mxu0 0
    %2447 = vmatpush1.bf16.msra.mxu0 0
    %2448 = vmatprep.subr.bf16.mxu0 0
    %2449 = vmatpush1.bf16.msra.mxu0 0
    %2450 = vmatprep.subr.bf16.mxu0 0
    %2451 = vmatpush1.bf16.msra.mxu0 0
    %2452 = vmatprep.subr.bf16.mxu0 0
    %2453 = vmatpush1.bf16.msra.mxu0 0
    %2454 = vmatprep.subr.bf16.mxu0 0
    %2455 = vmatpush1.bf16.msra.mxu0 0
    %2456 = vmatprep.subr.bf16.mxu0 0
    %2457 = vmatpush1.bf16.msra.mxu0 0
    %2458 = vmatprep.subr.bf16.mxu0 0
    %2459 = vmatpush1.bf16.msra.mxu0 0
    %2460 = vmatprep.subr.bf16.mxu0 0
    %2461 = vmatpush1.bf16.msra.mxu0 0
    %2462 = vmatprep.subr.bf16.mxu0 0
    %2463 = vmatpush1.bf16.msra.mxu0 0
    %2464 = vmatprep.mubr.bf16.mxu0 0
    %2465 = vmatmul.mubr.bf16.gmra.mrb[0].mxu0 %v2430
    %v2466 = vpop.f32.mrb[0].mxu0
    %v2467 = vadd.f32 0.0, %v2466
    %v2468 = vpop.f32.mrb[0].mxu0
    %v2469 = vpop.f32.mrb[0].mxu0
    %v2470 = vpop.f32.mrb[0].mxu0
    %2471 = vdwg.mxu0
    %v2473 = vrot.slane %v2467, 4
    %v2475 = vadd.f32 %v1904, %v2473
    %v2476 = vxor.u32 %v2475, 2147483648
    %v2477 = vmul.f32 %v2476, 1.442695
    %v2478 = vpow.pop %v2477
    %v2479 = vadd.f32 %v2478, 1.0
    %v2480 = vrcp.pop %v2479
    %v2481 = vmul.f32 1.0, %v2480
    %v2482 = vadd.f32 %v2467, %v1973
    %v2484 = vrot.slane %v2482, 4
    %2485 = vrot.lane.b32.xlu0 %v2484, 64
    %v2486 = vpop.permute.xlu0 %2485
    %v2488 = vmul.f32 %v2481, %v2486
    %2490 = vrot.lane.b32.xlu0 %v2488, 64
    %v2491 = vpop.permute.xlu0 %2490
    %v2493 = vadd.f32 %v1904, %v2491
    %v2494 = vtanh.pop %v2493
    %v2495 = vsub.f32 1.0, %v2481
    %2497 = vrot.lane.b32.xlu0 %v2494, 96
    %v2498 = vpop.permute.xlu0 %2497
    %v2500 = vmul.f32 %v2495, %v2498
    %v2501 = vrot.slane %v2418, 6
    %v2503 = vmul.f32 %v2481, %v2501
    %v2504 = vadd.f32 %v2500, %v2503
    %2506 = vrot.lane.b32.xlu0 %v2504, 96
    %v2507 = vpop.permute.xlu0 %2506
    %2509 = vst.msk [vmem:[#allocation2 + $0x8] sm:$0x30] %vm1328, %v2507
    %v2510 = vpack.c.bf16 %v2504, %v2504
    %v2512 = vrot.slane %v2510, 2
    %2513 = vrot.lane.b32.xlu0 %v2512, 96
    %v2514 = vpop.permute.xlu0 %2513
    %v2516 = vsel %vm867, %v2514, 0
    %2518 = vmatprep.subr.bf16.mxu0 0
    %2519 = vmatpush1.bf16.msra.mxu0 %v1920
    %2520 = vmatprep.subr.bf16.mxu0 0
    %2521 = vmatpush1.bf16.msra.mxu0 %v1921
    %2522 = vmatprep.subr.bf16.mxu0 0
    %2523 = vmatpush1.bf16.msra.mxu0 0
    %2524 = vmatprep.subr.bf16.mxu0 0
    %2525 = vmatpush1.bf16.msra.mxu0 0
    %2526 = vmatprep.subr.bf16.mxu0 0
    %2527 = vmatpush1.bf16.msra.mxu0 0
    %2528 = vmatprep.subr.bf16.mxu0 0
    %2529 = vmatpush1.bf16.msra.mxu0 0
    %2530 = vmatprep.subr.bf16.mxu0 0
    %2531 = vmatpush1.bf16.msra.mxu0 0
    %2532 = vmatprep.subr.bf16.mxu0 0
    %2533 = vmatpush1.bf16.msra.mxu0 0
    %2534 = vmatprep.subr.bf16.mxu0 0
    %2535 = vmatpush1.bf16.msra.mxu0 0
    %2536 = vmatprep.subr.bf16.mxu0 0
    %2537 = vmatpush1.bf16.msra.mxu0 0
    %2538 = vmatprep.subr.bf16.mxu0 0
    %2539 = vmatpush1.bf16.msra.mxu0 0
    %2540 = vmatprep.subr.bf16.mxu0 0
    %2541 = vmatpush1.bf16.msra.mxu0 0
    %2542 = vmatprep.subr.bf16.mxu0 0
    %2543 = vmatpush1.bf16.msra.mxu0 0
    %2544 = vmatprep.subr.bf16.mxu0 0
    %2545 = vmatpush1.bf16.msra.mxu0 0
    %2546 = vmatprep.subr.bf16.mxu0 0
    %2547 = vmatpush1.bf16.msra.mxu0 0
    %2548 = vmatprep.subr.bf16.mxu0 0
    %2549 = vmatpush1.bf16.msra.mxu0 0
    %2550 = vmatprep.mubr.bf16.mxu0 0
    %2551 = vmatmul.mubr.bf16.gmra.mrb[0].mxu0 %v2516
    %v2552 = vpop.f32.mrb[0].mxu0
    %v2553 = vadd.f32 0.0, %v2552
    %v2554 = vpop.f32.mrb[0].mxu0
    %v2555 = vpop.f32.mrb[0].mxu0
    %v2556 = vpop.f32.mrb[0].mxu0
    %2557 = vdwg.mxu0
    %v2559 = vrot.slane %v2553, 2
    %v2561 = vadd.f32 %v1904, %v2559
    %v2562 = vxor.u32 %v2561, 2147483648
    %v2563 = vmul.f32 %v2562, 1.442695
    %v2564 = vpow.pop %v2563
    %v2565 = vadd.f32 %v2564, 1.0
    %v2566 = vrcp.pop %v2565
    %v2567 = vmul.f32 1.0, %v2566
    %v2568 = vadd.f32 %v2553, %v1973
    %v2570 = vrot.slane %v2568, 2
    %2571 = vrot.lane.b32.xlu0 %v2570, 64
    %v2572 = vpop.permute.xlu0 %2571
    %v2574 = vmul.f32 %v2567, %v2572
    %2576 = vrot.lane.b32.xlu0 %v2574, 64
    %v2577 = vpop.permute.xlu0 %2576
    %v2579 = vadd.f32 %v1904, %v2577
    %v2580 = vtanh.pop %v2579
    %v2581 = vsub.f32 1.0, %v2567
    %2583 = vrot.lane.b32.xlu0 %v2580, 96
    %v2584 = vpop.permute.xlu0 %2583
    %v2586 = vmul.f32 %v2581, %v2584
    %v2587 = vrot.slane %v2504, 6
    %v2589 = vmul.f32 %v2567, %v2587
    %v2590 = vadd.f32 %v2586, %v2589
    %2592 = vrot.lane.b32.xlu0 %v2590, 96
    %v2593 = vpop.permute.xlu0 %2592
    %2595 = vst.msk [vmem:[#allocation2 + $0x8] sm:$0xc0] %vm1415, %v2593
    %v2596 = vld [vmem:[#allocation2] sm:$0xff]
    %v2597 = vld [vmem:[#allocation2 + $0x8] sm:$0xff]
    %v2598 = vpack.c.bf16 %v2597, %v2596
    %2599 = vmatprep.subr.bf16.mxu0 0
    %2600 = vmatpush1.bf16.msra.mxu0 %v2598
    %2601 = vmatprep.subr.bf16.mxu0 0
    %2602 = vmatpush1.bf16.msra.mxu0 0
    %2603 = vmatprep.subr.bf16.mxu0 0
    %2604 = vmatpush1.bf16.msra.mxu0 0
    %2605 = vmatprep.subr.bf16.mxu0 0
    %2606 = vmatpush1.bf16.msra.mxu0 0
    %2607 = vmatprep.subr.bf16.mxu0 0
    %2608 = vmatpush1.bf16.msra.mxu0 0
    %2609 = vmatprep.subr.bf16.mxu0 0
    %2610 = vmatpush1.bf16.msra.mxu0 0
    %2611 = vmatprep.subr.bf16.mxu0 0
    %2612 = vmatpush1.bf16.msra.mxu0 0
    %2613 = vmatprep.subr.bf16.mxu0 0
    %2614 = vmatpush1.bf16.msra.mxu0 0
    %2615 = vmatprep.subr.bf16.mxu0 0
    %2616 = vmatpush1.bf16.msra.mxu0 0
    %2617 = vmatprep.subr.bf16.mxu0 0
    %2618 = vmatpush1.bf16.msra.mxu0 0
    %2619 = vmatprep.subr.bf16.mxu0 0
    %2620 = vmatpush1.bf16.msra.mxu0 0
    %2621 = vmatprep.subr.bf16.mxu0 0
    %2622 = vmatpush1.bf16.msra.mxu0 0
    %2623 = vmatprep.subr.bf16.mxu0 0
    %2624 = vmatpush1.bf16.msra.mxu0 0
    %2625 = vmatprep.subr.bf16.mxu0 0
    %2626 = vmatpush1.bf16.msra.mxu0 0
    %2627 = vmatprep.subr.bf16.mxu0 0
    %2628 = vmatpush1.bf16.msra.mxu0 0
    %2629 = vmatprep.subr.bf16.mxu0 0
    %2630 = vmatpush1.bf16.msra.mxu0 0
    %2631 = vmatprep.mubr.bf16.mxu0 0
    %2632 = vmatmul.mubr.bf16.gmra.mrb[0].mxu0 %v922
    %v2633 = vpop.f32.mrb[0].mxu0
    %v2634 = vadd.f32 0.0, %v2633
    %v2635 = vpop.f32.mrb[0].mxu0
    %v2636 = vpop.f32.mrb[0].mxu0
    %v2637 = vadd.f32 0.0, %v2636
    %v2638 = vpop.f32.mrb[0].mxu0
    %2639 = vdwg.mxu0
    %v2640 = vsel %vm920, %v2596, %v2634
    %v2641 = vsel %vm920, %v2597, %v2637
    %v2642 = vld [vmem:[%s5] sm:$0xf]
    %v2643 = vld [vmem:[%s5 + $0x4] sm:$0xf]
    %v2644 = vpack.c.bf16 %v2641, %v2640
    %v2647 = vunpack.c.l.b16 %v2642
    %v2648 = vunpack.c.l.b16 %v2643
    %v2649 = vpack.c.b16 %v2648, %v2647
    %v2651 = vsel %vm920, %v2649, 0
    %2653 = vmatprep.subr.bf16.mxu0 0
    %2654 = vmatpush1.bf16.msra.mxu0 %v2644
    %2655 = vmatprep.subr.bf16.mxu0 0
    %2656 = vmatpush1.bf16.msra.mxu0 0
    %2657 = vmatprep.subr.bf16.mxu0 0
    %2658 = vmatpush1.bf16.msra.mxu0 0
    %2659 = vmatprep.subr.bf16.mxu0 0
    %2660 = vmatpush1.bf16.msra.mxu0 0
    %2661 = vmatprep.subr.bf16.mxu0 0
    %2662 = vmatpush1.bf16.msra.mxu0 0
    %2663 = vmatprep.subr.bf16.mxu0 0
    %2664 = vmatpush1.bf16.msra.mxu0 0
    %2665 = vmatprep.subr.bf16.mxu0 0
    %2666 = vmatpush1.bf16.msra.mxu0 0
    %2667 = vmatprep.subr.bf16.mxu0 0
    %2668 = vmatpush1.bf16.msra.mxu0 0
    %2669 = vmatprep.subr.bf16.mxu0 0
    %2670 = vmatpush1.bf16.msra.mxu0 0
    %2671 = vmatprep.subr.bf16.mxu0 0
    %2672 = vmatpush1.bf16.msra.mxu0 0
    %2673 = vmatprep.subr.bf16.mxu0 0
    %2674 = vmatpush1.bf16.msra.mxu0 0
    %2675 = vmatprep.subr.bf16.mxu0 0
    %2676 = vmatpush1.bf16.msra.mxu0 0
    %2677 = vmatprep.subr.bf16.mxu0 0
    %2678 = vmatpush1.bf16.msra.mxu0 0
    %2679 = vmatprep.subr.bf16.mxu0 0
    %2680 = vmatpush1.bf16.msra.mxu0 0
    %2681 = vmatprep.subr.bf16.mxu0 0
    %2682 = vmatpush1.bf16.msra.mxu0 0
    %2683 = vmatprep.subr.bf16.mxu0 0
    %2684 = vmatpush1.bf16.msra.mxu0 0
    %2685 = vmatprep.mubr.bf16.mxu0 0
    %2686 = vmatmul.mubr.bf16.gmra.mrb[0].mxu0 %v2651
    %v2687 = vpop.f32.mrb[0].mxu0
    %v2688 = vadd.f32 0.0, %v2687
    %v2689 = vpop.f32.mrb[0].mxu0
    %v2690 = vpop.f32.mrb[0].mxu0
    %v2691 = vadd.f32 0.0, %v2690
    %v2692 = vpop.f32.mrb[0].mxu0
    %2693 = vdwg.mxu0
    %v2694 = vpack.c.bf16 %v2691, %v2688
    %v2695 = vld [vmem:[%s16] sm:$0xf]
    %v2696 = vld [vmem:[%s16 + $0x4] sm:$0xf]
    %v2697 = vld [vmem:[%s16 + $0x8] sm:$0xf]
    %v2698 = vld [vmem:[%s16 + $0xc] sm:$0xf]
    %v2699 = vld [vmem:[%s17] sm:$0x1]
    %v2701 = vlaneseq
    %v2702 = vshrl.u32 %v2701, 7
    %v2703 = vsub.s32 0, %v2702
    %v2704 = vrot.slane %v2699, %v2703
    %v2710 = vunpack.c.l.b16 %v2695
    %v2711 = vunpack.c.l.b16 %v2696
    %v2712 = vunpack.c.l.b16 %v2697
    %v2713 = vunpack.c.l.b16 %v2698
    %v2714 = vpack.c.b16 %v2711, %v2710
    %v2715 = vpack.c.b16 %v2713, %v2712
    %v2719 = vsel %vm867, %v2694, 0
    %2721 = vmatprep.subr.bf16.mxu0 0
    %2722 = vmatpush1.bf16.msra.mxu0 %v2714
    %2723 = vmatprep.subr.bf16.mxu0 0
    %2724 = vmatpush1.bf16.msra.mxu0 %v2715
    %2725 = vmatprep.subr.bf16.mxu0 0
    %2726 = vmatpush1.bf16.msra.mxu0 0
    %2727 = vmatprep.subr.bf16.mxu0 0
    %2728 = vmatpush1.bf16.msra.mxu0 0
    %2729 = vmatprep.subr.bf16.mxu0 0
    %2730 = vmatpush1.bf16.msra.mxu0 0
    %2731 = vmatprep.subr.bf16.mxu0 0
    %2732 = vmatpush1.bf16.msra.mxu0 0
    %2733 = vmatprep.subr.bf16.mxu0 0
    %2734 = vmatpush1.bf16.msra.mxu0 0
    %2735 = vmatprep.subr.bf16.mxu0 0
    %2736 = vmatpush1.bf16.msra.mxu0 0
    %2737 = vmatprep.subr.bf16.mxu0 0
    %2738 = vmatpush1.bf16.msra.mxu0 0
    %2739 = vmatprep.subr.bf16.mxu0 0
    %2740 = vmatpush1.bf16.msra.mxu0 0
    %2741 = vmatprep.subr.bf16.mxu0 0
    %2742 = vmatpush1.bf16.msra.mxu0 0
    %2743 = vmatprep.subr.bf16.mxu0 0
    %2744 = vmatpush1.bf16.msra.mxu0 0
    %2745 = vmatprep.subr.bf16.mxu0 0
    %2746 = vmatpush1.bf16.msra.mxu0 0
    %2747 = vmatprep.subr.bf16.mxu0 0
    %2748 = vmatpush1.bf16.msra.mxu0 0
    %2749 = vmatprep.subr.bf16.mxu0 0
    %2750 = vmatpush1.bf16.msra.mxu0 0
    %2751 = vmatprep.subr.bf16.mxu0 0
    %2752 = vmatpush1.bf16.msra.mxu0 0
    %2753 = vmatprep.mubr.bf16.mxu0 0
    %2754 = vmatmul.mubr.bf16.gmra.mrb[0].mxu0 %v2719
    %v2755 = vpop.f32.mrb[0].mxu0
    %v2756 = vadd.f32 %v2704, %v2755
    %v2757 = vpop.f32.mrb[0].mxu0
    %v2758 = vpop.f32.mrb[0].mxu0
    %v2759 = vadd.f32 %v2704, %v2758
    %v2760 = vpop.f32.mrb[0].mxu0
    %2761 = vdwg.mxu0
    %2762 = vst [vmem:[#allocation3] sm:$0xff] %v2756
    %2763 = vst [vmem:[#allocation3 + $0x8] sm:$0xff] %v2759
    %v2764 = vld [vmem:[%s18] sm:$0xff]
    %v2765 = vld [vmem:[%s18 + $0x8] sm:$0xff]
    %2766 = vmax.xlane.f32.xlu0 %v2756
    %v2767 = vpop.xlane.xlu0 %2766
    %2768 = vmax.xlane.f32.xlu0 %v2759
    %v2769 = vpop.xlane.xlu0 %2768
    %v2770 = vsub.f32 %v2756, %v2767
    %v2771 = vsub.f32 %v2759, %v2769
    %v2772 = vmul.f32 %v2770, 1.442695
    %v2773 = vpow.pop %v2772
    %v2774 = vmul.f32 %v2771, 1.442695
    %v2775 = vpow.pop %v2774
    %2776 = vadd.xlane.f32.xlu0 %v2773
    %v2777 = vpop.xlane.xlu0 %2776
    %2778 = vadd.xlane.f32.xlu0 %v2775
    %v2779 = vpop.xlane.xlu0 %2778
    %v2780 = vlog2.pop %v2777
    %v2781 = vmul.f32 %v2780, 0.6931472
    %v2782 = vlog2.pop %v2779
    %v2783 = vmul.f32 %v2782, 0.6931472
    %v2784 = vadd.f32 %v2781, %v2767
    %v2785 = vadd.f32 %v2783, %v2769
    %2786 = vset.pattern.permute.xlu0 0
    %2787 = vperm.xlu0 %2786, %v2764
    %v2788 = vpop.permute.xlu0 %2787
    %2789 = vset.pattern.permute.xlu0 0
    %2790 = vperm.xlu0 %2789, %v2765
    %v2791 = vpop.permute.xlu0 %2790
    %vm2792 = vcmp.eq.s32.totalorder %v68, %v2788
    %vm2793 = vcmp.eq.s32.totalorder %v68, %v2791
    %v2794 = vsel %vm2792, 1, 0
    %v2795 = vsel %vm2793, 1, 0
    %v2796 = vcvt.s32.f32 %v2794
    %v2797 = vcvt.s32.f32 %v2795
    %v2798 = vmul.f32 %v2756, %v2796
    %v2799 = vmul.f32 %v2759, %v2797
    %2800 = vadd.xlane.f32.xlu0 %v2798
    %v2801 = vpop.xlane.xlu0 %2800
    %2802 = vadd.xlane.f32.xlu0 %v2799
    %v2803 = vpop.xlane.xlu0 %2802
    %vm2804 = vcmp.ne.s32.totalorder %v2764, 4294967295
    %vm2805 = vcmp.ne.s32.totalorder %v2765, 4294967295
    %v2806 = vsel %vm2804, 1, 0
    %v2807 = vsel %vm2805, 1, 0
    %v2808 = vcvt.s32.f32 %v2806
    %v2809 = vcvt.s32.f32 %v2807
    %v2810 = vsub.f32 %v2784, %v2801
    %v2811 = vsub.f32 %v2785, %v2803
    %v2812 = vmul.f32 %v2810, %v2808
    %v2813 = vmul.f32 %v2811, %v2809
    %vm2814 = vcmask 7168
    %v2815 = vsel %vm2814, %v2812, 0.0
    %v2816 = vsel %vm2814, %v2813, 0.0
    %v2817 = vadd.f32 %v2815, %v2816
    %v2818 = vrot.slane %v2817, 4
    %v2819 = vadd.f32 %v2817, %v2818
    %v2820 = vrot.slane %v2819, 2
    %v2821 = vadd.f32 %v2819, %v2820
    %v2822 = vrot.slane %v2821, 1
    %v2823 = vadd.f32 %v2821, %v2822
    %v2824 = vsel %vm2814, %v2808, 0.0
    %v2825 = vsel %vm2814, %v2809, 0.0
    %v2826 = vadd.f32 %v2824, %v2825
    %v2827 = vrot.slane %v2826, 4
    %v2828 = vadd.f32 %v2826, %v2827
    %v2829 = vrot.slane %v2828, 2
    %v2830 = vadd.f32 %v2828, %v2829
    %v2831 = vrot.slane %v2830, 1
    %v2832 = vadd.f32 %v2830, %v2831
    %v2833 = vmax.f32 %v2832, 1.0
    %v2834 = vrcp.pop %v2833
    %v2835 = vmul.f32 %v2823, %v2834
    %vm2836 = vcmask 0
    %2837 = vst.msk [vmem:[#allocation5] sm:$0x1] %vm2836, %v2835
    // Predicated region
    $region78: #{tpu_custom_call.1} parent=1 // pred_check
      _
    $region79: #{tpu_custom_call.1} parent=1 // pred_check_branch
      %2839 = sbr.rel (0) target = $region81
    $region80: #{tpu_custom_call.1} parent=1 // pred_region
      %s2841 = ssub.s32 256, 256
      %2842 = vsyncadd [#allocation4], %s2841
      %s2843 = sshll.u32 [#allocation3], 4
      %s2844 = int_to_ptr.vmem [resolvable:$true] %s2843
      %2849 = dma.vmem_to_hbm [thread:$0]  %s2844, 256, %s19, [#allocation4], 128, 128, 8
    $region81: #{tpu_custom_call.1} parent=1 // pred_fallthru
      _
    // Predicated region
    $region82: #{tpu_custom_call.1} parent=1 // pred_check
      _
    $region83: #{tpu_custom_call.1} parent=1 // pred_check_branch
      %2851 = sbr.rel (0) target = $region85
    $region84: #{tpu_custom_call.1} parent=1 // pred_region
      %s2853 = ssub.s32 16, 16
      %2854 = vsyncadd [#allocation6], %s2853
      %s2856 = sshll.u32 [#allocation5], 4
      %s2857 = int_to_ptr.vmem [resolvable:$true] %s2856
      %2859 = dma.vmem_to_hbm [thread:$0]  %s2857, 16, %s20, [#allocation6]
    $region85: #{tpu_custom_call.1} parent=1 // pred_fallthru
      _
    // Predicated region
    $region86: #{tpu_custom_call.1} parent=1 // pred_check
      _
    $region87: #{tpu_custom_call.1} parent=1 // pred_check_branch
      %2861 = sbr.rel (0) target = $region89
    $region88: #{tpu_custom_call.1} parent=1 // pred_region
      %2862 = dma.done [#allocation4], 256
    $region89: #{tpu_custom_call.1} parent=1 // pred_fallthru
      _
    // Predicated region
    $region90: #{tpu_custom_call.1} parent=1 // pred_check
      _
    $region91: #{tpu_custom_call.1} parent=1 // pred_check_branch
      %2864 = sbr.rel (0) target = $region93
    $region92: #{tpu_custom_call.1} parent=1 // pred_region
      %2865 = dma.done [#allocation6], 16
    $region93: #{tpu_custom_call.1} parent=1 // pred_fallthru
      _
    %2866 = vsyncpa [#allocation4], 1
    %2867 = vsyncpa [#allocation6], 1

</llo_original>
